<compile_context>
chip_gen: v5e
topology: v5e:2x2
jax: 0.10.0
libtpu: 0.0.40
codegen_flags: <defaults>
</compile_context>

<pallas_src>
import functools

import jax
import jax.numpy as jnp
from jax.experimental import pallas as pl
from jax.experimental.pallas import tpu as pltpu

C_IN = 16
C_MID = 3
BN_EPS = 1e-5


def _silu(x):
    # x * sigmoid(x), sigmoid = 1 / (1 + exp(-x)).
    # exp and the approximate reciprocal both run on the EUP slot (no VPU divide).
    return x * pl.reciprocal(1.0 + jnp.exp(-x), approx=True)


def zmerge_kernel(
    xb_ref,    # (16, tm)  base-branch voxels: channels on sublanes, voxels on lanes
    xg_ref,    # (16, tm)  graph-branch voxels
    wb_ref,    # (16, 16)  base conv (BN folded), layout (Cout, Cin)
    bb_ref,    # (16, 1)
    wg_ref,    # (16, 16)  graph conv (BN folded)
    bg_ref,    # (16, 1)
    wm1b_ref,  # (3, 16)   merge conv1 (BN folded), columns for the base half of concat
    wm1g_ref,  # (3, 16)   merge conv1 (BN folded), columns for the graph half of concat
    bm1_ref,   # (3, 1)
    wm2_ref,   # (3, 3)    merge conv2
    bm2_ref,   # (3, 1)
    out_ref,   # (3, tm)
):
    xb = xb_ref[...]
    xg = xg_ref[...]

    # branch 1: Conv3d(16,16,1) + BN + SiLU   (BN folded into wb/bb)
    hb = _silu(jnp.dot(wb_ref[...], xb, preferred_element_type=jnp.float32) + bb_ref[...])
    # branch 2: Conv3d(16,16,1) + BN + SiLU   (BN folded into wg/bg)
    hg = _silu(jnp.dot(wg_ref[...], xg, preferred_element_type=jnp.float32) + bg_ref[...])

    # concat along channels + Conv3d(32,3,1) + BN + SiLU
    # W @ cat([hb, hg])  ==  W[:, :16] @ hb + W[:, 16:] @ hg   (no in-VMEM concat copy)
    h = (
        jnp.dot(wm1b_ref[...], hb, preferred_element_type=jnp.float32)
        + jnp.dot(wm1g_ref[...], hg, preferred_element_type=jnp.float32)
        + bm1_ref[...]
    )
    h = _silu(h)

    # final Conv3d(3,3,1)
    out = jnp.dot(wm2_ref[...], h, preferred_element_type=jnp.float32) + bm2_ref[...]
    out_ref[...] = out.astype(out_ref.dtype)


def _fold_bn(w_oi, b_o, gamma, beta, mean, var, eps=BN_EPS):
    """Fold eval-mode BatchNorm into a 1x1 conv.  w_oi: (Cout, Cin), b_o: (Cout,)."""
    inv = gamma / jnp.sqrt(var + eps)
    w_f = w_oi * inv[:, None]
    b_f = (b_o - mean) * inv + beta
    return w_f, b_f


def _pick_tile(dhw, tile_m):
    """Largest legal voxel tile: full extent if it fits, else a lane-aligned tile."""
    if dhw <= tile_m:
        return dhw                      # single block == full array dim (always legal)
    return max(128, (tile_m // 128) * 128)  # tiled: last-dim must be a multiple of 128


@functools.partial(jax.jit, static_argnames=("tile_m",))
def zmerge_forward(out_base, out_graph, params, tile_m=8192):
    """out_base/out_graph: NCDHW float32 arrays of shape (N, 16, D, H, W)."""
    N, C, D, H, W = out_base.shape
    assert C == C_IN
    DHW = D * H * W
    tile = _pick_tile(DHW, tile_m)

    # NCDHW -> (N, C, DHW): channels land on sublanes, voxels on lanes.
    # Pure contiguous reshape -- no transpose, no extra HBM traffic.
    xb = out_base.reshape(N, C_IN, DHW)
    xg = out_graph.reshape(N, C_IN, DHW)

    # --- fold BN into convs (glue, plain JAX; weights are tiny) ---
    wb, bb = _fold_bn(params["base_w"], params["base_b"],
                      params["base_gamma"], params["base_beta"],
                      params["base_mean"], params["base_var"])
    wg, bg = _fold_bn(params["graph_w"], params["graph_b"],
                      params["graph_gamma"], params["graph_beta"],
                      params["graph_mean"], params["graph_var"])
    wm1, bm1 = _fold_bn(params["m1_w"], params["m1_b"],
                        params["m1_gamma"], params["m1_beta"],
                        params["m1_mean"], params["m1_var"])
    wm2, bm2 = params["m2_w"], params["m2_b"]

    # Weights stay (Cout, Cin) for W @ X; split merge conv1 by concat halves.
    wm1b = wm1[:, :C_IN]          # (3, 16) acts on base half
    wm1g = wm1[:, C_IN:]          # (3, 16) acts on graph half

    # Biases as (Cout, 1) so they lane-broadcast across the voxel axis.
    bb2 = bb.reshape(-1, 1)
    bg2 = bg.reshape(-1, 1)
    bm12 = bm1.reshape(-1, 1)
    bm22 = bm2.reshape(-1, 1)

    grid = (N, pl.cdiv(DHW, tile))   # no padding copy; ragged tail handled by Pallas

    x_spec = pl.BlockSpec((None, C_IN, tile), lambda n, j: (n, 0, j))
    out_spec = pl.BlockSpec((None, C_MID, tile), lambda n, j: (n, 0, j))
    full = lambda shape: pl.BlockSpec(shape, lambda n, j: (0, 0))

    out_flat = pl.pallas_call(
        zmerge_kernel,
        out_shape=jax.ShapeDtypeStruct((N, C_MID, DHW), jnp.float32),
        grid_spec=pltpu.PrefetchScalarGridSpec(
            num_scalar_prefetch=0,
            grid=grid,
            in_specs=[
                x_spec,                    # xb
                x_spec,                    # xg
                full((C_IN, C_IN)),        # wb
                full((C_IN, 1)),           # bb
                full((C_IN, C_IN)),        # wg
                full((C_IN, 1)),           # bg
                full((C_MID, C_IN)),       # wm1 (base half)
                full((C_MID, C_IN)),       # wm1 (graph half)
                full((C_MID, 1)),          # bm1
                full((C_MID, C_MID)),      # wm2
                full((C_MID, 1)),          # bm2
            ],
            out_specs=out_spec,
        ),
        compiler_params=pltpu.CompilerParams(
            dimension_semantics=("parallel", "parallel"),
        ),
    )(xb, xg, wb, bb2, wg, bg2, wm1b, wm1g, bm12, wm2, bm22)

    # (N, 3, DHW) -> (N, 3, D, H, W): free contiguous reshape (no transpose).
    return out_flat.reshape(N, C_MID, D, H, W)


def _reference(out_base, out_graph, params):
    """Pure-JAX reference with identical (eval-mode BN) semantics."""
    def branch(x, w, b, g, bt, m, v):
        y = jnp.einsum("ncdhw,oc->nodhw", x, w) + b[None, :, None, None, None]
        y = (y - m[None, :, None, None, None]) / jnp.sqrt(v[None, :, None, None, None] + BN_EPS)
        y = y * g[None, :, None, None, None] + bt[None, :, None, None, None]
        return y * jax.nn.sigmoid(y)

    hb = branch(out_base, params["base_w"], params["base_b"], params["base_gamma"],
                params["base_beta"], params["base_mean"], params["base_var"])
    hg = branch(out_graph, params["graph_w"], params["graph_b"], params["graph_gamma"],
                params["graph_beta"], params["graph_mean"], params["graph_var"])
    h = jnp.concatenate([hb, hg], axis=1)
    h = branch(h, params["m1_w"], params["m1_b"], params["m1_gamma"],
               params["m1_beta"], params["m1_mean"], params["m1_var"])
    out = jnp.einsum("ncdhw,oc->nodhw", h, params["m2_w"]) + params["m2_b"][None, :, None, None, None]
    return out


def make_params(key):
    ks = jax.random.split(key, 16)
    def u(k, shape, scale=0.2):
        return jax.random.uniform(k, shape, jnp.float32, -scale, scale)
    params = {
        # branch base: Conv3d(16,16,1) weight stored as (Cout, Cin) since kernel is 1x1x1
        "base_w": u(ks[0], (C_IN, C_IN)), "base_b": u(ks[1], (C_IN,)),
        "base_gamma": 1.0 + u(ks[2], (C_IN,), 0.1), "base_beta": u(ks[3], (C_IN,), 0.1),
        "base_mean": u(ks[4], (C_IN,), 0.1), "base_var": 1.0 + u(ks[5], (C_IN,), 0.1),
        # branch graph
        "graph_w": u(ks[6], (C_IN, C_IN)), "graph_b": u(ks[7], (C_IN,)),
        "graph_gamma": 1.0 + u(ks[8], (C_IN,), 0.1), "graph_beta": u(ks[9], (C_IN,), 0.1),
        "graph_mean": u(ks[10], (C_IN,), 0.1), "graph_var": 1.0 + u(ks[11], (C_IN,), 0.1),
        # merge conv1: Conv3d(32,3,1)
        "m1_w": u(ks[12], (C_MID, 2 * C_IN)), "m1_b": u(ks[13], (C_MID,)),
        "m1_gamma": jnp.array([1.05, 0.95, 1.0], jnp.float32),
        "m1_beta": jnp.array([0.01, -0.02, 0.03], jnp.float32),
        "m1_mean": jnp.array([0.02, -0.01, 0.0], jnp.float32),
        "m1_var": jnp.array([1.1, 0.9, 1.0], jnp.float32),
        # merge conv2: Conv3d(3,3,1)
        "m2_w": u(ks[14], (C_MID, C_MID)), "m2_b": u(ks[15], (C_MID,)),
    }
    return params


if __name__ == "__main__":
    key = jax.random.PRNGKey(0)
    k_p, k_b, k_g = jax.random.split(key, 3)

    # Small shapes: N=2, C=16, D=H=W=16 (NCDHW, matching the PyTorch module).
    # DHW = 4096 <= tile_m default -> single full-extent voxel block per batch element,
    # grid (2, 1), batch axis sharded across TensorCores ("parallel").
    N, D, H, W = 2, 16, 16, 16
    out_base = jax.random.normal(k_b, (N, C_IN, D, H, W), jnp.float32)
    out_graph = jax.random.normal(k_g, (N, C_IN, D, H, W), jnp.float32)

    params = make_params(k_p)

    out = zmerge_forward(out_base, out_graph, params)
    out = jax.block_until_ready(out)

    ref = _reference(out_base, out_graph, params)
    assert out.shape == (N, C_MID, D, H, W), out.shape
    # Tolerance accounts for the EUP approximate-reciprocal in the in-kernel sigmoid.
    max_err = float(jnp.max(jnp.abs(out - ref)))
    assert jnp.allclose(out, ref, atol=5e-3, rtol=5e-3), max_err

    print("KERNEL_OK")
</pallas_src>

<mosaic_0001>
module attributes {stable_mosaic.version = 11 : i64} {
  func.func @zmerge_kernel(%arg0: i32, %arg1: i32, %arg2: memref<1x16x4096xf32, #tpu.memory_space<vmem>>, %arg3: memref<1x16x4096xf32, #tpu.memory_space<vmem>>, %arg4: memref<16x16xf32, #tpu.memory_space<vmem>>, %arg5: memref<16x1xf32, #tpu.memory_space<vmem>>, %arg6: memref<16x16xf32, #tpu.memory_space<vmem>>, %arg7: memref<16x1xf32, #tpu.memory_space<vmem>>, %arg8: memref<3x16xf32, #tpu.memory_space<vmem>>, %arg9: memref<3x16xf32, #tpu.memory_space<vmem>>, %arg10: memref<3x1xf32, #tpu.memory_space<vmem>>, %arg11: memref<3x3xf32, #tpu.memory_space<vmem>>, %arg12: memref<3x1xf32, #tpu.memory_space<vmem>>, %arg13: memref<1x3x4096xf32, #tpu.memory_space<vmem>>) attributes {dimension_semantics = [#tpu.dimension_semantics<parallel>, #tpu.dimension_semantics<parallel>], iteration_bounds = array<i64: 2, 1>, scalar_prefetch = 0 : i64, scratch_operands = 0 : i64, tpu.core_type = #tpu.core_type<tc>, window_params = [{transform_indices = @transform_0, window_bounds = array<i64: 1, 16, 4096>}, {transform_indices = @transform_1, window_bounds = array<i64: 1, 16, 4096>}, {pipeline_mode = #tpu.pipeline_mode<synchronous>, transform_indices = @transform_2, window_bounds = array<i64: 16, 16>}, {pipeline_mode = #tpu.pipeline_mode<synchronous>, transform_indices = @transform_3, window_bounds = array<i64: 16, 1>}, {pipeline_mode = #tpu.pipeline_mode<synchronous>, transform_indices = @transform_4, window_bounds = array<i64: 16, 16>}, {pipeline_mode = #tpu.pipeline_mode<synchronous>, transform_indices = @transform_5, window_bounds = array<i64: 16, 1>}, {pipeline_mode = #tpu.pipeline_mode<synchronous>, transform_indices = @transform_6, window_bounds = array<i64: 3, 16>}, {pipeline_mode = #tpu.pipeline_mode<synchronous>, transform_indices = @transform_7, window_bounds = array<i64: 3, 16>}, {pipeline_mode = #tpu.pipeline_mode<synchronous>, transform_indices = @transform_8, window_bounds = array<i64: 3, 1>}, {pipeline_mode = #tpu.pipeline_mode<synchronous>, transform_indices = @transform_9, window_bounds = array<i64: 3, 3>}, {pipeline_mode = #tpu.pipeline_mode<synchronous>, transform_indices = @transform_10, window_bounds = array<i64: 3, 1>}, {transform_indices = @transform_11, window_bounds = array<i64: 1, 3, 4096>}]} {
    %c0 = arith.constant 0 : index
    %c0_0 = arith.constant 0 : index
    %c0_1 = arith.constant 0 : index
    %0 = vector.load %arg2[%c0, %c0_0, %c0_1] : memref<1x16x4096xf32, #tpu.memory_space<vmem>>, vector<1x16x4096xf32>
    %1 = vector.shape_cast %0 : vector<1x16x4096xf32> to vector<16x4096xf32>
    %c0_2 = arith.constant 0 : index
    %c0_3 = arith.constant 0 : index
    %c0_4 = arith.constant 0 : index
    %2 = vector.load %arg3[%c0_2, %c0_3, %c0_4] : memref<1x16x4096xf32, #tpu.memory_space<vmem>>, vector<1x16x4096xf32>
    %3 = vector.shape_cast %2 : vector<1x16x4096xf32> to vector<16x4096xf32>
    %c0_5 = arith.constant 0 : index
    %c0_6 = arith.constant 0 : index
    %4 = vector.load %arg4[%c0_5, %c0_6] : memref<16x16xf32, #tpu.memory_space<vmem>>, vector<16x16xf32>
    %cst = arith.constant dense<0.000000e+00> : vector<16x4096xf32>
    %5 = tpu.matmul %4, %1, %cst {dimension_numbers = #tpu.dot_dimension_numbers<[1], [0], [0], [1], [0, 0, 1, 1], [], []>} : vector<16x16xf32>, vector<16x4096xf32>, vector<16x4096xf32> -> vector<16x4096xf32>
    %c0_7 = arith.constant 0 : index
    %c0_8 = arith.constant 0 : index
    %6 = vector.load %arg5[%c0_7, %c0_8] : memref<16x1xf32, #tpu.memory_space<vmem>>, vector<16x1xf32>
    %7 = vector.broadcast %6 : vector<16x1xf32> to vector<16x4096xf32>
    %8 = arith.addf %5, %7 : vector<16x4096xf32>
    %cst_9 = arith.constant 0.000000e+00 : f32
    %9 = vector.broadcast %cst_9 : f32 to vector<16x4096xf32>
    %10 = arith.subf %9, %8 : vector<16x4096xf32>
    %11 = math.exp %10 : vector<16x4096xf32>
    %cst_10 = arith.constant 1.000000e+00 : f32
    %12 = vector.broadcast %cst_10 : f32 to vector<16x4096xf32>
    %13 = arith.addf %12, %11 : vector<16x4096xf32>
    %14 = tpu.reciprocal %13 {approx = true} : vector<16x4096xf32> -> vector<16x4096xf32>
    %15 = arith.mulf %8, %14 : vector<16x4096xf32>
    %c0_11 = arith.constant 0 : index
    %c0_12 = arith.constant 0 : index
    %16 = vector.load %arg6[%c0_11, %c0_12] : memref<16x16xf32, #tpu.memory_space<vmem>>, vector<16x16xf32>
    %cst_13 = arith.constant dense<0.000000e+00> : vector<16x4096xf32>
    %17 = tpu.matmul %16, %3, %cst_13 {dimension_numbers = #tpu.dot_dimension_numbers<[1], [0], [0], [1], [0, 0, 1, 1], [], []>} : vector<16x16xf32>, vector<16x4096xf32>, vector<16x4096xf32> -> vector<16x4096xf32>
    %c0_14 = arith.constant 0 : index
    %c0_15 = arith.constant 0 : index
    %18 = vector.load %arg7[%c0_14, %c0_15] : memref<16x1xf32, #tpu.memory_space<vmem>>, vector<16x1xf32>
    %19 = vector.broadcast %18 : vector<16x1xf32> to vector<16x4096xf32>
    %20 = arith.addf %17, %19 : vector<16x4096xf32>
    %cst_16 = arith.constant 0.000000e+00 : f32
    %21 = vector.broadcast %cst_16 : f32 to vector<16x4096xf32>
    %22 = arith.subf %21, %20 : vector<16x4096xf32>
    %23 = math.exp %22 : vector<16x4096xf32>
    %cst_17 = arith.constant 1.000000e+00 : f32
    %24 = vector.broadcast %cst_17 : f32 to vector<16x4096xf32>
    %25 = arith.addf %24, %23 : vector<16x4096xf32>
    %26 = tpu.reciprocal %25 {approx = true} : vector<16x4096xf32> -> vector<16x4096xf32>
    %27 = arith.mulf %20, %26 : vector<16x4096xf32>
    %c0_18 = arith.constant 0 : index
    %c0_19 = arith.constant 0 : index
    %28 = vector.load %arg8[%c0_18, %c0_19] : memref<3x16xf32, #tpu.memory_space<vmem>>, vector<3x16xf32>
    %cst_20 = arith.constant dense<0.000000e+00> : vector<3x4096xf32>
    %29 = tpu.matmul %28, %15, %cst_20 {dimension_numbers = #tpu.dot_dimension_numbers<[1], [0], [0], [1], [0, 0, 1, 1], [], []>} : vector<3x16xf32>, vector<16x4096xf32>, vector<3x4096xf32> -> vector<3x4096xf32>
    %c0_21 = arith.constant 0 : index
    %c0_22 = arith.constant 0 : index
    %30 = vector.load %arg9[%c0_21, %c0_22] : memref<3x16xf32, #tpu.memory_space<vmem>>, vector<3x16xf32>
    %cst_23 = arith.constant dense<0.000000e+00> : vector<3x4096xf32>
    %31 = tpu.matmul %30, %27, %cst_23 {dimension_numbers = #tpu.dot_dimension_numbers<[1], [0], [0], [1], [0, 0, 1, 1], [], []>} : vector<3x16xf32>, vector<16x4096xf32>, vector<3x4096xf32> -> vector<3x4096xf32>
    %32 = arith.addf %29, %31 : vector<3x4096xf32>
    %c0_24 = arith.constant 0 : index
    %c0_25 = arith.constant 0 : index
    %33 = vector.load %arg10[%c0_24, %c0_25] : memref<3x1xf32, #tpu.memory_space<vmem>>, vector<3x1xf32>
    %34 = vector.broadcast %33 : vector<3x1xf32> to vector<3x4096xf32>
    %35 = arith.addf %32, %34 : vector<3x4096xf32>
    %cst_26 = arith.constant 0.000000e+00 : f32
    %36 = vector.broadcast %cst_26 : f32 to vector<3x4096xf32>
    %37 = arith.subf %36, %35 : vector<3x4096xf32>
    %38 = math.exp %37 : vector<3x4096xf32>
    %cst_27 = arith.constant 1.000000e+00 : f32
    %39 = vector.broadcast %cst_27 : f32 to vector<3x4096xf32>
    %40 = arith.addf %39, %38 : vector<3x4096xf32>
    %41 = tpu.reciprocal %40 {approx = true} : vector<3x4096xf32> -> vector<3x4096xf32>
    %42 = arith.mulf %35, %41 : vector<3x4096xf32>
    %c0_28 = arith.constant 0 : index
    %c0_29 = arith.constant 0 : index
    %43 = vector.load %arg11[%c0_28, %c0_29] : memref<3x3xf32, #tpu.memory_space<vmem>>, vector<3x3xf32>
    %cst_30 = arith.constant dense<0.000000e+00> : vector<3x4096xf32>
    %44 = tpu.matmul %43, %42, %cst_30 {dimension_numbers = #tpu.dot_dimension_numbers<[1], [0], [0], [1], [0, 0, 1, 1], [], []>} : vector<3x3xf32>, vector<3x4096xf32>, vector<3x4096xf32> -> vector<3x4096xf32>
    %c0_31 = arith.constant 0 : index
    %c0_32 = arith.constant 0 : index
    %45 = vector.load %arg12[%c0_31, %c0_32] : memref<3x1xf32, #tpu.memory_space<vmem>>, vector<3x1xf32>
    %46 = vector.broadcast %45 : vector<3x1xf32> to vector<3x4096xf32>
    %47 = arith.addf %44, %46 : vector<3x4096xf32>
    %c0_33 = arith.constant 0 : index
    %c0_34 = arith.constant 0 : index
    %c0_35 = arith.constant 0 : index
    %48 = vector.load %arg13[%c0_33, %c0_34, %c0_35] : memref<1x3x4096xf32, #tpu.memory_space<vmem>>, vector<1x3x4096xf32>
    %49 = vector.shape_cast %48 : vector<1x3x4096xf32> to vector<3x4096xf32>
    %50 = vector.shape_cast %47 : vector<3x4096xf32> to vector<1x3x4096xf32>
    tpu.vector_store %arg13[%c0_33, %c0_34, %c0_35], %50 {strides = array<i32>} : memref<1x3x4096xf32, #tpu.memory_space<vmem>>, vector<1x3x4096xf32>,
    return
  }
  func.func @transform_0(%arg0: i32, %arg1: i32) -> (i32, i32, i32) {
    %c0_i32 = arith.constant 0 : i32
    %c0_i32_0 = arith.constant 0 : i32
    return %arg0, %c0_i32, %arg1 : i32, i32, i32
  }
  func.func @transform_1(%arg0: i32, %arg1: i32) -> (i32, i32, i32) {
    %c0_i32 = arith.constant 0 : i32
    %c0_i32_0 = arith.constant 0 : i32
    return %arg0, %c0_i32, %arg1 : i32, i32, i32
  }
  func.func @transform_2(%arg0: i32, %arg1: i32) -> (i32, i32) {
    %c0_i32 = arith.constant 0 : i32
    %c0_i32_0 = arith.constant 0 : i32
    %c0_i32_1 = arith.constant 0 : i32
    return %c0_i32, %c0_i32_0 : i32, i32
  }
  func.func @transform_3(%arg0: i32, %arg1: i32) -> (i32, i32) {
    %c0_i32 = arith.constant 0 : i32
    %c0_i32_0 = arith.constant 0 : i32
    %c0_i32_1 = arith.constant 0 : i32
    return %c0_i32, %c0_i32_0 : i32, i32
  }
  func.func @transform_4(%arg0: i32, %arg1: i32) -> (i32, i32) {
    %c0_i32 = arith.constant 0 : i32
    %c0_i32_0 = arith.constant 0 : i32
    %c0_i32_1 = arith.constant 0 : i32
    return %c0_i32, %c0_i32_0 : i32, i32
  }
  func.func @transform_5(%arg0: i32, %arg1: i32) -> (i32, i32) {
    %c0_i32 = arith.constant 0 : i32
    %c0_i32_0 = arith.constant 0 : i32
    %c0_i32_1 = arith.constant 0 : i32
    return %c0_i32, %c0_i32_0 : i32, i32
  }
  func.func @transform_6(%arg0: i32, %arg1: i32) -> (i32, i32) {
    %c0_i32 = arith.constant 0 : i32
    %c0_i32_0 = arith.constant 0 : i32
    %c0_i32_1 = arith.constant 0 : i32
    return %c0_i32, %c0_i32_0 : i32, i32
  }
  func.func @transform_7(%arg0: i32, %arg1: i32) -> (i32, i32) {
    %c0_i32 = arith.constant 0 : i32
    %c0_i32_0 = arith.constant 0 : i32
    %c0_i32_1 = arith.constant 0 : i32
    return %c0_i32, %c0_i32_0 : i32, i32
  }
  func.func @transform_8(%arg0: i32, %arg1: i32) -> (i32, i32) {
    %c0_i32 = arith.constant 0 : i32
    %c0_i32_0 = arith.constant 0 : i32
    %c0_i32_1 = arith.constant 0 : i32
    return %c0_i32, %c0_i32_0 : i32, i32
  }
  func.func @transform_9(%arg0: i32, %arg1: i32) -> (i32, i32) {
    %c0_i32 = arith.constant 0 : i32
    %c0_i32_0 = arith.constant 0 : i32
    %c0_i32_1 = arith.constant 0 : i32
    return %c0_i32, %c0_i32_0 : i32, i32
  }
  func.func @transform_10(%arg0: i32, %arg1: i32) -> (i32, i32) {
    %c0_i32 = arith.constant 0 : i32
    %c0_i32_0 = arith.constant 0 : i32
    %c0_i32_1 = arith.constant 0 : i32
    return %c0_i32, %c0_i32_0 : i32, i32
  }
  func.func @transform_11(%arg0: i32, %arg1: i32) -> (i32, i32, i32) {
    %c0_i32 = arith.constant 0 : i32
    %c0_i32_0 = arith.constant 0 : i32
    return %arg0, %c0_i32, %arg1 : i32, i32, i32
  }
}

</mosaic_0001>

<llo_original>
// kernel: zmerge_forward.1
$region0: #{zmerge_forward.1}
  #allocation0 [shape = 'u32[]', space=smem, size = 0x4, offset = 0x4, fixed_abs, tag = 'smem constant byte address 0x4 - core index']
  #allocation1 [shape = 'u32[72,128]{1,0:T(1,128)}', space=vmem, size = 0x9000, scoped, tag = 'internal scratch']
  %s0 = inlined_call_operand.vmem [shape: f32[2,16,4096], index: 0, kind: input, shape index: {}]
  %s1 = inlined_call_operand.vmem [shape: f32[2,16,4096], index: 1, kind: input, shape index: {}]
  %s2 = inlined_call_operand.vmem [shape: f32[16,16], index: 2, kind: input, shape index: {}]
  %s3 = inlined_call_operand.vmem [shape: f32[16,1], index: 3, kind: input, shape index: {}]
  %s4 = inlined_call_operand.vmem [shape: f32[16,16], index: 4, kind: input, shape index: {}]
  %s5 = inlined_call_operand.vmem [shape: f32[16,1], index: 5, kind: input, shape index: {}]
  %s6 = inlined_call_operand.vmem [shape: f32[3,16], index: 6, kind: input, shape index: {}]
  %s7 = inlined_call_operand.vmem [shape: f32[3,16], index: 7, kind: input, shape index: {}]
  %s8 = inlined_call_operand.vmem [shape: f32[3,1], index: 8, kind: input, shape index: {}]
  %s9 = inlined_call_operand.vmem [shape: f32[3,3], index: 9, kind: input, shape index: {}]
  %s10 = inlined_call_operand.vmem [shape: f32[3,1], index: 10, kind: input, shape index: {}]
  %s11 = inlined_call_operand.vmem [shape: f32[2,3,4096], index: 11, kind: output, shape index: {}]
  %s12 = sld [smem:[#allocation0]]
  $region77: #{zmerge_forward.1} parent=0
    _
  %s14 = ssub.s32 1, %s12
  %s15 = scalar_select 0, %s14, %s12
  loop: start=0, step=1, limit=4
  $region2: #{zmerge_forward.1} parent=0 // loop_pre_header
    _
  $region3: #{zmerge_forward.1} parent=0 // loop_header
    %s17 = sphi 0, %s21
    %p18 = scmp.ge.s32.totalorder %s17, 4
    %s24 = sphi 0, %s36
    %s25 = sphi 0, %s32
    %s26 = sphi 0, %s24
    %s27 = sphi 0, %s25
    %s28 = sphi 0, %s26
    %s29 = sphi 0, %s27
    %s41 = sphi 0, %s43
    %s44 = sphi 0, %s41
    %s45 = sphi 0, %s44
    %s61 = sphi 0, %s45
    %s69 = sphi 0, %s71
    %s72 = sphi 0, %s69
    %s73 = sphi 0, %s72
    %s89 = sphi 0, %s73
    %s93 = sphi 0, %s93
    %s95 = sphi 0, %s93
    %s96 = sphi 0, %s95
    %s110 = sphi 0, %s96
    %s114 = sphi 0, %s114
    %s116 = sphi 0, %s114
    %s117 = sphi 0, %s116
    %s131 = sphi 0, %s117
    %s135 = sphi 0, %s135
    %s137 = sphi 0, %s135
    %s138 = sphi 0, %s137
    %s152 = sphi 0, %s138
    %s156 = sphi 0, %s156
    %s158 = sphi 0, %s156
    %s159 = sphi 0, %s158
    %s173 = sphi 0, %s159
    %s177 = sphi 0, %s177
    %s179 = sphi 0, %s177
    %s180 = sphi 0, %s179
    %s194 = sphi 0, %s180
    %s198 = sphi 0, %s198
    %s200 = sphi 0, %s198
    %s201 = sphi 0, %s200
    %s215 = sphi 0, %s201
    %s219 = sphi 0, %s219
    %s221 = sphi 0, %s219
    %s222 = sphi 0, %s221
    %s236 = sphi 0, %s222
    %s240 = sphi 0, %s240
    %s242 = sphi 0, %s240
    %s243 = sphi 0, %s242
    %s257 = sphi 0, %s243
    %s261 = sphi 0, %s261
    %s263 = sphi 0, %s261
    %s264 = sphi 0, %s263
    %s278 = sphi 0, %s264
    %s286 = sphi 0, %s288
    %s289 = sphi 0, %s286
    %s290 = sphi 0, %s289
    %s306 = sphi 0, %s290
  $region4: #{zmerge_forward.1} parent=0 // loop_header_branch
    %20 = sbr.rel (%p18) target = $region8
  $region5: #{zmerge_forward.1} parent=0 // loop_body
    %s22 = ssub.s32 %s17, 1
    %s23 = ssub.s32 %s17, 2
    %s30 = sadd.s32 1, %s25
    %p31 = scmp.ge.s32.totalorder %s30, 1
    %s32 = scalar_select %p31, 0, %s30
    %s33 = sadd.s32 1, %s24
    %s34 = scalar_select %p31, %s33, %s24
    %p35 = scmp.ge.s32.totalorder %s34, 2
    %s36 = scalar_select %p35, 0, %s34
    %s37 = ssub.s32 %s24, %s36
    %s38 = ssub.s32 %s25, %s32
    %s39 = sor.u32 %s37, %s38
    %p40 = scmp.eq.s32.totalorder %s39, 0
    %s42 = sadd.s32 %s41, 1
    %s43 = scalar_select %p40, %s41, %s42
    %p46 = pneg %p40
    %p47 = scmp.eq.s32.totalorder %s17, 1
    %p48 = por %p46, %p47
    %p49 = scmp.ne.s32.totalorder %s41, %s44
    %p50 = scmp.eq.s32.totalorder %s17, 0
    %p51 = por %p49, %p50
    %p52 = scmp.ne.s32.totalorder %s41, %s44
    %p53 = scmp.eq.s32.totalorder %s22, 1
    %p54 = por %p52, %p53
    %p55 = scmp.ne.s32.totalorder %s44, %s45
    %p56 = scmp.eq.s32.totalorder %s22, 0
    %p57 = por %p55, %p56
    %p58 = scmp.ne.s32.totalorder %s44, %s45
    %p59 = scmp.eq.s32.totalorder %s23, 1
    %p60 = por %p58, %p59
    %p62 = scmp.ne.s32.totalorder %s45, %s61
    %p63 = scmp.eq.s32.totalorder %s23, 0
    %p64 = por %p62, %p63
    %s65 = ssub.s32 %s24, %s36
    %s66 = ssub.s32 %s25, %s32
    %s67 = sor.u32 %s65, %s66
    %p68 = scmp.eq.s32.totalorder %s67, 0
    %s70 = sadd.s32 %s69, 1
    %s71 = scalar_select %p68, %s69, %s70
    %p74 = pneg %p68
    %p75 = scmp.eq.s32.totalorder %s17, 1
    %p76 = por %p74, %p75
    %p77 = scmp.ne.s32.totalorder %s69, %s72
    %p78 = scmp.eq.s32.totalorder %s17, 0
    %p79 = por %p77, %p78
    %p80 = scmp.ne.s32.totalorder %s69, %s72
    %p81 = scmp.eq.s32.totalorder %s22, 1
    %p82 = por %p80, %p81
    %p83 = scmp.ne.s32.totalorder %s72, %s73
    %p84 = scmp.eq.s32.totalorder %s22, 0
    %p85 = por %p83, %p84
    %p86 = scmp.ne.s32.totalorder %s72, %s73
    %p87 = scmp.eq.s32.totalorder %s23, 1
    %p88 = por %p86, %p87
    %p90 = scmp.ne.s32.totalorder %s73, %s89
    %p91 = scmp.eq.s32.totalorder %s23, 0
    %p92 = por %p90, %p91
    %s94 = sadd.s32 %s93, 1
    %p97 = scmp.eq.s32.totalorder %s17, 1
    %p98 = scmp.ne.s32.totalorder %s93, %s95
    %p99 = scmp.eq.s32.totalorder %s17, 0
    %p100 = por %p98, %p99
    %p101 = scmp.ne.s32.totalorder %s93, %s95
    %p102 = scmp.eq.s32.totalorder %s22, 1
    %p103 = por %p101, %p102
    %p104 = scmp.ne.s32.totalorder %s95, %s96
    %p105 = scmp.eq.s32.totalorder %s22, 0
    %p106 = por %p104, %p105
    %p107 = scmp.ne.s32.totalorder %s95, %s96
    %p108 = scmp.eq.s32.totalorder %s23, 1
    %p109 = por %p107, %p108
    %p111 = scmp.ne.s32.totalorder %s96, %s110
    %p112 = scmp.eq.s32.totalorder %s23, 0
    %p113 = por %p111, %p112
    %s115 = sadd.s32 %s114, 1
    %p118 = scmp.eq.s32.totalorder %s17, 1
    %p119 = scmp.ne.s32.totalorder %s114, %s116
    %p120 = scmp.eq.s32.totalorder %s17, 0
    %p121 = por %p119, %p120
    %p122 = scmp.ne.s32.totalorder %s114, %s116
    %p123 = scmp.eq.s32.totalorder %s22, 1
    %p124 = por %p122, %p123
    %p125 = scmp.ne.s32.totalorder %s116, %s117
    %p126 = scmp.eq.s32.totalorder %s22, 0
    %p127 = por %p125, %p126
    %p128 = scmp.ne.s32.totalorder %s116, %s117
    %p129 = scmp.eq.s32.totalorder %s23, 1
    %p130 = por %p128, %p129
    %p132 = scmp.ne.s32.totalorder %s117, %s131
    %p133 = scmp.eq.s32.totalorder %s23, 0
    %p134 = por %p132, %p133
    %s136 = sadd.s32 %s135, 1
    %p139 = scmp.eq.s32.totalorder %s17, 1
    %p140 = scmp.ne.s32.totalorder %s135, %s137
    %p141 = scmp.eq.s32.totalorder %s17, 0
    %p142 = por %p140, %p141
    %p143 = scmp.ne.s32.totalorder %s135, %s137
    %p144 = scmp.eq.s32.totalorder %s22, 1
    %p145 = por %p143, %p144
    %p146 = scmp.ne.s32.totalorder %s137, %s138
    %p147 = scmp.eq.s32.totalorder %s22, 0
    %p148 = por %p146, %p147
    %p149 = scmp.ne.s32.totalorder %s137, %s138
    %p150 = scmp.eq.s32.totalorder %s23, 1
    %p151 = por %p149, %p150
    %p153 = scmp.ne.s32.totalorder %s138, %s152
    %p154 = scmp.eq.s32.totalorder %s23, 0
    %p155 = por %p153, %p154
    %s157 = sadd.s32 %s156, 1
    %p160 = scmp.eq.s32.totalorder %s17, 1
    %p161 = scmp.ne.s32.totalorder %s156, %s158
    %p162 = scmp.eq.s32.totalorder %s17, 0
    %p163 = por %p161, %p162
    %p164 = scmp.ne.s32.totalorder %s156, %s158
    %p165 = scmp.eq.s32.totalorder %s22, 1
    %p166 = por %p164, %p165
    %p167 = scmp.ne.s32.totalorder %s158, %s159
    %p168 = scmp.eq.s32.totalorder %s22, 0
    %p169 = por %p167, %p168
    %p170 = scmp.ne.s32.totalorder %s158, %s159
    %p171 = scmp.eq.s32.totalorder %s23, 1
    %p172 = por %p170, %p171
    %p174 = scmp.ne.s32.totalorder %s159, %s173
    %p175 = scmp.eq.s32.totalorder %s23, 0
    %p176 = por %p174, %p175
    %s178 = sadd.s32 %s177, 1
    %p181 = scmp.eq.s32.totalorder %s17, 1
    %p182 = scmp.ne.s32.totalorder %s177, %s179
    %p183 = scmp.eq.s32.totalorder %s17, 0
    %p184 = por %p182, %p183
    %p185 = scmp.ne.s32.totalorder %s177, %s179
    %p186 = scmp.eq.s32.totalorder %s22, 1
    %p187 = por %p185, %p186
    %p188 = scmp.ne.s32.totalorder %s179, %s180
    %p189 = scmp.eq.s32.totalorder %s22, 0
    %p190 = por %p188, %p189
    %p191 = scmp.ne.s32.totalorder %s179, %s180
    %p192 = scmp.eq.s32.totalorder %s23, 1
    %p193 = por %p191, %p192
    %p195 = scmp.ne.s32.totalorder %s180, %s194
    %p196 = scmp.eq.s32.totalorder %s23, 0
    %p197 = por %p195, %p196
    %s199 = sadd.s32 %s198, 1
    %p202 = scmp.eq.s32.totalorder %s17, 1
    %p203 = scmp.ne.s32.totalorder %s198, %s200
    %p204 = scmp.eq.s32.totalorder %s17, 0
    %p205 = por %p203, %p204
    %p206 = scmp.ne.s32.totalorder %s198, %s200
    %p207 = scmp.eq.s32.totalorder %s22, 1
    %p208 = por %p206, %p207
    %p209 = scmp.ne.s32.totalorder %s200, %s201
    %p210 = scmp.eq.s32.totalorder %s22, 0
    %p211 = por %p209, %p210
    %p212 = scmp.ne.s32.totalorder %s200, %s201
    %p213 = scmp.eq.s32.totalorder %s23, 1
    %p214 = por %p212, %p213
    %p216 = scmp.ne.s32.totalorder %s201, %s215
    %p217 = scmp.eq.s32.totalorder %s23, 0
    %p218 = por %p216, %p217
    %s220 = sadd.s32 %s219, 1
    %p223 = scmp.eq.s32.totalorder %s17, 1
    %p224 = scmp.ne.s32.totalorder %s219, %s221
    %p225 = scmp.eq.s32.totalorder %s17, 0
    %p226 = por %p224, %p225
    %p227 = scmp.ne.s32.totalorder %s219, %s221
    %p228 = scmp.eq.s32.totalorder %s22, 1
    %p229 = por %p227, %p228
    %p230 = scmp.ne.s32.totalorder %s221, %s222
    %p231 = scmp.eq.s32.totalorder %s22, 0
    %p232 = por %p230, %p231
    %p233 = scmp.ne.s32.totalorder %s221, %s222
    %p234 = scmp.eq.s32.totalorder %s23, 1
    %p235 = por %p233, %p234
    %p237 = scmp.ne.s32.totalorder %s222, %s236
    %p238 = scmp.eq.s32.totalorder %s23, 0
    %p239 = por %p237, %p238
    %s241 = sadd.s32 %s240, 1
    %p244 = scmp.eq.s32.totalorder %s17, 1
    %p245 = scmp.ne.s32.totalorder %s240, %s242
    %p246 = scmp.eq.s32.totalorder %s17, 0
    %p247 = por %p245, %p246
    %p248 = scmp.ne.s32.totalorder %s240, %s242
    %p249 = scmp.eq.s32.totalorder %s22, 1
    %p250 = por %p248, %p249
    %p251 = scmp.ne.s32.totalorder %s242, %s243
    %p252 = scmp.eq.s32.totalorder %s22, 0
    %p253 = por %p251, %p252
    %p254 = scmp.ne.s32.totalorder %s242, %s243
    %p255 = scmp.eq.s32.totalorder %s23, 1
    %p256 = por %p254, %p255
    %p258 = scmp.ne.s32.totalorder %s243, %s257
    %p259 = scmp.eq.s32.totalorder %s23, 0
    %p260 = por %p258, %p259
    %s262 = sadd.s32 %s261, 1
    %p265 = scmp.eq.s32.totalorder %s17, 1
    %p266 = scmp.ne.s32.totalorder %s261, %s263
    %p267 = scmp.eq.s32.totalorder %s17, 0
    %p268 = por %p266, %p267
    %p269 = scmp.ne.s32.totalorder %s261, %s263
    %p270 = scmp.eq.s32.totalorder %s22, 1
    %p271 = por %p269, %p270
    %p272 = scmp.ne.s32.totalorder %s263, %s264
    %p273 = scmp.eq.s32.totalorder %s22, 0
    %p274 = por %p272, %p273
    %p275 = scmp.ne.s32.totalorder %s263, %s264
    %p276 = scmp.eq.s32.totalorder %s23, 1
    %p277 = por %p275, %p276
    %p279 = scmp.ne.s32.totalorder %s264, %s278
    %p280 = scmp.eq.s32.totalorder %s23, 0
    %p281 = por %p279, %p280
    %s282 = ssub.s32 %s24, %s36
    %s283 = ssub.s32 %s25, %s32
    %s284 = sor.u32 %s282, %s283
    %p285 = scmp.eq.s32.totalorder %s284, 0
    %s287 = sadd.s32 %s286, 1
    %s288 = scalar_select %p285, %s286, %s287
    %p291 = pneg %p285
    %p292 = scmp.eq.s32.totalorder %s17, 1
    %p293 = por %p291, %p292
    %p294 = scmp.ne.s32.totalorder %s286, %s289
    %p295 = scmp.eq.s32.totalorder %s17, 0
    %p296 = por %p294, %p295
    %p297 = scmp.ne.s32.totalorder %s286, %s289
    %p298 = scmp.eq.s32.totalorder %s22, 1
    %p299 = por %p297, %p298
    %p300 = scmp.ne.s32.totalorder %s289, %s290
    %p301 = scmp.eq.s32.totalorder %s22, 0
    %p302 = por %p300, %p301
    %p303 = scmp.ne.s32.totalorder %s289, %s290
    %p304 = scmp.eq.s32.totalorder %s23, 1
    %p305 = por %p303, %p304
    %p307 = scmp.ne.s32.totalorder %s290, %s306
    %p308 = scmp.eq.s32.totalorder %s23, 0
    %p309 = por %p307, %p308
    %p310 = scmp.le.s32.totalorder 1, %s17
    %p311 = scmp.lt.s32.totalorder %s17, 3
    %p312 = pnand %p310, %p311
    %p313 = pneg %p312
    // Predicated region
    $region9: #{zmerge_forward.1} parent=5 // pred_check
      _
    $region10: #{zmerge_forward.1} parent=5 // pred_check_branch
      %315 = sbr.rel (%p312) target = $region12
    $region11: #{zmerge_forward.1} parent=5 // pred_region
      %s316 = ssub.s32 %s17, 1
      // Predicated region
      $region13: #{zmerge_forward.1} parent=11 // pred_check
        %p317 = pneg %p106
      $region14: #{zmerge_forward.1} parent=11 // pred_check_branch
        %319 = sbr.rel (%p317) target = $region16
      $region15: #{zmerge_forward.1} parent=11 // pred_region
        _
      $region16: #{zmerge_forward.1} parent=11 // pred_fallthru
        _
      // Predicated region
      $region17: #{zmerge_forward.1} parent=11 // pred_check
        %p320 = pneg %p127
      $region18: #{zmerge_forward.1} parent=11 // pred_check_branch
        %322 = sbr.rel (%p320) target = $region20
      $region19: #{zmerge_forward.1} parent=11 // pred_region
        _
      $region20: #{zmerge_forward.1} parent=11 // pred_fallthru
        _
      // Predicated region
      $region21: #{zmerge_forward.1} parent=11 // pred_check
        %p323 = pneg %p148
      $region22: #{zmerge_forward.1} parent=11 // pred_check_branch
        %325 = sbr.rel (%p323) target = $region24
      $region23: #{zmerge_forward.1} parent=11 // pred_region
        _
      $region24: #{zmerge_forward.1} parent=11 // pred_fallthru
        _
      // Predicated region
      $region25: #{zmerge_forward.1} parent=11 // pred_check
        %p326 = pneg %p169
      $region26: #{zmerge_forward.1} parent=11 // pred_check_branch
        %328 = sbr.rel (%p326) target = $region28
      $region27: #{zmerge_forward.1} parent=11 // pred_region
        _
      $region28: #{zmerge_forward.1} parent=11 // pred_fallthru
        _
      // Predicated region
      $region29: #{zmerge_forward.1} parent=11 // pred_check
        %p329 = pneg %p190
      $region30: #{zmerge_forward.1} parent=11 // pred_check_branch
        %331 = sbr.rel (%p329) target = $region32
      $region31: #{zmerge_forward.1} parent=11 // pred_region
        _
      $region32: #{zmerge_forward.1} parent=11 // pred_fallthru
        _
      // Predicated region
      $region33: #{zmerge_forward.1} parent=11 // pred_check
        %p332 = pneg %p211
      $region34: #{zmerge_forward.1} parent=11 // pred_check_branch
        %334 = sbr.rel (%p332) target = $region36
      $region35: #{zmerge_forward.1} parent=11 // pred_region
        _
      $region36: #{zmerge_forward.1} parent=11 // pred_fallthru
        _
      // Predicated region
      $region37: #{zmerge_forward.1} parent=11 // pred_check
        %p335 = pneg %p232
      $region38: #{zmerge_forward.1} parent=11 // pred_check_branch
        %337 = sbr.rel (%p335) target = $region40
      $region39: #{zmerge_forward.1} parent=11 // pred_region
        _
      $region40: #{zmerge_forward.1} parent=11 // pred_fallthru
        _
      // Predicated region
      $region41: #{zmerge_forward.1} parent=11 // pred_check
        %p338 = pneg %p253
      $region42: #{zmerge_forward.1} parent=11 // pred_check_branch
        %340 = sbr.rel (%p338) target = $region44
      $region43: #{zmerge_forward.1} parent=11 // pred_region
        _
      $region44: #{zmerge_forward.1} parent=11 // pred_fallthru
        _
      // Predicated region
      $region45: #{zmerge_forward.1} parent=11 // pred_check
        %p341 = pneg %p274
      $region46: #{zmerge_forward.1} parent=11 // pred_check_branch
        %343 = sbr.rel (%p341) target = $region48
      $region47: #{zmerge_forward.1} parent=11 // pred_region
        _
      $region48: #{zmerge_forward.1} parent=11 // pred_fallthru
        _
    $region12: #{zmerge_forward.1} parent=5 // pred_fallthru
      _
    %p344 = scmp.lt.s32.totalorder %s17, 2
    // Predicated region
    $region49: #{zmerge_forward.1} parent=5 // pred_check
      %p345 = pneg %p344
    $region50: #{zmerge_forward.1} parent=5 // pred_check_branch
      %347 = sbr.rel (%p345) target = $region52
    $region51: #{zmerge_forward.1} parent=5 // pred_region
      // Predicated region
      $region53: #{zmerge_forward.1} parent=51 // pred_check
        %p348 = pneg %p51
      $region54: #{zmerge_forward.1} parent=51 // pred_check_branch
        %350 = sbr.rel (%p348) target = $region56
      $region55: #{zmerge_forward.1} parent=51 // pred_region
        %s351 = smul.u32 32, %s25
        %p352 = scmp.lt.s32.totalorder %s24, 1
        %s353 = scalar_select %p352, %s24, 1
        %p354 = scmp.lt.s32.totalorder %s351, 31
        %s355 = scalar_select %p354, %s351, 31
        %s356 = smul.addr %s353, 64
        %s357 = sadd.s32 %s355, %s356
        %s358 = smul.addr %s357, 8
        %s359 = scalar_lea.vmem %s0, %s358
        %s360 = smul.u32 32, %s25
      $region56: #{zmerge_forward.1} parent=51 // pred_fallthru
        _
      // Predicated region
      $region57: #{zmerge_forward.1} parent=51 // pred_check
        %p361 = pneg %p79
      $region58: #{zmerge_forward.1} parent=51 // pred_check_branch
        %363 = sbr.rel (%p361) target = $region60
      $region59: #{zmerge_forward.1} parent=51 // pred_region
        %s364 = smul.u32 32, %s25
        %p365 = scmp.lt.s32.totalorder %s24, 1
        %s366 = scalar_select %p365, %s24, 1
        %p367 = scmp.lt.s32.totalorder %s364, 31
        %s368 = scalar_select %p367, %s364, 31
        %s369 = smul.addr %s366, 64
        %s370 = sadd.s32 %s368, %s369
        %s371 = smul.addr %s370, 8
        %s372 = scalar_lea.vmem %s1, %s371
        %s373 = smul.u32 32, %s25
      $region60: #{zmerge_forward.1} parent=51 // pred_fallthru
        _
    $region52: #{zmerge_forward.1} parent=5 // pred_fallthru
      _
    %p374 = scmp.le.s32.totalorder 1, %s17
    %p375 = scmp.lt.s32.totalorder %s17, 3
    %p376 = pnand %p374, %p375
    %p377 = pneg %p376
    // Predicated region
    $region61: #{zmerge_forward.1} parent=5 // pred_check
      _
    $region62: #{zmerge_forward.1} parent=5 // pred_check_branch
      %379 = sbr.rel (%p376) target = $region64
    $region63: #{zmerge_forward.1} parent=5 // pred_region
      %s380 = ssub.s32 %s17, 1
      %s381 = smul.u32 32, %s27
      %p382 = scmp.lt.s32.totalorder %s26, 1
      %s383 = scalar_select %p382, %s26, 1
      %p384 = scmp.lt.s32.totalorder %s381, 31
      %s385 = scalar_select %p384, %s381, 31
      %s386 = smul.addr %s383, 64
      %s387 = sadd.s32 %s385, %s386
      %s388 = smul.addr %s387, 8
      %s389 = scalar_lea.vmem %s0, %s388
      %p390 = pneg %p57
      %p391 = pneg %p54
      %s392 = smul.u32 32, %s27
      %p393 = scmp.lt.s32.totalorder %s26, 1
      %s394 = scalar_select %p393, %s26, 1
      %p395 = scmp.lt.s32.totalorder %s392, 31
      %s396 = scalar_select %p395, %s392, 31
      %s397 = smul.addr %s394, 64
      %s398 = sadd.s32 %s396, %s397
      %s399 = smul.addr %s398, 8
      %s400 = scalar_lea.vmem %s1, %s399
      %p401 = pneg %p85
      %p402 = pneg %p82
      %p403 = pneg %p106
      %p404 = pneg %p103
      %p405 = pneg %p127
      %p406 = pneg %p124
      %p407 = pneg %p148
      %p408 = pneg %p145
      %p409 = pneg %p169
      %p410 = pneg %p166
      %p411 = pneg %p190
      %p412 = pneg %p187
      %p413 = pneg %p211
      %p414 = pneg %p208
      %p415 = pneg %p232
      %p416 = pneg %p229
      %p417 = pneg %p253
      %p418 = pneg %p250
      %p419 = pneg %p274
      %p420 = pneg %p271
      %p421 = pneg %p302
      %p422 = pneg %p299
      %s423 = smul.u32 32, %s27
      %p424 = scmp.lt.s32.totalorder %s26, 1
      %s425 = scalar_select %p424, %s26, 1
      %p426 = scmp.lt.s32.totalorder %s423, 31
      %s427 = scalar_select %p426, %s423, 31
      %s428 = smul.addr %s425, 32
      %s429 = sadd.s32 %s427, %s428
      %s430 = smul.addr %s429, 4
      %s431 = scalar_lea.vmem %s11, %s430
      %s432 = smul.u32 32, %s27
      %p433 = scmp.lt.s32.totalorder %s26, 1
      %s434 = scalar_select %p433, %s26, 1
      %p435 = scmp.lt.s32.totalorder %s432, 31
      %s436 = scalar_select %p435, %s432, 31
      %s437 = smul.addr %s434, 64
      %s438 = sadd.s32 %s436, %s437
      %s439 = smul.addr %s438, 8
      %s440 = scalar_lea.vmem %s0, %s439
      %s441 = smul.u32 32, %s27
      %s442 = smul.u32 32, %s27
      %p443 = scmp.lt.s32.totalorder %s26, 1
      %s444 = scalar_select %p443, %s26, 1
      %p445 = scmp.lt.s32.totalorder %s442, 31
      %s446 = scalar_select %p445, %s442, 31
      %s447 = smul.addr %s444, 64
      %s448 = sadd.s32 %s446, %s447
      %s449 = smul.addr %s448, 8
      %s450 = scalar_lea.vmem %s1, %s449
      %s451 = smul.u32 32, %s27
      %s452 = smul.u32 32, %s27
      %p453 = scmp.lt.s32.totalorder %s26, 1
      %s454 = scalar_select %p453, %s26, 1
      %p455 = scmp.lt.s32.totalorder %s452, 31
      %s456 = scalar_select %p455, %s452, 31
      %s457 = smul.addr %s454, 32
      %s458 = sadd.s32 %s456, %s457
      %s459 = smul.addr %s458, 4
      %s460 = scalar_lea.vmem %s11, %s459
      %s461 = smul.u32 32, %s27
      %v462 = vld [vmem:[%s440] sm:$0xff]
      %v463 = vld [vmem:[%s440 + $0x8] sm:$0xff]
      %v464 = vld [vmem:[%s440 + $0x10] sm:$0xff]
      %v465 = vld [vmem:[%s440 + $0x18] sm:$0xff]
      %v466 = vld [vmem:[%s440 + $0x20] sm:$0xff]
      %v467 = vld [vmem:[%s440 + $0x28] sm:$0xff]
      %v468 = vld [vmem:[%s440 + $0x30] sm:$0xff]
      %v469 = vld [vmem:[%s440 + $0x38] sm:$0xff]
      %v470 = vld [vmem:[%s440 + $0x40] sm:$0xff]
      %v471 = vld [vmem:[%s440 + $0x48] sm:$0xff]
      %v472 = vld [vmem:[%s440 + $0x50] sm:$0xff]
      %v473 = vld [vmem:[%s440 + $0x58] sm:$0xff]
      %v474 = vld [vmem:[%s440 + $0x60] sm:$0xff]
      %v475 = vld [vmem:[%s440 + $0x68] sm:$0xff]
      %v476 = vld [vmem:[%s440 + $0x70] sm:$0xff]
      %v477 = vld [vmem:[%s440 + $0x78] sm:$0xff]
      %v478 = vld [vmem:[%s440 + $0x80] sm:$0xff]
      %v479 = vld [vmem:[%s440 + $0x88] sm:$0xff]
      %v480 = vld [vmem:[%s440 + $0x90] sm:$0xff]
      %v481 = vld [vmem:[%s440 + $0x98] sm:$0xff]
      %v482 = vld [vmem:[%s440 + $0xa0] sm:$0xff]
      %v483 = vld [vmem:[%s440 + $0xa8] sm:$0xff]
      %v484 = vld [vmem:[%s440 + $0xb0] sm:$0xff]
      %v485 = vld [vmem:[%s440 + $0xb8] sm:$0xff]
      %v486 = vld [vmem:[%s440 + $0xc0] sm:$0xff]
      %v487 = vld [vmem:[%s440 + $0xc8] sm:$0xff]
      %v488 = vld [vmem:[%s440 + $0xd0] sm:$0xff]
      %v489 = vld [vmem:[%s440 + $0xd8] sm:$0xff]
      %v490 = vld [vmem:[%s440 + $0xe0] sm:$0xff]
      %v491 = vld [vmem:[%s440 + $0xe8] sm:$0xff]
      %v492 = vld [vmem:[%s440 + $0xf0] sm:$0xff]
      %v493 = vld [vmem:[%s440 + $0xf8] sm:$0xff]
      %v494 = vld [vmem:[%s440 + $0x100] sm:$0xff]
      %v495 = vld [vmem:[%s440 + $0x108] sm:$0xff]
      %v496 = vld [vmem:[%s440 + $0x110] sm:$0xff]
      %v497 = vld [vmem:[%s440 + $0x118] sm:$0xff]
      %v498 = vld [vmem:[%s440 + $0x120] sm:$0xff]
      %v499 = vld [vmem:[%s440 + $0x128] sm:$0xff]
      %v500 = vld [vmem:[%s440 + $0x130] sm:$0xff]
      %v501 = vld [vmem:[%s440 + $0x138] sm:$0xff]
      %v502 = vld [vmem:[%s440 + $0x140] sm:$0xff]
      %v503 = vld [vmem:[%s440 + $0x148] sm:$0xff]
      %v504 = vld [vmem:[%s440 + $0x150] sm:$0xff]
      %v505 = vld [vmem:[%s440 + $0x158] sm:$0xff]
      %v506 = vld [vmem:[%s440 + $0x160] sm:$0xff]
      %v507 = vld [vmem:[%s440 + $0x168] sm:$0xff]
      %v508 = vld [vmem:[%s440 + $0x170] sm:$0xff]
      %v509 = vld [vmem:[%s440 + $0x178] sm:$0xff]
      %v510 = vld [vmem:[%s440 + $0x180] sm:$0xff]
      %v511 = vld [vmem:[%s440 + $0x188] sm:$0xff]
      %v512 = vld [vmem:[%s440 + $0x190] sm:$0xff]
      %v513 = vld [vmem:[%s440 + $0x198] sm:$0xff]
      %v514 = vld [vmem:[%s440 + $0x1a0] sm:$0xff]
      %v515 = vld [vmem:[%s440 + $0x1a8] sm:$0xff]
      %v516 = vld [vmem:[%s440 + $0x1b0] sm:$0xff]
      %v517 = vld [vmem:[%s440 + $0x1b8] sm:$0xff]
      %v518 = vld [vmem:[%s440 + $0x1c0] sm:$0xff]
      %v519 = vld [vmem:[%s440 + $0x1c8] sm:$0xff]
      %v520 = vld [vmem:[%s440 + $0x1d0] sm:$0xff]
      %v521 = vld [vmem:[%s440 + $0x1d8] sm:$0xff]
      %v522 = vld [vmem:[%s440 + $0x1e0] sm:$0xff]
      %v523 = vld [vmem:[%s440 + $0x1e8] sm:$0xff]
      %v524 = vld [vmem:[%s440 + $0x1f0] sm:$0xff]
      %v525 = vld [vmem:[%s440 + $0x1f8] sm:$0xff]
      %v526 = vld [vmem:[%s450] sm:$0xff]
      %v527 = vld [vmem:[%s450 + $0x8] sm:$0xff]
      %v528 = vld [vmem:[%s450 + $0x10] sm:$0xff]
      %v529 = vld [vmem:[%s450 + $0x18] sm:$0xff]
      %v530 = vld [vmem:[%s450 + $0x20] sm:$0xff]
      %v531 = vld [vmem:[%s450 + $0x28] sm:$0xff]
      %v532 = vld [vmem:[%s450 + $0x30] sm:$0xff]
      %v533 = vld [vmem:[%s450 + $0x38] sm:$0xff]
      %v534 = vld [vmem:[%s450 + $0x40] sm:$0xff]
      %v535 = vld [vmem:[%s450 + $0x48] sm:$0xff]
      %v536 = vld [vmem:[%s450 + $0x50] sm:$0xff]
      %v537 = vld [vmem:[%s450 + $0x58] sm:$0xff]
      %v538 = vld [vmem:[%s450 + $0x60] sm:$0xff]
      %v539 = vld [vmem:[%s450 + $0x68] sm:$0xff]
      %v540 = vld [vmem:[%s450 + $0x70] sm:$0xff]
      %v541 = vld [vmem:[%s450 + $0x78] sm:$0xff]
      %v542 = vld [vmem:[%s450 + $0x80] sm:$0xff]
      %v543 = vld [vmem:[%s450 + $0x88] sm:$0xff]
      %v544 = vld [vmem:[%s450 + $0x90] sm:$0xff]
      %v545 = vld [vmem:[%s450 + $0x98] sm:$0xff]
      %v546 = vld [vmem:[%s450 + $0xa0] sm:$0xff]
      %v547 = vld [vmem:[%s450 + $0xa8] sm:$0xff]
      %v548 = vld [vmem:[%s450 + $0xb0] sm:$0xff]
      %v549 = vld [vmem:[%s450 + $0xb8] sm:$0xff]
      %v550 = vld [vmem:[%s450 + $0xc0] sm:$0xff]
      %v551 = vld [vmem:[%s450 + $0xc8] sm:$0xff]
      %v552 = vld [vmem:[%s450 + $0xd0] sm:$0xff]
      %v553 = vld [vmem:[%s450 + $0xd8] sm:$0xff]
      %v554 = vld [vmem:[%s450 + $0xe0] sm:$0xff]
      %v555 = vld [vmem:[%s450 + $0xe8] sm:$0xff]
      %v556 = vld [vmem:[%s450 + $0xf0] sm:$0xff]
      %v557 = vld [vmem:[%s450 + $0xf8] sm:$0xff]
      %v558 = vld [vmem:[%s450 + $0x100] sm:$0xff]
      %v559 = vld [vmem:[%s450 + $0x108] sm:$0xff]
      %v560 = vld [vmem:[%s450 + $0x110] sm:$0xff]
      %v561 = vld [vmem:[%s450 + $0x118] sm:$0xff]
      %v562 = vld [vmem:[%s450 + $0x120] sm:$0xff]
      %v563 = vld [vmem:[%s450 + $0x128] sm:$0xff]
      %v564 = vld [vmem:[%s450 + $0x130] sm:$0xff]
      %v565 = vld [vmem:[%s450 + $0x138] sm:$0xff]
      %v566 = vld [vmem:[%s450 + $0x140] sm:$0xff]
      %v567 = vld [vmem:[%s450 + $0x148] sm:$0xff]
      %v568 = vld [vmem:[%s450 + $0x150] sm:$0xff]
      %v569 = vld [vmem:[%s450 + $0x158] sm:$0xff]
      %v570 = vld [vmem:[%s450 + $0x160] sm:$0xff]
      %v571 = vld [vmem:[%s450 + $0x168] sm:$0xff]
      %v572 = vld [vmem:[%s450 + $0x170] sm:$0xff]
      %v573 = vld [vmem:[%s450 + $0x178] sm:$0xff]
      %v574 = vld [vmem:[%s450 + $0x180] sm:$0xff]
      %v575 = vld [vmem:[%s450 + $0x188] sm:$0xff]
      %v576 = vld [vmem:[%s450 + $0x190] sm:$0xff]
      %v577 = vld [vmem:[%s450 + $0x198] sm:$0xff]
      %v578 = vld [vmem:[%s450 + $0x1a0] sm:$0xff]
      %v579 = vld [vmem:[%s450 + $0x1a8] sm:$0xff]
      %v580 = vld [vmem:[%s450 + $0x1b0] sm:$0xff]
      %v581 = vld [vmem:[%s450 + $0x1b8] sm:$0xff]
      %v582 = vld [vmem:[%s450 + $0x1c0] sm:$0xff]
      %v583 = vld [vmem:[%s450 + $0x1c8] sm:$0xff]
      %v584 = vld [vmem:[%s450 + $0x1d0] sm:$0xff]
      %v585 = vld [vmem:[%s450 + $0x1d8] sm:$0xff]
      %v586 = vld [vmem:[%s450 + $0x1e0] sm:$0xff]
      %v587 = vld [vmem:[%s450 + $0x1e8] sm:$0xff]
      %v588 = vld [vmem:[%s450 + $0x1f0] sm:$0xff]
      %v589 = vld [vmem:[%s450 + $0x1f8] sm:$0xff]
      %v590 = vld [vmem:[%s2] sm:$0xff]
      %v591 = vld [vmem:[%s2 + $0x8] sm:$0xff]
      %v592 = vld [vmem:[%s3] sm:$0xff]
      %v593 = vld [vmem:[%s3 + $0x8] sm:$0xff]
      %595 = vset.pattern.permute.xlu0 0
      %596 = vperm.xlu0 %595, %v592
      %v597 = vpop.permute.xlu0 %596
      %600 = vset.pattern.permute.xlu0 0
      %601 = vperm.xlu0 %600, %v593
      %v602 = vpop.permute.xlu0 %601
      %vm604 = vcmask 130048
      %v606 = vsel %vm604, %v590, 0
      %v609 = vsel %vm604, %v591, 0
      %611 = vmatpush.msra.mxu0 0.0
      %612 = vmatpush.msra.mxu0 0.0
      %613 = vmatpush.msra.mxu0 0.0
      %614 = vmatpush.msra.mxu0 0.0
      %615 = vmatpush.msra.mxu0 0.0
      %616 = vmatpush.msra.mxu0 0.0
      %617 = vmatpush.msra.mxu0 0.0
      %618 = vmatpush.msra.mxu0 0.0
      %619 = vmatpush.msra.mxu0 0.0
      %620 = vmatpush.msra.mxu0 0.0
      %621 = vmatpush.msra.mxu0 0.0
      %622 = vmatpush.msra.mxu0 0.0
      %623 = vmatpush.msra.mxu0 0.0
      %624 = vmatpush.msra.mxu0 0.0
      %625 = vmatpush.msra.mxu0 %v494
      %626 = vmatpush.msra.mxu0 %v462
      %627 = vmatmul.f32.gmra.mxu0 %v606
      %v628 = vpop.f32.mrf.mxu0
      %v629 = vadd.f32 %v597, %v628
      %630 = vmatmul.f32.gmra.mxu0 %v609
      %v631 = vpop.f32.mrf.mxu0
      %v632 = vadd.f32 %v602, %v631
      %633 = vdwg.mxu0
      %634 = vmatpush.msra.mxu0 0.0
      %635 = vmatpush.msra.mxu0 0.0
      %636 = vmatpush.msra.mxu0 0.0
      %637 = vmatpush.msra.mxu0 0.0
      %638 = vmatpush.msra.mxu0 0.0
      %639 = vmatpush.msra.mxu0 0.0
      %640 = vmatpush.msra.mxu0 0.0
      %641 = vmatpush.msra.mxu0 0.0
      %642 = vmatpush.msra.mxu0 0.0
      %643 = vmatpush.msra.mxu0 0.0
      %644 = vmatpush.msra.mxu0 0.0
      %645 = vmatpush.msra.mxu0 0.0
      %646 = vmatpush.msra.mxu0 0.0
      %647 = vmatpush.msra.mxu0 0.0
      %648 = vmatpush.msra.mxu0 %v495
      %649 = vmatpush.msra.mxu0 %v463
      %650 = vmatmul.f32.gmra.mxu0 %v606
      %v651 = vpop.f32.mrf.mxu0
      %v652 = vadd.f32 %v597, %v651
      %653 = vmatmul.f32.gmra.mxu0 %v609
      %v654 = vpop.f32.mrf.mxu0
      %v655 = vadd.f32 %v602, %v654
      %656 = vdwg.mxu0
      %657 = vmatpush.msra.mxu0 0.0
      %658 = vmatpush.msra.mxu0 0.0
      %659 = vmatpush.msra.mxu0 0.0
      %660 = vmatpush.msra.mxu0 0.0
      %661 = vmatpush.msra.mxu0 0.0
      %662 = vmatpush.msra.mxu0 0.0
      %663 = vmatpush.msra.mxu0 0.0
      %664 = vmatpush.msra.mxu0 0.0
      %665 = vmatpush.msra.mxu0 0.0
      %666 = vmatpush.msra.mxu0 0.0
      %667 = vmatpush.msra.mxu0 0.0
      %668 = vmatpush.msra.mxu0 0.0
      %669 = vmatpush.msra.mxu0 0.0
      %670 = vmatpush.msra.mxu0 0.0
      %671 = vmatpush.msra.mxu0 %v496
      %672 = vmatpush.msra.mxu0 %v464
      %673 = vmatmul.f32.gmra.mxu0 %v606
      %v674 = vpop.f32.mrf.mxu0
      %v675 = vadd.f32 %v597, %v674
      %676 = vmatmul.f32.gmra.mxu0 %v609
      %v677 = vpop.f32.mrf.mxu0
      %v678 = vadd.f32 %v602, %v677
      %679 = vdwg.mxu0
      %680 = vmatpush.msra.mxu0 0.0
      %681 = vmatpush.msra.mxu0 0.0
      %682 = vmatpush.msra.mxu0 0.0
      %683 = vmatpush.msra.mxu0 0.0
      %684 = vmatpush.msra.mxu0 0.0
      %685 = vmatpush.msra.mxu0 0.0
      %686 = vmatpush.msra.mxu0 0.0
      %687 = vmatpush.msra.mxu0 0.0
      %688 = vmatpush.msra.mxu0 0.0
      %689 = vmatpush.msra.mxu0 0.0
      %690 = vmatpush.msra.mxu0 0.0
      %691 = vmatpush.msra.mxu0 0.0
      %692 = vmatpush.msra.mxu0 0.0
      %693 = vmatpush.msra.mxu0 0.0
      %694 = vmatpush.msra.mxu0 %v497
      %695 = vmatpush.msra.mxu0 %v465
      %696 = vmatmul.f32.gmra.mxu0 %v606
      %v697 = vpop.f32.mrf.mxu0
      %v698 = vadd.f32 %v597, %v697
      %699 = vmatmul.f32.gmra.mxu0 %v609
      %v700 = vpop.f32.mrf.mxu0
      %v701 = vadd.f32 %v602, %v700
      %702 = vdwg.mxu0
      %703 = vmatpush.msra.mxu0 0.0
      %704 = vmatpush.msra.mxu0 0.0
      %705 = vmatpush.msra.mxu0 0.0
      %706 = vmatpush.msra.mxu0 0.0
      %707 = vmatpush.msra.mxu0 0.0
      %708 = vmatpush.msra.mxu0 0.0
      %709 = vmatpush.msra.mxu0 0.0
      %710 = vmatpush.msra.mxu0 0.0
      %711 = vmatpush.msra.mxu0 0.0
      %712 = vmatpush.msra.mxu0 0.0
      %713 = vmatpush.msra.mxu0 0.0
      %714 = vmatpush.msra.mxu0 0.0
      %715 = vmatpush.msra.mxu0 0.0
      %716 = vmatpush.msra.mxu0 0.0
      %717 = vmatpush.msra.mxu0 %v498
      %718 = vmatpush.msra.mxu0 %v466
      %719 = vmatmul.f32.gmra.mxu0 %v606
      %v720 = vpop.f32.mrf.mxu0
      %v721 = vadd.f32 %v597, %v720
      %722 = vmatmul.f32.gmra.mxu0 %v609
      %v723 = vpop.f32.mrf.mxu0
      %v724 = vadd.f32 %v602, %v723
      %725 = vdwg.mxu0
      %726 = vmatpush.msra.mxu0 0.0
      %727 = vmatpush.msra.mxu0 0.0
      %728 = vmatpush.msra.mxu0 0.0
      %729 = vmatpush.msra.mxu0 0.0
      %730 = vmatpush.msra.mxu0 0.0
      %731 = vmatpush.msra.mxu0 0.0
      %732 = vmatpush.msra.mxu0 0.0
      %733 = vmatpush.msra.mxu0 0.0
      %734 = vmatpush.msra.mxu0 0.0
      %735 = vmatpush.msra.mxu0 0.0
      %736 = vmatpush.msra.mxu0 0.0
      %737 = vmatpush.msra.mxu0 0.0
      %738 = vmatpush.msra.mxu0 0.0
      %739 = vmatpush.msra.mxu0 0.0
      %740 = vmatpush.msra.mxu0 %v499
      %741 = vmatpush.msra.mxu0 %v467
      %742 = vmatmul.f32.gmra.mxu0 %v606
      %v743 = vpop.f32.mrf.mxu0
      %v744 = vadd.f32 %v597, %v743
      %745 = vmatmul.f32.gmra.mxu0 %v609
      %v746 = vpop.f32.mrf.mxu0
      %v747 = vadd.f32 %v602, %v746
      %748 = vdwg.mxu0
      %749 = vmatpush.msra.mxu0 0.0
      %750 = vmatpush.msra.mxu0 0.0
      %751 = vmatpush.msra.mxu0 0.0
      %752 = vmatpush.msra.mxu0 0.0
      %753 = vmatpush.msra.mxu0 0.0
      %754 = vmatpush.msra.mxu0 0.0
      %755 = vmatpush.msra.mxu0 0.0
      %756 = vmatpush.msra.mxu0 0.0
      %757 = vmatpush.msra.mxu0 0.0
      %758 = vmatpush.msra.mxu0 0.0
      %759 = vmatpush.msra.mxu0 0.0
      %760 = vmatpush.msra.mxu0 0.0
      %761 = vmatpush.msra.mxu0 0.0
      %762 = vmatpush.msra.mxu0 0.0
      %763 = vmatpush.msra.mxu0 %v500
      %764 = vmatpush.msra.mxu0 %v468
      %765 = vmatmul.f32.gmra.mxu0 %v606
      %v766 = vpop.f32.mrf.mxu0
      %v767 = vadd.f32 %v597, %v766
      %768 = vmatmul.f32.gmra.mxu0 %v609
      %v769 = vpop.f32.mrf.mxu0
      %v770 = vadd.f32 %v602, %v769
      %771 = vdwg.mxu0
      %772 = vmatpush.msra.mxu0 0.0
      %773 = vmatpush.msra.mxu0 0.0
      %774 = vmatpush.msra.mxu0 0.0
      %775 = vmatpush.msra.mxu0 0.0
      %776 = vmatpush.msra.mxu0 0.0
      %777 = vmatpush.msra.mxu0 0.0
      %778 = vmatpush.msra.mxu0 0.0
      %779 = vmatpush.msra.mxu0 0.0
      %780 = vmatpush.msra.mxu0 0.0
      %781 = vmatpush.msra.mxu0 0.0
      %782 = vmatpush.msra.mxu0 0.0
      %783 = vmatpush.msra.mxu0 0.0
      %784 = vmatpush.msra.mxu0 0.0
      %785 = vmatpush.msra.mxu0 0.0
      %786 = vmatpush.msra.mxu0 %v501
      %787 = vmatpush.msra.mxu0 %v469
      %788 = vmatmul.f32.gmra.mxu0 %v606
      %v789 = vpop.f32.mrf.mxu0
      %v790 = vadd.f32 %v597, %v789
      %791 = vmatmul.f32.gmra.mxu0 %v609
      %v792 = vpop.f32.mrf.mxu0
      %v793 = vadd.f32 %v602, %v792
      %794 = vdwg.mxu0
      %795 = vmatpush.msra.mxu0 0.0
      %796 = vmatpush.msra.mxu0 0.0
      %797 = vmatpush.msra.mxu0 0.0
      %798 = vmatpush.msra.mxu0 0.0
      %799 = vmatpush.msra.mxu0 0.0
      %800 = vmatpush.msra.mxu0 0.0
      %801 = vmatpush.msra.mxu0 0.0
      %802 = vmatpush.msra.mxu0 0.0
      %803 = vmatpush.msra.mxu0 0.0
      %804 = vmatpush.msra.mxu0 0.0
      %805 = vmatpush.msra.mxu0 0.0
      %806 = vmatpush.msra.mxu0 0.0
      %807 = vmatpush.msra.mxu0 0.0
      %808 = vmatpush.msra.mxu0 0.0
      %809 = vmatpush.msra.mxu0 %v502
      %810 = vmatpush.msra.mxu0 %v470
      %811 = vmatmul.f32.gmra.mxu0 %v606
      %v812 = vpop.f32.mrf.mxu0
      %v813 = vadd.f32 %v597, %v812
      %814 = vmatmul.f32.gmra.mxu0 %v609
      %v815 = vpop.f32.mrf.mxu0
      %v816 = vadd.f32 %v602, %v815
      %817 = vdwg.mxu0
      %818 = vmatpush.msra.mxu0 0.0
      %819 = vmatpush.msra.mxu0 0.0
      %820 = vmatpush.msra.mxu0 0.0
      %821 = vmatpush.msra.mxu0 0.0
      %822 = vmatpush.msra.mxu0 0.0
      %823 = vmatpush.msra.mxu0 0.0
      %824 = vmatpush.msra.mxu0 0.0
      %825 = vmatpush.msra.mxu0 0.0
      %826 = vmatpush.msra.mxu0 0.0
      %827 = vmatpush.msra.mxu0 0.0
      %828 = vmatpush.msra.mxu0 0.0
      %829 = vmatpush.msra.mxu0 0.0
      %830 = vmatpush.msra.mxu0 0.0
      %831 = vmatpush.msra.mxu0 0.0
      %832 = vmatpush.msra.mxu0 %v503
      %833 = vmatpush.msra.mxu0 %v471
      %834 = vmatmul.f32.gmra.mxu0 %v606
      %v835 = vpop.f32.mrf.mxu0
      %v836 = vadd.f32 %v597, %v835
      %837 = vmatmul.f32.gmra.mxu0 %v609
      %v838 = vpop.f32.mrf.mxu0
      %v839 = vadd.f32 %v602, %v838
      %840 = vdwg.mxu0
      %841 = vmatpush.msra.mxu0 0.0
      %842 = vmatpush.msra.mxu0 0.0
      %843 = vmatpush.msra.mxu0 0.0
      %844 = vmatpush.msra.mxu0 0.0
      %845 = vmatpush.msra.mxu0 0.0
      %846 = vmatpush.msra.mxu0 0.0
      %847 = vmatpush.msra.mxu0 0.0
      %848 = vmatpush.msra.mxu0 0.0
      %849 = vmatpush.msra.mxu0 0.0
      %850 = vmatpush.msra.mxu0 0.0
      %851 = vmatpush.msra.mxu0 0.0
      %852 = vmatpush.msra.mxu0 0.0
      %853 = vmatpush.msra.mxu0 0.0
      %854 = vmatpush.msra.mxu0 0.0
      %855 = vmatpush.msra.mxu0 %v504
      %856 = vmatpush.msra.mxu0 %v472
      %857 = vmatmul.f32.gmra.mxu0 %v606
      %v858 = vpop.f32.mrf.mxu0
      %v859 = vadd.f32 %v597, %v858
      %860 = vmatmul.f32.gmra.mxu0 %v609
      %v861 = vpop.f32.mrf.mxu0
      %v862 = vadd.f32 %v602, %v861
      %863 = vdwg.mxu0
      %864 = vmatpush.msra.mxu0 0.0
      %865 = vmatpush.msra.mxu0 0.0
      %866 = vmatpush.msra.mxu0 0.0
      %867 = vmatpush.msra.mxu0 0.0
      %868 = vmatpush.msra.mxu0 0.0
      %869 = vmatpush.msra.mxu0 0.0
      %870 = vmatpush.msra.mxu0 0.0
      %871 = vmatpush.msra.mxu0 0.0
      %872 = vmatpush.msra.mxu0 0.0
      %873 = vmatpush.msra.mxu0 0.0
      %874 = vmatpush.msra.mxu0 0.0
      %875 = vmatpush.msra.mxu0 0.0
      %876 = vmatpush.msra.mxu0 0.0
      %877 = vmatpush.msra.mxu0 0.0
      %878 = vmatpush.msra.mxu0 %v505
      %879 = vmatpush.msra.mxu0 %v473
      %880 = vmatmul.f32.gmra.mxu0 %v606
      %v881 = vpop.f32.mrf.mxu0
      %v882 = vadd.f32 %v597, %v881
      %883 = vmatmul.f32.gmra.mxu0 %v609
      %v884 = vpop.f32.mrf.mxu0
      %v885 = vadd.f32 %v602, %v884
      %886 = vdwg.mxu0
      %887 = vmatpush.msra.mxu0 0.0
      %888 = vmatpush.msra.mxu0 0.0
      %889 = vmatpush.msra.mxu0 0.0
      %890 = vmatpush.msra.mxu0 0.0
      %891 = vmatpush.msra.mxu0 0.0
      %892 = vmatpush.msra.mxu0 0.0
      %893 = vmatpush.msra.mxu0 0.0
      %894 = vmatpush.msra.mxu0 0.0
      %895 = vmatpush.msra.mxu0 0.0
      %896 = vmatpush.msra.mxu0 0.0
      %897 = vmatpush.msra.mxu0 0.0
      %898 = vmatpush.msra.mxu0 0.0
      %899 = vmatpush.msra.mxu0 0.0
      %900 = vmatpush.msra.mxu0 0.0
      %901 = vmatpush.msra.mxu0 %v506
      %902 = vmatpush.msra.mxu0 %v474
      %903 = vmatmul.f32.gmra.mxu0 %v606
      %v904 = vpop.f32.mrf.mxu0
      %v905 = vadd.f32 %v597, %v904
      %906 = vmatmul.f32.gmra.mxu0 %v609
      %v907 = vpop.f32.mrf.mxu0
      %v908 = vadd.f32 %v602, %v907
      %909 = vdwg.mxu0
      %910 = vmatpush.msra.mxu0 0.0
      %911 = vmatpush.msra.mxu0 0.0
      %912 = vmatpush.msra.mxu0 0.0
      %913 = vmatpush.msra.mxu0 0.0
      %914 = vmatpush.msra.mxu0 0.0
      %915 = vmatpush.msra.mxu0 0.0
      %916 = vmatpush.msra.mxu0 0.0
      %917 = vmatpush.msra.mxu0 0.0
      %918 = vmatpush.msra.mxu0 0.0
      %919 = vmatpush.msra.mxu0 0.0
      %920 = vmatpush.msra.mxu0 0.0
      %921 = vmatpush.msra.mxu0 0.0
      %922 = vmatpush.msra.mxu0 0.0
      %923 = vmatpush.msra.mxu0 0.0
      %924 = vmatpush.msra.mxu0 %v507
      %925 = vmatpush.msra.mxu0 %v475
      %926 = vmatmul.f32.gmra.mxu0 %v606
      %v927 = vpop.f32.mrf.mxu0
      %v928 = vadd.f32 %v597, %v927
      %929 = vmatmul.f32.gmra.mxu0 %v609
      %v930 = vpop.f32.mrf.mxu0
      %v931 = vadd.f32 %v602, %v930
      %932 = vdwg.mxu0
      %933 = vmatpush.msra.mxu0 0.0
      %934 = vmatpush.msra.mxu0 0.0
      %935 = vmatpush.msra.mxu0 0.0
      %936 = vmatpush.msra.mxu0 0.0
      %937 = vmatpush.msra.mxu0 0.0
      %938 = vmatpush.msra.mxu0 0.0
      %939 = vmatpush.msra.mxu0 0.0
      %940 = vmatpush.msra.mxu0 0.0
      %941 = vmatpush.msra.mxu0 0.0
      %942 = vmatpush.msra.mxu0 0.0
      %943 = vmatpush.msra.mxu0 0.0
      %944 = vmatpush.msra.mxu0 0.0
      %945 = vmatpush.msra.mxu0 0.0
      %946 = vmatpush.msra.mxu0 0.0
      %947 = vmatpush.msra.mxu0 %v508
      %948 = vmatpush.msra.mxu0 %v476
      %949 = vmatmul.f32.gmra.mxu0 %v606
      %v950 = vpop.f32.mrf.mxu0
      %v951 = vadd.f32 %v597, %v950
      %952 = vmatmul.f32.gmra.mxu0 %v609
      %v953 = vpop.f32.mrf.mxu0
      %v954 = vadd.f32 %v602, %v953
      %955 = vdwg.mxu0
      %956 = vmatpush.msra.mxu0 0.0
      %957 = vmatpush.msra.mxu0 0.0
      %958 = vmatpush.msra.mxu0 0.0
      %959 = vmatpush.msra.mxu0 0.0
      %960 = vmatpush.msra.mxu0 0.0
      %961 = vmatpush.msra.mxu0 0.0
      %962 = vmatpush.msra.mxu0 0.0
      %963 = vmatpush.msra.mxu0 0.0
      %964 = vmatpush.msra.mxu0 0.0
      %965 = vmatpush.msra.mxu0 0.0
      %966 = vmatpush.msra.mxu0 0.0
      %967 = vmatpush.msra.mxu0 0.0
      %968 = vmatpush.msra.mxu0 0.0
      %969 = vmatpush.msra.mxu0 0.0
      %970 = vmatpush.msra.mxu0 %v509
      %971 = vmatpush.msra.mxu0 %v477
      %972 = vmatmul.f32.gmra.mxu0 %v606
      %v973 = vpop.f32.mrf.mxu0
      %v974 = vadd.f32 %v597, %v973
      %975 = vmatmul.f32.gmra.mxu0 %v609
      %v976 = vpop.f32.mrf.mxu0
      %v977 = vadd.f32 %v602, %v976
      %978 = vdwg.mxu0
      %979 = vmatpush.msra.mxu0 0.0
      %980 = vmatpush.msra.mxu0 0.0
      %981 = vmatpush.msra.mxu0 0.0
      %982 = vmatpush.msra.mxu0 0.0
      %983 = vmatpush.msra.mxu0 0.0
      %984 = vmatpush.msra.mxu0 0.0
      %985 = vmatpush.msra.mxu0 0.0
      %986 = vmatpush.msra.mxu0 0.0
      %987 = vmatpush.msra.mxu0 0.0
      %988 = vmatpush.msra.mxu0 0.0
      %989 = vmatpush.msra.mxu0 0.0
      %990 = vmatpush.msra.mxu0 0.0
      %991 = vmatpush.msra.mxu0 0.0
      %992 = vmatpush.msra.mxu0 0.0
      %993 = vmatpush.msra.mxu0 %v510
      %994 = vmatpush.msra.mxu0 %v478
      %995 = vmatmul.f32.gmra.mxu0 %v606
      %v996 = vpop.f32.mrf.mxu0
      %v997 = vadd.f32 %v597, %v996
      %998 = vmatmul.f32.gmra.mxu0 %v609
      %v999 = vpop.f32.mrf.mxu0
      %v1000 = vadd.f32 %v602, %v999
      %1001 = vdwg.mxu0
      %1002 = vmatpush.msra.mxu0 0.0
      %1003 = vmatpush.msra.mxu0 0.0
      %1004 = vmatpush.msra.mxu0 0.0
      %1005 = vmatpush.msra.mxu0 0.0
      %1006 = vmatpush.msra.mxu0 0.0
      %1007 = vmatpush.msra.mxu0 0.0
      %1008 = vmatpush.msra.mxu0 0.0
      %1009 = vmatpush.msra.mxu0 0.0
      %1010 = vmatpush.msra.mxu0 0.0
      %1011 = vmatpush.msra.mxu0 0.0
      %1012 = vmatpush.msra.mxu0 0.0
      %1013 = vmatpush.msra.mxu0 0.0
      %1014 = vmatpush.msra.mxu0 0.0
      %1015 = vmatpush.msra.mxu0 0.0
      %1016 = vmatpush.msra.mxu0 %v511
      %1017 = vmatpush.msra.mxu0 %v479
      %1018 = vmatmul.f32.gmra.mxu0 %v606
      %v1019 = vpop.f32.mrf.mxu0
      %v1020 = vadd.f32 %v597, %v1019
      %1021 = vmatmul.f32.gmra.mxu0 %v609
      %v1022 = vpop.f32.mrf.mxu0
      %v1023 = vadd.f32 %v602, %v1022
      %1024 = vdwg.mxu0
      %1025 = vmatpush.msra.mxu0 0.0
      %1026 = vmatpush.msra.mxu0 0.0
      %1027 = vmatpush.msra.mxu0 0.0
      %1028 = vmatpush.msra.mxu0 0.0
      %1029 = vmatpush.msra.mxu0 0.0
      %1030 = vmatpush.msra.mxu0 0.0
      %1031 = vmatpush.msra.mxu0 0.0
      %1032 = vmatpush.msra.mxu0 0.0
      %1033 = vmatpush.msra.mxu0 0.0
      %1034 = vmatpush.msra.mxu0 0.0
      %1035 = vmatpush.msra.mxu0 0.0
      %1036 = vmatpush.msra.mxu0 0.0
      %1037 = vmatpush.msra.mxu0 0.0
      %1038 = vmatpush.msra.mxu0 0.0
      %1039 = vmatpush.msra.mxu0 %v512
      %1040 = vmatpush.msra.mxu0 %v480
      %1041 = vmatmul.f32.gmra.mxu0 %v606
      %v1042 = vpop.f32.mrf.mxu0
      %v1043 = vadd.f32 %v597, %v1042
      %1044 = vmatmul.f32.gmra.mxu0 %v609
      %v1045 = vpop.f32.mrf.mxu0
      %v1046 = vadd.f32 %v602, %v1045
      %1047 = vdwg.mxu0
      %1048 = vmatpush.msra.mxu0 0.0
      %1049 = vmatpush.msra.mxu0 0.0
      %1050 = vmatpush.msra.mxu0 0.0
      %1051 = vmatpush.msra.mxu0 0.0
      %1052 = vmatpush.msra.mxu0 0.0
      %1053 = vmatpush.msra.mxu0 0.0
      %1054 = vmatpush.msra.mxu0 0.0
      %1055 = vmatpush.msra.mxu0 0.0
      %1056 = vmatpush.msra.mxu0 0.0
      %1057 = vmatpush.msra.mxu0 0.0
      %1058 = vmatpush.msra.mxu0 0.0
      %1059 = vmatpush.msra.mxu0 0.0
      %1060 = vmatpush.msra.mxu0 0.0
      %1061 = vmatpush.msra.mxu0 0.0
      %1062 = vmatpush.msra.mxu0 %v513
      %1063 = vmatpush.msra.mxu0 %v481
      %1064 = vmatmul.f32.gmra.mxu0 %v606
      %v1065 = vpop.f32.mrf.mxu0
      %v1066 = vadd.f32 %v597, %v1065
      %1067 = vmatmul.f32.gmra.mxu0 %v609
      %v1068 = vpop.f32.mrf.mxu0
      %v1069 = vadd.f32 %v602, %v1068
      %1070 = vdwg.mxu0
      %1071 = vmatpush.msra.mxu0 0.0
      %1072 = vmatpush.msra.mxu0 0.0
      %1073 = vmatpush.msra.mxu0 0.0
      %1074 = vmatpush.msra.mxu0 0.0
      %1075 = vmatpush.msra.mxu0 0.0
      %1076 = vmatpush.msra.mxu0 0.0
      %1077 = vmatpush.msra.mxu0 0.0
      %1078 = vmatpush.msra.mxu0 0.0
      %1079 = vmatpush.msra.mxu0 0.0
      %1080 = vmatpush.msra.mxu0 0.0
      %1081 = vmatpush.msra.mxu0 0.0
      %1082 = vmatpush.msra.mxu0 0.0
      %1083 = vmatpush.msra.mxu0 0.0
      %1084 = vmatpush.msra.mxu0 0.0
      %1085 = vmatpush.msra.mxu0 %v514
      %1086 = vmatpush.msra.mxu0 %v482
      %1087 = vmatmul.f32.gmra.mxu0 %v606
      %v1088 = vpop.f32.mrf.mxu0
      %v1089 = vadd.f32 %v597, %v1088
      %1090 = vmatmul.f32.gmra.mxu0 %v609
      %v1091 = vpop.f32.mrf.mxu0
      %v1092 = vadd.f32 %v602, %v1091
      %1093 = vdwg.mxu0
      %1094 = vmatpush.msra.mxu0 0.0
      %1095 = vmatpush.msra.mxu0 0.0
      %1096 = vmatpush.msra.mxu0 0.0
      %1097 = vmatpush.msra.mxu0 0.0
      %1098 = vmatpush.msra.mxu0 0.0
      %1099 = vmatpush.msra.mxu0 0.0
      %1100 = vmatpush.msra.mxu0 0.0
      %1101 = vmatpush.msra.mxu0 0.0
      %1102 = vmatpush.msra.mxu0 0.0
      %1103 = vmatpush.msra.mxu0 0.0
      %1104 = vmatpush.msra.mxu0 0.0
      %1105 = vmatpush.msra.mxu0 0.0
      %1106 = vmatpush.msra.mxu0 0.0
      %1107 = vmatpush.msra.mxu0 0.0
      %1108 = vmatpush.msra.mxu0 %v515
      %1109 = vmatpush.msra.mxu0 %v483
      %1110 = vmatmul.f32.gmra.mxu0 %v606
      %v1111 = vpop.f32.mrf.mxu0
      %v1112 = vadd.f32 %v597, %v1111
      %1113 = vmatmul.f32.gmra.mxu0 %v609
      %v1114 = vpop.f32.mrf.mxu0
      %v1115 = vadd.f32 %v602, %v1114
      %1116 = vdwg.mxu0
      %1117 = vmatpush.msra.mxu0 0.0
      %1118 = vmatpush.msra.mxu0 0.0
      %1119 = vmatpush.msra.mxu0 0.0
      %1120 = vmatpush.msra.mxu0 0.0
      %1121 = vmatpush.msra.mxu0 0.0
      %1122 = vmatpush.msra.mxu0 0.0
      %1123 = vmatpush.msra.mxu0 0.0
      %1124 = vmatpush.msra.mxu0 0.0
      %1125 = vmatpush.msra.mxu0 0.0
      %1126 = vmatpush.msra.mxu0 0.0
      %1127 = vmatpush.msra.mxu0 0.0
      %1128 = vmatpush.msra.mxu0 0.0
      %1129 = vmatpush.msra.mxu0 0.0
      %1130 = vmatpush.msra.mxu0 0.0
      %1131 = vmatpush.msra.mxu0 %v516
      %1132 = vmatpush.msra.mxu0 %v484
      %1133 = vmatmul.f32.gmra.mxu0 %v606
      %v1134 = vpop.f32.mrf.mxu0
      %v1135 = vadd.f32 %v597, %v1134
      %1136 = vmatmul.f32.gmra.mxu0 %v609
      %v1137 = vpop.f32.mrf.mxu0
      %v1138 = vadd.f32 %v602, %v1137
      %1139 = vdwg.mxu0
      %1140 = vmatpush.msra.mxu0 0.0
      %1141 = vmatpush.msra.mxu0 0.0
      %1142 = vmatpush.msra.mxu0 0.0
      %1143 = vmatpush.msra.mxu0 0.0
      %1144 = vmatpush.msra.mxu0 0.0
      %1145 = vmatpush.msra.mxu0 0.0
      %1146 = vmatpush.msra.mxu0 0.0
      %1147 = vmatpush.msra.mxu0 0.0
      %1148 = vmatpush.msra.mxu0 0.0
      %1149 = vmatpush.msra.mxu0 0.0
      %1150 = vmatpush.msra.mxu0 0.0
      %1151 = vmatpush.msra.mxu0 0.0
      %1152 = vmatpush.msra.mxu0 0.0
      %1153 = vmatpush.msra.mxu0 0.0
      %1154 = vmatpush.msra.mxu0 %v517
      %1155 = vmatpush.msra.mxu0 %v485
      %1156 = vmatmul.f32.gmra.mxu0 %v606
      %v1157 = vpop.f32.mrf.mxu0
      %v1158 = vadd.f32 %v597, %v1157
      %1159 = vmatmul.f32.gmra.mxu0 %v609
      %v1160 = vpop.f32.mrf.mxu0
      %v1161 = vadd.f32 %v602, %v1160
      %1162 = vdwg.mxu0
      %1163 = vmatpush.msra.mxu0 0.0
      %1164 = vmatpush.msra.mxu0 0.0
      %1165 = vmatpush.msra.mxu0 0.0
      %1166 = vmatpush.msra.mxu0 0.0
      %1167 = vmatpush.msra.mxu0 0.0
      %1168 = vmatpush.msra.mxu0 0.0
      %1169 = vmatpush.msra.mxu0 0.0
      %1170 = vmatpush.msra.mxu0 0.0
      %1171 = vmatpush.msra.mxu0 0.0
      %1172 = vmatpush.msra.mxu0 0.0
      %1173 = vmatpush.msra.mxu0 0.0
      %1174 = vmatpush.msra.mxu0 0.0
      %1175 = vmatpush.msra.mxu0 0.0
      %1176 = vmatpush.msra.mxu0 0.0
      %1177 = vmatpush.msra.mxu0 %v518
      %1178 = vmatpush.msra.mxu0 %v486
      %1179 = vmatmul.f32.gmra.mxu0 %v606
      %v1180 = vpop.f32.mrf.mxu0
      %v1181 = vadd.f32 %v597, %v1180
      %1182 = vmatmul.f32.gmra.mxu0 %v609
      %v1183 = vpop.f32.mrf.mxu0
      %v1184 = vadd.f32 %v602, %v1183
      %1185 = vdwg.mxu0
      %1186 = vmatpush.msra.mxu0 0.0
      %1187 = vmatpush.msra.mxu0 0.0
      %1188 = vmatpush.msra.mxu0 0.0
      %1189 = vmatpush.msra.mxu0 0.0
      %1190 = vmatpush.msra.mxu0 0.0
      %1191 = vmatpush.msra.mxu0 0.0
      %1192 = vmatpush.msra.mxu0 0.0
      %1193 = vmatpush.msra.mxu0 0.0
      %1194 = vmatpush.msra.mxu0 0.0
      %1195 = vmatpush.msra.mxu0 0.0
      %1196 = vmatpush.msra.mxu0 0.0
      %1197 = vmatpush.msra.mxu0 0.0
      %1198 = vmatpush.msra.mxu0 0.0
      %1199 = vmatpush.msra.mxu0 0.0
      %1200 = vmatpush.msra.mxu0 %v519
      %1201 = vmatpush.msra.mxu0 %v487
      %1202 = vmatmul.f32.gmra.mxu0 %v606
      %v1203 = vpop.f32.mrf.mxu0
      %v1204 = vadd.f32 %v597, %v1203
      %1205 = vmatmul.f32.gmra.mxu0 %v609
      %v1206 = vpop.f32.mrf.mxu0
      %v1207 = vadd.f32 %v602, %v1206
      %1208 = vdwg.mxu0
      %1209 = vmatpush.msra.mxu0 0.0
      %1210 = vmatpush.msra.mxu0 0.0
      %1211 = vmatpush.msra.mxu0 0.0
      %1212 = vmatpush.msra.mxu0 0.0
      %1213 = vmatpush.msra.mxu0 0.0
      %1214 = vmatpush.msra.mxu0 0.0
      %1215 = vmatpush.msra.mxu0 0.0
      %1216 = vmatpush.msra.mxu0 0.0
      %1217 = vmatpush.msra.mxu0 0.0
      %1218 = vmatpush.msra.mxu0 0.0
      %1219 = vmatpush.msra.mxu0 0.0
      %1220 = vmatpush.msra.mxu0 0.0
      %1221 = vmatpush.msra.mxu0 0.0
      %1222 = vmatpush.msra.mxu0 0.0
      %1223 = vmatpush.msra.mxu0 %v520
      %1224 = vmatpush.msra.mxu0 %v488
      %1225 = vmatmul.f32.gmra.mxu0 %v606
      %v1226 = vpop.f32.mrf.mxu0
      %v1227 = vadd.f32 %v597, %v1226
      %1228 = vmatmul.f32.gmra.mxu0 %v609
      %v1229 = vpop.f32.mrf.mxu0
      %v1230 = vadd.f32 %v602, %v1229
      %1231 = vdwg.mxu0
      %1232 = vmatpush.msra.mxu0 0.0
      %1233 = vmatpush.msra.mxu0 0.0
      %1234 = vmatpush.msra.mxu0 0.0
      %1235 = vmatpush.msra.mxu0 0.0
      %1236 = vmatpush.msra.mxu0 0.0
      %1237 = vmatpush.msra.mxu0 0.0
      %1238 = vmatpush.msra.mxu0 0.0
      %1239 = vmatpush.msra.mxu0 0.0
      %1240 = vmatpush.msra.mxu0 0.0
      %1241 = vmatpush.msra.mxu0 0.0
      %1242 = vmatpush.msra.mxu0 0.0
      %1243 = vmatpush.msra.mxu0 0.0
      %1244 = vmatpush.msra.mxu0 0.0
      %1245 = vmatpush.msra.mxu0 0.0
      %1246 = vmatpush.msra.mxu0 %v521
      %1247 = vmatpush.msra.mxu0 %v489
      %1248 = vmatmul.f32.gmra.mxu0 %v606
      %v1249 = vpop.f32.mrf.mxu0
      %v1250 = vadd.f32 %v597, %v1249
      %1251 = vmatmul.f32.gmra.mxu0 %v609
      %v1252 = vpop.f32.mrf.mxu0
      %v1253 = vadd.f32 %v602, %v1252
      %1254 = vdwg.mxu0
      %1255 = vmatpush.msra.mxu0 0.0
      %1256 = vmatpush.msra.mxu0 0.0
      %1257 = vmatpush.msra.mxu0 0.0
      %1258 = vmatpush.msra.mxu0 0.0
      %1259 = vmatpush.msra.mxu0 0.0
      %1260 = vmatpush.msra.mxu0 0.0
      %1261 = vmatpush.msra.mxu0 0.0
      %1262 = vmatpush.msra.mxu0 0.0
      %1263 = vmatpush.msra.mxu0 0.0
      %1264 = vmatpush.msra.mxu0 0.0
      %1265 = vmatpush.msra.mxu0 0.0
      %1266 = vmatpush.msra.mxu0 0.0
      %1267 = vmatpush.msra.mxu0 0.0
      %1268 = vmatpush.msra.mxu0 0.0
      %1269 = vmatpush.msra.mxu0 %v522
      %1270 = vmatpush.msra.mxu0 %v490
      %1271 = vmatmul.f32.gmra.mxu0 %v606
      %v1272 = vpop.f32.mrf.mxu0
      %v1273 = vadd.f32 %v597, %v1272
      %1274 = vmatmul.f32.gmra.mxu0 %v609
      %v1275 = vpop.f32.mrf.mxu0
      %v1276 = vadd.f32 %v602, %v1275
      %1277 = vdwg.mxu0
      %1278 = vmatpush.msra.mxu0 0.0
      %1279 = vmatpush.msra.mxu0 0.0
      %1280 = vmatpush.msra.mxu0 0.0
      %1281 = vmatpush.msra.mxu0 0.0
      %1282 = vmatpush.msra.mxu0 0.0
      %1283 = vmatpush.msra.mxu0 0.0
      %1284 = vmatpush.msra.mxu0 0.0
      %1285 = vmatpush.msra.mxu0 0.0
      %1286 = vmatpush.msra.mxu0 0.0
      %1287 = vmatpush.msra.mxu0 0.0
      %1288 = vmatpush.msra.mxu0 0.0
      %1289 = vmatpush.msra.mxu0 0.0
      %1290 = vmatpush.msra.mxu0 0.0
      %1291 = vmatpush.msra.mxu0 0.0
      %1292 = vmatpush.msra.mxu0 %v523
      %1293 = vmatpush.msra.mxu0 %v491
      %1294 = vmatmul.f32.gmra.mxu0 %v606
      %v1295 = vpop.f32.mrf.mxu0
      %v1296 = vadd.f32 %v597, %v1295
      %1297 = vmatmul.f32.gmra.mxu0 %v609
      %v1298 = vpop.f32.mrf.mxu0
      %v1299 = vadd.f32 %v602, %v1298
      %1300 = vdwg.mxu0
      %1301 = vmatpush.msra.mxu0 0.0
      %1302 = vmatpush.msra.mxu0 0.0
      %1303 = vmatpush.msra.mxu0 0.0
      %1304 = vmatpush.msra.mxu0 0.0
      %1305 = vmatpush.msra.mxu0 0.0
      %1306 = vmatpush.msra.mxu0 0.0
      %1307 = vmatpush.msra.mxu0 0.0
      %1308 = vmatpush.msra.mxu0 0.0
      %1309 = vmatpush.msra.mxu0 0.0
      %1310 = vmatpush.msra.mxu0 0.0
      %1311 = vmatpush.msra.mxu0 0.0
      %1312 = vmatpush.msra.mxu0 0.0
      %1313 = vmatpush.msra.mxu0 0.0
      %1314 = vmatpush.msra.mxu0 0.0
      %1315 = vmatpush.msra.mxu0 %v524
      %1316 = vmatpush.msra.mxu0 %v492
      %1317 = vmatmul.f32.gmra.mxu0 %v606
      %v1318 = vpop.f32.mrf.mxu0
      %v1319 = vadd.f32 %v597, %v1318
      %1320 = vmatmul.f32.gmra.mxu0 %v609
      %v1321 = vpop.f32.mrf.mxu0
      %v1322 = vadd.f32 %v602, %v1321
      %1323 = vdwg.mxu0
      %1324 = vmatpush.msra.mxu0 0.0
      %1325 = vmatpush.msra.mxu0 0.0
      %1326 = vmatpush.msra.mxu0 0.0
      %1327 = vmatpush.msra.mxu0 0.0
      %1328 = vmatpush.msra.mxu0 0.0
      %1329 = vmatpush.msra.mxu0 0.0
      %1330 = vmatpush.msra.mxu0 0.0
      %1331 = vmatpush.msra.mxu0 0.0
      %1332 = vmatpush.msra.mxu0 0.0
      %1333 = vmatpush.msra.mxu0 0.0
      %1334 = vmatpush.msra.mxu0 0.0
      %1335 = vmatpush.msra.mxu0 0.0
      %1336 = vmatpush.msra.mxu0 0.0
      %1337 = vmatpush.msra.mxu0 0.0
      %1338 = vmatpush.msra.mxu0 %v525
      %1339 = vmatpush.msra.mxu0 %v493
      %1340 = vmatmul.f32.gmra.mxu0 %v606
      %v1341 = vpop.f32.mrf.mxu0
      %v1342 = vadd.f32 %v597, %v1341
      %1343 = vmatmul.f32.gmra.mxu0 %v609
      %v1344 = vpop.f32.mrf.mxu0
      %v1345 = vadd.f32 %v602, %v1344
      %1346 = vdwg.mxu0
      %v1347 = vsub.f32 0.0, %v629
      %v1348 = vsub.f32 0.0, %v652
      %v1349 = vsub.f32 0.0, %v675
      %v1350 = vsub.f32 0.0, %v698
      %v1351 = vsub.f32 0.0, %v721
      %v1352 = vsub.f32 0.0, %v744
      %v1353 = vsub.f32 0.0, %v767
      %v1354 = vsub.f32 0.0, %v790
      %v1355 = vsub.f32 0.0, %v813
      %v1356 = vsub.f32 0.0, %v836
      %v1357 = vsub.f32 0.0, %v859
      %v1358 = vsub.f32 0.0, %v882
      %v1359 = vsub.f32 0.0, %v905
      %v1360 = vsub.f32 0.0, %v928
      %v1361 = vsub.f32 0.0, %v951
      %v1362 = vsub.f32 0.0, %v974
      %v1363 = vsub.f32 0.0, %v997
      %v1364 = vsub.f32 0.0, %v1020
      %v1365 = vsub.f32 0.0, %v1043
      %v1366 = vsub.f32 0.0, %v1066
      %v1367 = vsub.f32 0.0, %v1089
      %v1368 = vsub.f32 0.0, %v1112
      %v1369 = vsub.f32 0.0, %v1135
      %v1370 = vsub.f32 0.0, %v1158
      %v1371 = vsub.f32 0.0, %v1181
      %v1372 = vsub.f32 0.0, %v1204
      %v1373 = vsub.f32 0.0, %v1227
      %v1374 = vsub.f32 0.0, %v1250
      %v1375 = vsub.f32 0.0, %v1273
      %v1376 = vsub.f32 0.0, %v1296
      %v1377 = vsub.f32 0.0, %v1319
      %v1378 = vsub.f32 0.0, %v1342
      %v1379 = vsub.f32 0.0, %v632
      %v1380 = vsub.f32 0.0, %v655
      %v1381 = vsub.f32 0.0, %v678
      %v1382 = vsub.f32 0.0, %v701
      %v1383 = vsub.f32 0.0, %v724
      %v1384 = vsub.f32 0.0, %v747
      %v1385 = vsub.f32 0.0, %v770
      %v1386 = vsub.f32 0.0, %v793
      %v1387 = vsub.f32 0.0, %v816
      %v1388 = vsub.f32 0.0, %v839
      %v1389 = vsub.f32 0.0, %v862
      %v1390 = vsub.f32 0.0, %v885
      %v1391 = vsub.f32 0.0, %v908
      %v1392 = vsub.f32 0.0, %v931
      %v1393 = vsub.f32 0.0, %v954
      %v1394 = vsub.f32 0.0, %v977
      %v1395 = vsub.f32 0.0, %v1000
      %v1396 = vsub.f32 0.0, %v1023
      %v1397 = vsub.f32 0.0, %v1046
      %v1398 = vsub.f32 0.0, %v1069
      %v1399 = vsub.f32 0.0, %v1092
      %v1400 = vsub.f32 0.0, %v1115
      %v1401 = vsub.f32 0.0, %v1138
      %v1402 = vsub.f32 0.0, %v1161
      %v1403 = vsub.f32 0.0, %v1184
      %v1404 = vsub.f32 0.0, %v1207
      %v1405 = vsub.f32 0.0, %v1230
      %v1406 = vsub.f32 0.0, %v1253
      %v1407 = vsub.f32 0.0, %v1276
      %v1408 = vsub.f32 0.0, %v1299
      %v1409 = vsub.f32 0.0, %v1322
      %v1410 = vsub.f32 0.0, %v1345
      %v1411 = vmul.f32 %v1347, 1.442695
      %v1412 = vpow.pop %v1411
      %v1413 = vmul.f32 %v1348, 1.442695
      %v1414 = vpow.pop %v1413
      %v1415 = vmul.f32 %v1349, 1.442695
      %v1416 = vpow.pop %v1415
      %v1417 = vmul.f32 %v1350, 1.442695
      %v1418 = vpow.pop %v1417
      %v1419 = vmul.f32 %v1351, 1.442695
      %v1420 = vpow.pop %v1419
      %v1421 = vmul.f32 %v1352, 1.442695
      %v1422 = vpow.pop %v1421
      %v1423 = vmul.f32 %v1353, 1.442695
      %v1424 = vpow.pop %v1423
      %v1425 = vmul.f32 %v1354, 1.442695
      %v1426 = vpow.pop %v1425
      %v1427 = vmul.f32 %v1355, 1.442695
      %v1428 = vpow.pop %v1427
      %v1429 = vmul.f32 %v1356, 1.442695
      %v1430 = vpow.pop %v1429
      %v1431 = vmul.f32 %v1357, 1.442695
      %v1432 = vpow.pop %v1431
      %v1433 = vmul.f32 %v1358, 1.442695
      %v1434 = vpow.pop %v1433
      %v1435 = vmul.f32 %v1359, 1.442695
      %v1436 = vpow.pop %v1435
      %v1437 = vmul.f32 %v1360, 1.442695
      %v1438 = vpow.pop %v1437
      %v1439 = vmul.f32 %v1361, 1.442695
      %v1440 = vpow.pop %v1439
      %v1441 = vmul.f32 %v1362, 1.442695
      %v1442 = vpow.pop %v1441
      %v1443 = vmul.f32 %v1363, 1.442695
      %v1444 = vpow.pop %v1443
      %v1445 = vmul.f32 %v1364, 1.442695
      %v1446 = vpow.pop %v1445
      %v1447 = vmul.f32 %v1365, 1.442695
      %v1448 = vpow.pop %v1447
      %v1449 = vmul.f32 %v1366, 1.442695
      %v1450 = vpow.pop %v1449
      %v1451 = vmul.f32 %v1367, 1.442695
      %v1452 = vpow.pop %v1451
      %v1453 = vmul.f32 %v1368, 1.442695
      %v1454 = vpow.pop %v1453
      %v1455 = vmul.f32 %v1369, 1.442695
      %v1456 = vpow.pop %v1455
      %v1457 = vmul.f32 %v1370, 1.442695
      %v1458 = vpow.pop %v1457
      %v1459 = vmul.f32 %v1371, 1.442695
      %v1460 = vpow.pop %v1459
      %v1461 = vmul.f32 %v1372, 1.442695
      %v1462 = vpow.pop %v1461
      %v1463 = vmul.f32 %v1373, 1.442695
      %v1464 = vpow.pop %v1463
      %v1465 = vmul.f32 %v1374, 1.442695
      %v1466 = vpow.pop %v1465
      %v1467 = vmul.f32 %v1375, 1.442695
      %v1468 = vpow.pop %v1467
      %v1469 = vmul.f32 %v1376, 1.442695
      %v1470 = vpow.pop %v1469
      %v1471 = vmul.f32 %v1377, 1.442695
      %v1472 = vpow.pop %v1471
      %v1473 = vmul.f32 %v1378, 1.442695
      %v1474 = vpow.pop %v1473
      %v1475 = vmul.f32 %v1379, 1.442695
      %v1476 = vpow.pop %v1475
      %v1477 = vmul.f32 %v1380, 1.442695
      %v1478 = vpow.pop %v1477
      %v1479 = vmul.f32 %v1381, 1.442695
      %v1480 = vpow.pop %v1479
      %v1481 = vmul.f32 %v1382, 1.442695
      %v1482 = vpow.pop %v1481
      %v1483 = vmul.f32 %v1383, 1.442695
      %v1484 = vpow.pop %v1483
      %v1485 = vmul.f32 %v1384, 1.442695
      %v1486 = vpow.pop %v1485
      %v1487 = vmul.f32 %v1385, 1.442695
      %v1488 = vpow.pop %v1487
      %v1489 = vmul.f32 %v1386, 1.442695
      %v1490 = vpow.pop %v1489
      %v1491 = vmul.f32 %v1387, 1.442695
      %v1492 = vpow.pop %v1491
      %v1493 = vmul.f32 %v1388, 1.442695
      %v1494 = vpow.pop %v1493
      %v1495 = vmul.f32 %v1389, 1.442695
      %v1496 = vpow.pop %v1495
      %v1497 = vmul.f32 %v1390, 1.442695
      %v1498 = vpow.pop %v1497
      %v1499 = vmul.f32 %v1391, 1.442695
      %v1500 = vpow.pop %v1499
      %v1501 = vmul.f32 %v1392, 1.442695
      %v1502 = vpow.pop %v1501
      %v1503 = vmul.f32 %v1393, 1.442695
      %v1504 = vpow.pop %v1503
      %v1505 = vmul.f32 %v1394, 1.442695
      %v1506 = vpow.pop %v1505
      %v1507 = vmul.f32 %v1395, 1.442695
      %v1508 = vpow.pop %v1507
      %v1509 = vmul.f32 %v1396, 1.442695
      %v1510 = vpow.pop %v1509
      %v1511 = vmul.f32 %v1397, 1.442695
      %v1512 = vpow.pop %v1511
      %v1513 = vmul.f32 %v1398, 1.442695
      %v1514 = vpow.pop %v1513
      %v1515 = vmul.f32 %v1399, 1.442695
      %v1516 = vpow.pop %v1515
      %v1517 = vmul.f32 %v1400, 1.442695
      %v1518 = vpow.pop %v1517
      %v1519 = vmul.f32 %v1401, 1.442695
      %v1520 = vpow.pop %v1519
      %v1521 = vmul.f32 %v1402, 1.442695
      %v1522 = vpow.pop %v1521
      %v1523 = vmul.f32 %v1403, 1.442695
      %v1524 = vpow.pop %v1523
      %v1525 = vmul.f32 %v1404, 1.442695
      %v1526 = vpow.pop %v1525
      %v1527 = vmul.f32 %v1405, 1.442695
      %v1528 = vpow.pop %v1527
      %v1529 = vmul.f32 %v1406, 1.442695
      %v1530 = vpow.pop %v1529
      %v1531 = vmul.f32 %v1407, 1.442695
      %v1532 = vpow.pop %v1531
      %v1533 = vmul.f32 %v1408, 1.442695
      %v1534 = vpow.pop %v1533
      %v1535 = vmul.f32 %v1409, 1.442695
      %v1536 = vpow.pop %v1535
      %v1537 = vmul.f32 %v1410, 1.442695
      %v1538 = vpow.pop %v1537
      %v1539 = vadd.f32 %v1412, 1.0
      %v1540 = vadd.f32 %v1414, 1.0
      %v1541 = vadd.f32 %v1416, 1.0
      %v1542 = vadd.f32 %v1418, 1.0
      %v1543 = vadd.f32 %v1420, 1.0
      %v1544 = vadd.f32 %v1422, 1.0
      %v1545 = vadd.f32 %v1424, 1.0
      %v1546 = vadd.f32 %v1426, 1.0
      %v1547 = vadd.f32 %v1428, 1.0
      %v1548 = vadd.f32 %v1430, 1.0
      %v1549 = vadd.f32 %v1432, 1.0
      %v1550 = vadd.f32 %v1434, 1.0
      %v1551 = vadd.f32 %v1436, 1.0
      %v1552 = vadd.f32 %v1438, 1.0
      %v1553 = vadd.f32 %v1440, 1.0
      %v1554 = vadd.f32 %v1442, 1.0
      %v1555 = vadd.f32 %v1444, 1.0
      %v1556 = vadd.f32 %v1446, 1.0
      %v1557 = vadd.f32 %v1448, 1.0
      %v1558 = vadd.f32 %v1450, 1.0
      %v1559 = vadd.f32 %v1452, 1.0
      %v1560 = vadd.f32 %v1454, 1.0
      %v1561 = vadd.f32 %v1456, 1.0
      %v1562 = vadd.f32 %v1458, 1.0
      %v1563 = vadd.f32 %v1460, 1.0
      %v1564 = vadd.f32 %v1462, 1.0
      %v1565 = vadd.f32 %v1464, 1.0
      %v1566 = vadd.f32 %v1466, 1.0
      %v1567 = vadd.f32 %v1468, 1.0
      %v1568 = vadd.f32 %v1470, 1.0
      %v1569 = vadd.f32 %v1472, 1.0
      %v1570 = vadd.f32 %v1474, 1.0
      %v1571 = vadd.f32 %v1476, 1.0
      %v1572 = vadd.f32 %v1478, 1.0
      %v1573 = vadd.f32 %v1480, 1.0
      %v1574 = vadd.f32 %v1482, 1.0
      %v1575 = vadd.f32 %v1484, 1.0
      %v1576 = vadd.f32 %v1486, 1.0
      %v1577 = vadd.f32 %v1488, 1.0
      %v1578 = vadd.f32 %v1490, 1.0
      %v1579 = vadd.f32 %v1492, 1.0
      %v1580 = vadd.f32 %v1494, 1.0
      %v1581 = vadd.f32 %v1496, 1.0
      %v1582 = vadd.f32 %v1498, 1.0
      %v1583 = vadd.f32 %v1500, 1.0
      %v1584 = vadd.f32 %v1502, 1.0
      %v1585 = vadd.f32 %v1504, 1.0
      %v1586 = vadd.f32 %v1506, 1.0
      %v1587 = vadd.f32 %v1508, 1.0
      %v1588 = vadd.f32 %v1510, 1.0
      %v1589 = vadd.f32 %v1512, 1.0
      %v1590 = vadd.f32 %v1514, 1.0
      %v1591 = vadd.f32 %v1516, 1.0
      %v1592 = vadd.f32 %v1518, 1.0
      %v1593 = vadd.f32 %v1520, 1.0
      %v1594 = vadd.f32 %v1522, 1.0
      %v1595 = vadd.f32 %v1524, 1.0
      %v1596 = vadd.f32 %v1526, 1.0
      %v1597 = vadd.f32 %v1528, 1.0
      %v1598 = vadd.f32 %v1530, 1.0
      %v1599 = vadd.f32 %v1532, 1.0
      %v1600 = vadd.f32 %v1534, 1.0
      %v1601 = vadd.f32 %v1536, 1.0
      %v1602 = vadd.f32 %v1538, 1.0
      %v1603 = vrcp.pop %v1539
      %v1604 = vrcp.pop %v1540
      %v1605 = vrcp.pop %v1541
      %v1606 = vrcp.pop %v1542
      %v1607 = vrcp.pop %v1543
      %v1608 = vrcp.pop %v1544
      %v1609 = vrcp.pop %v1545
      %v1610 = vrcp.pop %v1546
      %v1611 = vrcp.pop %v1547
      %v1612 = vrcp.pop %v1548
      %v1613 = vrcp.pop %v1549
      %v1614 = vrcp.pop %v1550
      %v1615 = vrcp.pop %v1551
      %v1616 = vrcp.pop %v1552
      %v1617 = vrcp.pop %v1553
      %v1618 = vrcp.pop %v1554
      %v1619 = vrcp.pop %v1555
      %v1620 = vrcp.pop %v1556
      %v1621 = vrcp.pop %v1557
      %v1622 = vrcp.pop %v1558
      %v1623 = vrcp.pop %v1559
      %v1624 = vrcp.pop %v1560
      %v1625 = vrcp.pop %v1561
      %v1626 = vrcp.pop %v1562
      %v1627 = vrcp.pop %v1563
      %v1628 = vrcp.pop %v1564
      %v1629 = vrcp.pop %v1565
      %v1630 = vrcp.pop %v1566
      %v1631 = vrcp.pop %v1567
      %v1632 = vrcp.pop %v1568
      %v1633 = vrcp.pop %v1569
      %v1634 = vrcp.pop %v1570
      %v1635 = vrcp.pop %v1571
      %v1636 = vrcp.pop %v1572
      %v1637 = vrcp.pop %v1573
      %v1638 = vrcp.pop %v1574
      %v1639 = vrcp.pop %v1575
      %v1640 = vrcp.pop %v1576
      %v1641 = vrcp.pop %v1577
      %v1642 = vrcp.pop %v1578
      %v1643 = vrcp.pop %v1579
      %v1644 = vrcp.pop %v1580
      %v1645 = vrcp.pop %v1581
      %v1646 = vrcp.pop %v1582
      %v1647 = vrcp.pop %v1583
      %v1648 = vrcp.pop %v1584
      %v1649 = vrcp.pop %v1585
      %v1650 = vrcp.pop %v1586
      %v1651 = vrcp.pop %v1587
      %v1652 = vrcp.pop %v1588
      %v1653 = vrcp.pop %v1589
      %v1654 = vrcp.pop %v1590
      %v1655 = vrcp.pop %v1591
      %v1656 = vrcp.pop %v1592
      %v1657 = vrcp.pop %v1593
      %v1658 = vrcp.pop %v1594
      %v1659 = vrcp.pop %v1595
      %v1660 = vrcp.pop %v1596
      %v1661 = vrcp.pop %v1597
      %v1662 = vrcp.pop %v1598
      %v1663 = vrcp.pop %v1599
      %v1664 = vrcp.pop %v1600
      %v1665 = vrcp.pop %v1601
      %v1666 = vrcp.pop %v1602
      %v1667 = vmul.f32 %v629, %v1603
      %v1668 = vmul.f32 %v652, %v1604
      %v1669 = vmul.f32 %v675, %v1605
      %v1670 = vmul.f32 %v698, %v1606
      %v1671 = vmul.f32 %v721, %v1607
      %v1672 = vmul.f32 %v744, %v1608
      %v1673 = vmul.f32 %v767, %v1609
      %v1674 = vmul.f32 %v790, %v1610
      %v1675 = vmul.f32 %v813, %v1611
      %v1676 = vmul.f32 %v836, %v1612
      %v1677 = vmul.f32 %v859, %v1613
      %v1678 = vmul.f32 %v882, %v1614
      %v1679 = vmul.f32 %v905, %v1615
      %v1680 = vmul.f32 %v928, %v1616
      %v1681 = vmul.f32 %v951, %v1617
      %v1682 = vmul.f32 %v974, %v1618
      %v1683 = vmul.f32 %v997, %v1619
      %v1684 = vmul.f32 %v1020, %v1620
      %v1685 = vmul.f32 %v1043, %v1621
      %v1686 = vmul.f32 %v1066, %v1622
      %v1687 = vmul.f32 %v1089, %v1623
      %v1688 = vmul.f32 %v1112, %v1624
      %v1689 = vmul.f32 %v1135, %v1625
      %v1690 = vmul.f32 %v1158, %v1626
      %v1691 = vmul.f32 %v1181, %v1627
      %v1692 = vmul.f32 %v1204, %v1628
      %v1693 = vmul.f32 %v1227, %v1629
      %v1694 = vmul.f32 %v1250, %v1630
      %v1695 = vmul.f32 %v1273, %v1631
      %v1696 = vmul.f32 %v1296, %v1632
      %v1697 = vmul.f32 %v1319, %v1633
      %v1698 = vmul.f32 %v1342, %v1634
      %v1699 = vmul.f32 %v632, %v1635
      %v1700 = vmul.f32 %v655, %v1636
      %v1701 = vmul.f32 %v678, %v1637
      %v1702 = vmul.f32 %v701, %v1638
      %v1703 = vmul.f32 %v724, %v1639
      %v1704 = vmul.f32 %v747, %v1640
      %v1705 = vmul.f32 %v770, %v1641
      %v1706 = vmul.f32 %v793, %v1642
      %v1707 = vmul.f32 %v816, %v1643
      %v1708 = vmul.f32 %v839, %v1644
      %v1709 = vmul.f32 %v862, %v1645
      %v1710 = vmul.f32 %v885, %v1646
      %v1711 = vmul.f32 %v908, %v1647
      %v1712 = vmul.f32 %v931, %v1648
      %v1713 = vmul.f32 %v954, %v1649
      %v1714 = vmul.f32 %v977, %v1650
      %v1715 = vmul.f32 %v1000, %v1651
      %v1716 = vmul.f32 %v1023, %v1652
      %v1717 = vmul.f32 %v1046, %v1653
      %v1718 = vmul.f32 %v1069, %v1654
      %v1719 = vmul.f32 %v1092, %v1655
      %v1720 = vmul.f32 %v1115, %v1656
      %v1721 = vmul.f32 %v1138, %v1657
      %v1722 = vmul.f32 %v1161, %v1658
      %v1723 = vmul.f32 %v1184, %v1659
      %v1724 = vmul.f32 %v1207, %v1660
      %v1725 = vmul.f32 %v1230, %v1661
      %v1726 = vmul.f32 %v1253, %v1662
      %v1727 = vmul.f32 %v1276, %v1663
      %v1728 = vmul.f32 %v1299, %v1664
      %v1729 = vmul.f32 %v1322, %v1665
      %v1730 = vmul.f32 %v1345, %v1666
      %v1731 = vld [vmem:[%s4] sm:$0xff]
      %v1732 = vld [vmem:[%s4 + $0x8] sm:$0xff]
      %v1733 = vld [vmem:[%s5] sm:$0xff]
      %v1734 = vld [vmem:[%s5 + $0x8] sm:$0xff]
      %1736 = vset.pattern.permute.xlu0 0
      %1737 = vperm.xlu0 %1736, %v1733
      %v1738 = vpop.permute.xlu0 %1737
      %1741 = vset.pattern.permute.xlu0 0
      %1742 = vperm.xlu0 %1741, %v1734
      %v1743 = vpop.permute.xlu0 %1742
      %v1746 = vsel %vm604, %v1731, 0
      %v1749 = vsel %vm604, %v1732, 0
      %1751 = vmatpush.msra.mxu0 0.0
      %1752 = vmatpush.msra.mxu0 0.0
      %1753 = vmatpush.msra.mxu0 0.0
      %1754 = vmatpush.msra.mxu0 0.0
      %1755 = vmatpush.msra.mxu0 0.0
      %1756 = vmatpush.msra.mxu0 0.0
      %1757 = vmatpush.msra.mxu0 0.0
      %1758 = vmatpush.msra.mxu0 0.0
      %1759 = vmatpush.msra.mxu0 0.0
      %1760 = vmatpush.msra.mxu0 0.0
      %1761 = vmatpush.msra.mxu0 0.0
      %1762 = vmatpush.msra.mxu0 0.0
      %1763 = vmatpush.msra.mxu0 0.0
      %1764 = vmatpush.msra.mxu0 0.0
      %1765 = vmatpush.msra.mxu0 %v558
      %1766 = vmatpush.msra.mxu0 %v526
      %1767 = vmatmul.f32.gmra.mxu0 %v1746
      %v1768 = vpop.f32.mrf.mxu0
      %v1769 = vadd.f32 %v1738, %v1768
      %1770 = vmatmul.f32.gmra.mxu0 %v1749
      %v1771 = vpop.f32.mrf.mxu0
      %v1772 = vadd.f32 %v1743, %v1771
      %1773 = vdwg.mxu0
      %1774 = vmatpush.msra.mxu0 0.0
      %1775 = vmatpush.msra.mxu0 0.0
      %1776 = vmatpush.msra.mxu0 0.0
      %1777 = vmatpush.msra.mxu0 0.0
      %1778 = vmatpush.msra.mxu0 0.0
      %1779 = vmatpush.msra.mxu0 0.0
      %1780 = vmatpush.msra.mxu0 0.0
      %1781 = vmatpush.msra.mxu0 0.0
      %1782 = vmatpush.msra.mxu0 0.0
      %1783 = vmatpush.msra.mxu0 0.0
      %1784 = vmatpush.msra.mxu0 0.0
      %1785 = vmatpush.msra.mxu0 0.0
      %1786 = vmatpush.msra.mxu0 0.0
      %1787 = vmatpush.msra.mxu0 0.0
      %1788 = vmatpush.msra.mxu0 %v559
      %1789 = vmatpush.msra.mxu0 %v527
      %1790 = vmatmul.f32.gmra.mxu0 %v1746
      %v1791 = vpop.f32.mrf.mxu0
      %v1792 = vadd.f32 %v1738, %v1791
      %1793 = vmatmul.f32.gmra.mxu0 %v1749
      %v1794 = vpop.f32.mrf.mxu0
      %v1795 = vadd.f32 %v1743, %v1794
      %1796 = vdwg.mxu0
      %1797 = vmatpush.msra.mxu0 0.0
      %1798 = vmatpush.msra.mxu0 0.0
      %1799 = vmatpush.msra.mxu0 0.0
      %1800 = vmatpush.msra.mxu0 0.0
      %1801 = vmatpush.msra.mxu0 0.0
      %1802 = vmatpush.msra.mxu0 0.0
      %1803 = vmatpush.msra.mxu0 0.0
      %1804 = vmatpush.msra.mxu0 0.0
      %1805 = vmatpush.msra.mxu0 0.0
      %1806 = vmatpush.msra.mxu0 0.0
      %1807 = vmatpush.msra.mxu0 0.0
      %1808 = vmatpush.msra.mxu0 0.0
      %1809 = vmatpush.msra.mxu0 0.0
      %1810 = vmatpush.msra.mxu0 0.0
      %1811 = vmatpush.msra.mxu0 %v560
      %1812 = vmatpush.msra.mxu0 %v528
      %1813 = vmatmul.f32.gmra.mxu0 %v1746
      %v1814 = vpop.f32.mrf.mxu0
      %v1815 = vadd.f32 %v1738, %v1814
      %1816 = vmatmul.f32.gmra.mxu0 %v1749
      %v1817 = vpop.f32.mrf.mxu0
      %v1818 = vadd.f32 %v1743, %v1817
      %1819 = vdwg.mxu0
      %1820 = vmatpush.msra.mxu0 0.0
      %1821 = vmatpush.msra.mxu0 0.0
      %1822 = vmatpush.msra.mxu0 0.0
      %1823 = vmatpush.msra.mxu0 0.0
      %1824 = vmatpush.msra.mxu0 0.0
      %1825 = vmatpush.msra.mxu0 0.0
      %1826 = vmatpush.msra.mxu0 0.0
      %1827 = vmatpush.msra.mxu0 0.0
      %1828 = vmatpush.msra.mxu0 0.0
      %1829 = vmatpush.msra.mxu0 0.0
      %1830 = vmatpush.msra.mxu0 0.0
      %1831 = vmatpush.msra.mxu0 0.0
      %1832 = vmatpush.msra.mxu0 0.0
      %1833 = vmatpush.msra.mxu0 0.0
      %1834 = vmatpush.msra.mxu0 %v561
      %1835 = vmatpush.msra.mxu0 %v529
      %1836 = vmatmul.f32.gmra.mxu0 %v1746
      %v1837 = vpop.f32.mrf.mxu0
      %v1838 = vadd.f32 %v1738, %v1837
      %1839 = vmatmul.f32.gmra.mxu0 %v1749
      %v1840 = vpop.f32.mrf.mxu0
      %v1841 = vadd.f32 %v1743, %v1840
      %1842 = vdwg.mxu0
      %1843 = vmatpush.msra.mxu0 0.0
      %1844 = vmatpush.msra.mxu0 0.0
      %1845 = vmatpush.msra.mxu0 0.0
      %1846 = vmatpush.msra.mxu0 0.0
      %1847 = vmatpush.msra.mxu0 0.0
      %1848 = vmatpush.msra.mxu0 0.0
      %1849 = vmatpush.msra.mxu0 0.0
      %1850 = vmatpush.msra.mxu0 0.0
      %1851 = vmatpush.msra.mxu0 0.0
      %1852 = vmatpush.msra.mxu0 0.0
      %1853 = vmatpush.msra.mxu0 0.0
      %1854 = vmatpush.msra.mxu0 0.0
      %1855 = vmatpush.msra.mxu0 0.0
      %1856 = vmatpush.msra.mxu0 0.0
      %1857 = vmatpush.msra.mxu0 %v562
      %1858 = vmatpush.msra.mxu0 %v530
      %1859 = vmatmul.f32.gmra.mxu0 %v1746
      %v1860 = vpop.f32.mrf.mxu0
      %v1861 = vadd.f32 %v1738, %v1860
      %1862 = vmatmul.f32.gmra.mxu0 %v1749
      %v1863 = vpop.f32.mrf.mxu0
      %v1864 = vadd.f32 %v1743, %v1863
      %1865 = vdwg.mxu0
      %1866 = vmatpush.msra.mxu0 0.0
      %1867 = vmatpush.msra.mxu0 0.0
      %1868 = vmatpush.msra.mxu0 0.0
      %1869 = vmatpush.msra.mxu0 0.0
      %1870 = vmatpush.msra.mxu0 0.0
      %1871 = vmatpush.msra.mxu0 0.0
      %1872 = vmatpush.msra.mxu0 0.0
      %1873 = vmatpush.msra.mxu0 0.0
      %1874 = vmatpush.msra.mxu0 0.0
      %1875 = vmatpush.msra.mxu0 0.0
      %1876 = vmatpush.msra.mxu0 0.0
      %1877 = vmatpush.msra.mxu0 0.0
      %1878 = vmatpush.msra.mxu0 0.0
      %1879 = vmatpush.msra.mxu0 0.0
      %1880 = vmatpush.msra.mxu0 %v563
      %1881 = vmatpush.msra.mxu0 %v531
      %1882 = vmatmul.f32.gmra.mxu0 %v1746
      %v1883 = vpop.f32.mrf.mxu0
      %v1884 = vadd.f32 %v1738, %v1883
      %1885 = vmatmul.f32.gmra.mxu0 %v1749
      %v1886 = vpop.f32.mrf.mxu0
      %v1887 = vadd.f32 %v1743, %v1886
      %1888 = vdwg.mxu0
      %1889 = vmatpush.msra.mxu0 0.0
      %1890 = vmatpush.msra.mxu0 0.0
      %1891 = vmatpush.msra.mxu0 0.0
      %1892 = vmatpush.msra.mxu0 0.0
      %1893 = vmatpush.msra.mxu0 0.0
      %1894 = vmatpush.msra.mxu0 0.0
      %1895 = vmatpush.msra.mxu0 0.0
      %1896 = vmatpush.msra.mxu0 0.0
      %1897 = vmatpush.msra.mxu0 0.0
      %1898 = vmatpush.msra.mxu0 0.0
      %1899 = vmatpush.msra.mxu0 0.0
      %1900 = vmatpush.msra.mxu0 0.0
      %1901 = vmatpush.msra.mxu0 0.0
      %1902 = vmatpush.msra.mxu0 0.0
      %1903 = vmatpush.msra.mxu0 %v564
      %1904 = vmatpush.msra.mxu0 %v532
      %1905 = vmatmul.f32.gmra.mxu0 %v1746
      %v1906 = vpop.f32.mrf.mxu0
      %v1907 = vadd.f32 %v1738, %v1906
      %1908 = vmatmul.f32.gmra.mxu0 %v1749
      %v1909 = vpop.f32.mrf.mxu0
      %v1910 = vadd.f32 %v1743, %v1909
      %1911 = vdwg.mxu0
      %1912 = vmatpush.msra.mxu0 0.0
      %1913 = vmatpush.msra.mxu0 0.0
      %1914 = vmatpush.msra.mxu0 0.0
      %1915 = vmatpush.msra.mxu0 0.0
      %1916 = vmatpush.msra.mxu0 0.0
      %1917 = vmatpush.msra.mxu0 0.0
      %1918 = vmatpush.msra.mxu0 0.0
      %1919 = vmatpush.msra.mxu0 0.0
      %1920 = vmatpush.msra.mxu0 0.0
      %1921 = vmatpush.msra.mxu0 0.0
      %1922 = vmatpush.msra.mxu0 0.0
      %1923 = vmatpush.msra.mxu0 0.0
      %1924 = vmatpush.msra.mxu0 0.0
      %1925 = vmatpush.msra.mxu0 0.0
      %1926 = vmatpush.msra.mxu0 %v565
      %1927 = vmatpush.msra.mxu0 %v533
      %1928 = vmatmul.f32.gmra.mxu0 %v1746
      %v1929 = vpop.f32.mrf.mxu0
      %v1930 = vadd.f32 %v1738, %v1929
      %1931 = vmatmul.f32.gmra.mxu0 %v1749
      %v1932 = vpop.f32.mrf.mxu0
      %v1933 = vadd.f32 %v1743, %v1932
      %1934 = vdwg.mxu0
      %1935 = vmatpush.msra.mxu0 0.0
      %1936 = vmatpush.msra.mxu0 0.0
      %1937 = vmatpush.msra.mxu0 0.0
      %1938 = vmatpush.msra.mxu0 0.0
      %1939 = vmatpush.msra.mxu0 0.0
      %1940 = vmatpush.msra.mxu0 0.0
      %1941 = vmatpush.msra.mxu0 0.0
      %1942 = vmatpush.msra.mxu0 0.0
      %1943 = vmatpush.msra.mxu0 0.0
      %1944 = vmatpush.msra.mxu0 0.0
      %1945 = vmatpush.msra.mxu0 0.0
      %1946 = vmatpush.msra.mxu0 0.0
      %1947 = vmatpush.msra.mxu0 0.0
      %1948 = vmatpush.msra.mxu0 0.0
      %1949 = vmatpush.msra.mxu0 %v566
      %1950 = vmatpush.msra.mxu0 %v534
      %1951 = vmatmul.f32.gmra.mxu0 %v1746
      %v1952 = vpop.f32.mrf.mxu0
      %v1953 = vadd.f32 %v1738, %v1952
      %1954 = vmatmul.f32.gmra.mxu0 %v1749
      %v1955 = vpop.f32.mrf.mxu0
      %v1956 = vadd.f32 %v1743, %v1955
      %1957 = vdwg.mxu0
      %1958 = vmatpush.msra.mxu0 0.0
      %1959 = vmatpush.msra.mxu0 0.0
      %1960 = vmatpush.msra.mxu0 0.0
      %1961 = vmatpush.msra.mxu0 0.0
      %1962 = vmatpush.msra.mxu0 0.0
      %1963 = vmatpush.msra.mxu0 0.0
      %1964 = vmatpush.msra.mxu0 0.0
      %1965 = vmatpush.msra.mxu0 0.0
      %1966 = vmatpush.msra.mxu0 0.0
      %1967 = vmatpush.msra.mxu0 0.0
      %1968 = vmatpush.msra.mxu0 0.0
      %1969 = vmatpush.msra.mxu0 0.0
      %1970 = vmatpush.msra.mxu0 0.0
      %1971 = vmatpush.msra.mxu0 0.0
      %1972 = vmatpush.msra.mxu0 %v567
      %1973 = vmatpush.msra.mxu0 %v535
      %1974 = vmatmul.f32.gmra.mxu0 %v1746
      %v1975 = vpop.f32.mrf.mxu0
      %v1976 = vadd.f32 %v1738, %v1975
      %1977 = vmatmul.f32.gmra.mxu0 %v1749
      %v1978 = vpop.f32.mrf.mxu0
      %v1979 = vadd.f32 %v1743, %v1978
      %1980 = vdwg.mxu0
      %1981 = vmatpush.msra.mxu0 0.0
      %1982 = vmatpush.msra.mxu0 0.0
      %1983 = vmatpush.msra.mxu0 0.0
      %1984 = vmatpush.msra.mxu0 0.0
      %1985 = vmatpush.msra.mxu0 0.0
      %1986 = vmatpush.msra.mxu0 0.0
      %1987 = vmatpush.msra.mxu0 0.0
      %1988 = vmatpush.msra.mxu0 0.0
      %1989 = vmatpush.msra.mxu0 0.0
      %1990 = vmatpush.msra.mxu0 0.0
      %1991 = vmatpush.msra.mxu0 0.0
      %1992 = vmatpush.msra.mxu0 0.0
      %1993 = vmatpush.msra.mxu0 0.0
      %1994 = vmatpush.msra.mxu0 0.0
      %1995 = vmatpush.msra.mxu0 %v568
      %1996 = vmatpush.msra.mxu0 %v536
      %1997 = vmatmul.f32.gmra.mxu0 %v1746
      %v1998 = vpop.f32.mrf.mxu0
      %v1999 = vadd.f32 %v1738, %v1998
      %2000 = vmatmul.f32.gmra.mxu0 %v1749
      %v2001 = vpop.f32.mrf.mxu0
      %v2002 = vadd.f32 %v1743, %v2001
      %2003 = vdwg.mxu0
      %2004 = vmatpush.msra.mxu0 0.0
      %2005 = vmatpush.msra.mxu0 0.0
      %2006 = vmatpush.msra.mxu0 0.0
      %2007 = vmatpush.msra.mxu0 0.0
      %2008 = vmatpush.msra.mxu0 0.0
      %2009 = vmatpush.msra.mxu0 0.0
      %2010 = vmatpush.msra.mxu0 0.0
      %2011 = vmatpush.msra.mxu0 0.0
      %2012 = vmatpush.msra.mxu0 0.0
      %2013 = vmatpush.msra.mxu0 0.0
      %2014 = vmatpush.msra.mxu0 0.0
      %2015 = vmatpush.msra.mxu0 0.0
      %2016 = vmatpush.msra.mxu0 0.0
      %2017 = vmatpush.msra.mxu0 0.0
      %2018 = vmatpush.msra.mxu0 %v569
      %2019 = vmatpush.msra.mxu0 %v537
      %2020 = vmatmul.f32.gmra.mxu0 %v1746
      %v2021 = vpop.f32.mrf.mxu0
      %v2022 = vadd.f32 %v1738, %v2021
      %2023 = vmatmul.f32.gmra.mxu0 %v1749
      %v2024 = vpop.f32.mrf.mxu0
      %v2025 = vadd.f32 %v1743, %v2024
      %2026 = vdwg.mxu0
      %2027 = vmatpush.msra.mxu0 0.0
      %2028 = vmatpush.msra.mxu0 0.0
      %2029 = vmatpush.msra.mxu0 0.0
      %2030 = vmatpush.msra.mxu0 0.0
      %2031 = vmatpush.msra.mxu0 0.0
      %2032 = vmatpush.msra.mxu0 0.0
      %2033 = vmatpush.msra.mxu0 0.0
      %2034 = vmatpush.msra.mxu0 0.0
      %2035 = vmatpush.msra.mxu0 0.0
      %2036 = vmatpush.msra.mxu0 0.0
      %2037 = vmatpush.msra.mxu0 0.0
      %2038 = vmatpush.msra.mxu0 0.0
      %2039 = vmatpush.msra.mxu0 0.0
      %2040 = vmatpush.msra.mxu0 0.0
      %2041 = vmatpush.msra.mxu0 %v570
      %2042 = vmatpush.msra.mxu0 %v538
      %2043 = vmatmul.f32.gmra.mxu0 %v1746
      %v2044 = vpop.f32.mrf.mxu0
      %v2045 = vadd.f32 %v1738, %v2044
      %2046 = vmatmul.f32.gmra.mxu0 %v1749
      %v2047 = vpop.f32.mrf.mxu0
      %v2048 = vadd.f32 %v1743, %v2047
      %2049 = vdwg.mxu0
      %2050 = vmatpush.msra.mxu0 0.0
      %2051 = vmatpush.msra.mxu0 0.0
      %2052 = vmatpush.msra.mxu0 0.0
      %2053 = vmatpush.msra.mxu0 0.0
      %2054 = vmatpush.msra.mxu0 0.0
      %2055 = vmatpush.msra.mxu0 0.0
      %2056 = vmatpush.msra.mxu0 0.0
      %2057 = vmatpush.msra.mxu0 0.0
      %2058 = vmatpush.msra.mxu0 0.0
      %2059 = vmatpush.msra.mxu0 0.0
      %2060 = vmatpush.msra.mxu0 0.0
      %2061 = vmatpush.msra.mxu0 0.0
      %2062 = vmatpush.msra.mxu0 0.0
      %2063 = vmatpush.msra.mxu0 0.0
      %2064 = vmatpush.msra.mxu0 %v571
      %2065 = vmatpush.msra.mxu0 %v539
      %2066 = vmatmul.f32.gmra.mxu0 %v1746
      %v2067 = vpop.f32.mrf.mxu0
      %v2068 = vadd.f32 %v1738, %v2067
      %2069 = vmatmul.f32.gmra.mxu0 %v1749
      %v2070 = vpop.f32.mrf.mxu0
      %v2071 = vadd.f32 %v1743, %v2070
      %2072 = vdwg.mxu0
      %2073 = vmatpush.msra.mxu0 0.0
      %2074 = vmatpush.msra.mxu0 0.0
      %2075 = vmatpush.msra.mxu0 0.0
      %2076 = vmatpush.msra.mxu0 0.0
      %2077 = vmatpush.msra.mxu0 0.0
      %2078 = vmatpush.msra.mxu0 0.0
      %2079 = vmatpush.msra.mxu0 0.0
      %2080 = vmatpush.msra.mxu0 0.0
      %2081 = vmatpush.msra.mxu0 0.0
      %2082 = vmatpush.msra.mxu0 0.0
      %2083 = vmatpush.msra.mxu0 0.0
      %2084 = vmatpush.msra.mxu0 0.0
      %2085 = vmatpush.msra.mxu0 0.0
      %2086 = vmatpush.msra.mxu0 0.0
      %2087 = vmatpush.msra.mxu0 %v572
      %2088 = vmatpush.msra.mxu0 %v540
      %2089 = vmatmul.f32.gmra.mxu0 %v1746
      %v2090 = vpop.f32.mrf.mxu0
      %v2091 = vadd.f32 %v1738, %v2090
      %2092 = vmatmul.f32.gmra.mxu0 %v1749
      %v2093 = vpop.f32.mrf.mxu0
      %v2094 = vadd.f32 %v1743, %v2093
      %2095 = vdwg.mxu0
      %2096 = vmatpush.msra.mxu0 0.0
      %2097 = vmatpush.msra.mxu0 0.0
      %2098 = vmatpush.msra.mxu0 0.0
      %2099 = vmatpush.msra.mxu0 0.0
      %2100 = vmatpush.msra.mxu0 0.0
      %2101 = vmatpush.msra.mxu0 0.0
      %2102 = vmatpush.msra.mxu0 0.0
      %2103 = vmatpush.msra.mxu0 0.0
      %2104 = vmatpush.msra.mxu0 0.0
      %2105 = vmatpush.msra.mxu0 0.0
      %2106 = vmatpush.msra.mxu0 0.0
      %2107 = vmatpush.msra.mxu0 0.0
      %2108 = vmatpush.msra.mxu0 0.0
      %2109 = vmatpush.msra.mxu0 0.0
      %2110 = vmatpush.msra.mxu0 %v573
      %2111 = vmatpush.msra.mxu0 %v541
      %2112 = vmatmul.f32.gmra.mxu0 %v1746
      %v2113 = vpop.f32.mrf.mxu0
      %v2114 = vadd.f32 %v1738, %v2113
      %2115 = vmatmul.f32.gmra.mxu0 %v1749
      %v2116 = vpop.f32.mrf.mxu0
      %v2117 = vadd.f32 %v1743, %v2116
      %2118 = vdwg.mxu0
      %2119 = vmatpush.msra.mxu0 0.0
      %2120 = vmatpush.msra.mxu0 0.0
      %2121 = vmatpush.msra.mxu0 0.0
      %2122 = vmatpush.msra.mxu0 0.0
      %2123 = vmatpush.msra.mxu0 0.0
      %2124 = vmatpush.msra.mxu0 0.0
      %2125 = vmatpush.msra.mxu0 0.0
      %2126 = vmatpush.msra.mxu0 0.0
      %2127 = vmatpush.msra.mxu0 0.0
      %2128 = vmatpush.msra.mxu0 0.0
      %2129 = vmatpush.msra.mxu0 0.0
      %2130 = vmatpush.msra.mxu0 0.0
      %2131 = vmatpush.msra.mxu0 0.0
      %2132 = vmatpush.msra.mxu0 0.0
      %2133 = vmatpush.msra.mxu0 %v574
      %2134 = vmatpush.msra.mxu0 %v542
      %2135 = vmatmul.f32.gmra.mxu0 %v1746
      %v2136 = vpop.f32.mrf.mxu0
      %v2137 = vadd.f32 %v1738, %v2136
      %2138 = vmatmul.f32.gmra.mxu0 %v1749
      %v2139 = vpop.f32.mrf.mxu0
      %v2140 = vadd.f32 %v1743, %v2139
      %2141 = vdwg.mxu0
      %2142 = vmatpush.msra.mxu0 0.0
      %2143 = vmatpush.msra.mxu0 0.0
      %2144 = vmatpush.msra.mxu0 0.0
      %2145 = vmatpush.msra.mxu0 0.0
      %2146 = vmatpush.msra.mxu0 0.0
      %2147 = vmatpush.msra.mxu0 0.0
      %2148 = vmatpush.msra.mxu0 0.0
      %2149 = vmatpush.msra.mxu0 0.0
      %2150 = vmatpush.msra.mxu0 0.0
      %2151 = vmatpush.msra.mxu0 0.0
      %2152 = vmatpush.msra.mxu0 0.0
      %2153 = vmatpush.msra.mxu0 0.0
      %2154 = vmatpush.msra.mxu0 0.0
      %2155 = vmatpush.msra.mxu0 0.0
      %2156 = vmatpush.msra.mxu0 %v575
      %2157 = vmatpush.msra.mxu0 %v543
      %2158 = vmatmul.f32.gmra.mxu0 %v1746
      %v2159 = vpop.f32.mrf.mxu0
      %v2160 = vadd.f32 %v1738, %v2159
      %2161 = vmatmul.f32.gmra.mxu0 %v1749
      %v2162 = vpop.f32.mrf.mxu0
      %v2163 = vadd.f32 %v1743, %v2162
      %2164 = vdwg.mxu0
      %2165 = vmatpush.msra.mxu0 0.0
      %2166 = vmatpush.msra.mxu0 0.0
      %2167 = vmatpush.msra.mxu0 0.0
      %2168 = vmatpush.msra.mxu0 0.0
      %2169 = vmatpush.msra.mxu0 0.0
      %2170 = vmatpush.msra.mxu0 0.0
      %2171 = vmatpush.msra.mxu0 0.0
      %2172 = vmatpush.msra.mxu0 0.0
      %2173 = vmatpush.msra.mxu0 0.0
      %2174 = vmatpush.msra.mxu0 0.0
      %2175 = vmatpush.msra.mxu0 0.0
      %2176 = vmatpush.msra.mxu0 0.0
      %2177 = vmatpush.msra.mxu0 0.0
      %2178 = vmatpush.msra.mxu0 0.0
      %2179 = vmatpush.msra.mxu0 %v576
      %2180 = vmatpush.msra.mxu0 %v544
      %2181 = vmatmul.f32.gmra.mxu0 %v1746
      %v2182 = vpop.f32.mrf.mxu0
      %v2183 = vadd.f32 %v1738, %v2182
      %2184 = vmatmul.f32.gmra.mxu0 %v1749
      %v2185 = vpop.f32.mrf.mxu0
      %v2186 = vadd.f32 %v1743, %v2185
      %2187 = vdwg.mxu0
      %2188 = vmatpush.msra.mxu0 0.0
      %2189 = vmatpush.msra.mxu0 0.0
      %2190 = vmatpush.msra.mxu0 0.0
      %2191 = vmatpush.msra.mxu0 0.0
      %2192 = vmatpush.msra.mxu0 0.0
      %2193 = vmatpush.msra.mxu0 0.0
      %2194 = vmatpush.msra.mxu0 0.0
      %2195 = vmatpush.msra.mxu0 0.0
      %2196 = vmatpush.msra.mxu0 0.0
      %2197 = vmatpush.msra.mxu0 0.0
      %2198 = vmatpush.msra.mxu0 0.0
      %2199 = vmatpush.msra.mxu0 0.0
      %2200 = vmatpush.msra.mxu0 0.0
      %2201 = vmatpush.msra.mxu0 0.0
      %2202 = vmatpush.msra.mxu0 %v577
      %2203 = vmatpush.msra.mxu0 %v545
      %2204 = vmatmul.f32.gmra.mxu0 %v1746
      %v2205 = vpop.f32.mrf.mxu0
      %v2206 = vadd.f32 %v1738, %v2205
      %2207 = vmatmul.f32.gmra.mxu0 %v1749
      %v2208 = vpop.f32.mrf.mxu0
      %v2209 = vadd.f32 %v1743, %v2208
      %2210 = vdwg.mxu0
      %2211 = vmatpush.msra.mxu0 0.0
      %2212 = vmatpush.msra.mxu0 0.0
      %2213 = vmatpush.msra.mxu0 0.0
      %2214 = vmatpush.msra.mxu0 0.0
      %2215 = vmatpush.msra.mxu0 0.0
      %2216 = vmatpush.msra.mxu0 0.0
      %2217 = vmatpush.msra.mxu0 0.0
      %2218 = vmatpush.msra.mxu0 0.0
      %2219 = vmatpush.msra.mxu0 0.0
      %2220 = vmatpush.msra.mxu0 0.0
      %2221 = vmatpush.msra.mxu0 0.0
      %2222 = vmatpush.msra.mxu0 0.0
      %2223 = vmatpush.msra.mxu0 0.0
      %2224 = vmatpush.msra.mxu0 0.0
      %2225 = vmatpush.msra.mxu0 %v578
      %2226 = vmatpush.msra.mxu0 %v546
      %2227 = vmatmul.f32.gmra.mxu0 %v1746
      %v2228 = vpop.f32.mrf.mxu0
      %v2229 = vadd.f32 %v1738, %v2228
      %2230 = vmatmul.f32.gmra.mxu0 %v1749
      %v2231 = vpop.f32.mrf.mxu0
      %v2232 = vadd.f32 %v1743, %v2231
      %2233 = vdwg.mxu0
      %2234 = vmatpush.msra.mxu0 0.0
      %2235 = vmatpush.msra.mxu0 0.0
      %2236 = vmatpush.msra.mxu0 0.0
      %2237 = vmatpush.msra.mxu0 0.0
      %2238 = vmatpush.msra.mxu0 0.0
      %2239 = vmatpush.msra.mxu0 0.0
      %2240 = vmatpush.msra.mxu0 0.0
      %2241 = vmatpush.msra.mxu0 0.0
      %2242 = vmatpush.msra.mxu0 0.0
      %2243 = vmatpush.msra.mxu0 0.0
      %2244 = vmatpush.msra.mxu0 0.0
      %2245 = vmatpush.msra.mxu0 0.0
      %2246 = vmatpush.msra.mxu0 0.0
      %2247 = vmatpush.msra.mxu0 0.0
      %2248 = vmatpush.msra.mxu0 %v579
      %2249 = vmatpush.msra.mxu0 %v547
      %2250 = vmatmul.f32.gmra.mxu0 %v1746
      %v2251 = vpop.f32.mrf.mxu0
      %v2252 = vadd.f32 %v1738, %v2251
      %2253 = vmatmul.f32.gmra.mxu0 %v1749
      %v2254 = vpop.f32.mrf.mxu0
      %v2255 = vadd.f32 %v1743, %v2254
      %2256 = vdwg.mxu0
      %2257 = vmatpush.msra.mxu0 0.0
      %2258 = vmatpush.msra.mxu0 0.0
      %2259 = vmatpush.msra.mxu0 0.0
      %2260 = vmatpush.msra.mxu0 0.0
      %2261 = vmatpush.msra.mxu0 0.0
      %2262 = vmatpush.msra.mxu0 0.0
      %2263 = vmatpush.msra.mxu0 0.0
      %2264 = vmatpush.msra.mxu0 0.0
      %2265 = vmatpush.msra.mxu0 0.0
      %2266 = vmatpush.msra.mxu0 0.0
      %2267 = vmatpush.msra.mxu0 0.0
      %2268 = vmatpush.msra.mxu0 0.0
      %2269 = vmatpush.msra.mxu0 0.0
      %2270 = vmatpush.msra.mxu0 0.0
      %2271 = vmatpush.msra.mxu0 %v580
      %2272 = vmatpush.msra.mxu0 %v548
      %2273 = vmatmul.f32.gmra.mxu0 %v1746
      %v2274 = vpop.f32.mrf.mxu0
      %v2275 = vadd.f32 %v1738, %v2274
      %2276 = vmatmul.f32.gmra.mxu0 %v1749
      %v2277 = vpop.f32.mrf.mxu0
      %v2278 = vadd.f32 %v1743, %v2277
      %2279 = vdwg.mxu0
      %2280 = vmatpush.msra.mxu0 0.0
      %2281 = vmatpush.msra.mxu0 0.0
      %2282 = vmatpush.msra.mxu0 0.0
      %2283 = vmatpush.msra.mxu0 0.0
      %2284 = vmatpush.msra.mxu0 0.0
      %2285 = vmatpush.msra.mxu0 0.0
      %2286 = vmatpush.msra.mxu0 0.0
      %2287 = vmatpush.msra.mxu0 0.0
      %2288 = vmatpush.msra.mxu0 0.0
      %2289 = vmatpush.msra.mxu0 0.0
      %2290 = vmatpush.msra.mxu0 0.0
      %2291 = vmatpush.msra.mxu0 0.0
      %2292 = vmatpush.msra.mxu0 0.0
      %2293 = vmatpush.msra.mxu0 0.0
      %2294 = vmatpush.msra.mxu0 %v581
      %2295 = vmatpush.msra.mxu0 %v549
      %2296 = vmatmul.f32.gmra.mxu0 %v1746
      %v2297 = vpop.f32.mrf.mxu0
      %v2298 = vadd.f32 %v1738, %v2297
      %2299 = vmatmul.f32.gmra.mxu0 %v1749
      %v2300 = vpop.f32.mrf.mxu0
      %v2301 = vadd.f32 %v1743, %v2300
      %2302 = vdwg.mxu0
      %2303 = vmatpush.msra.mxu0 0.0
      %2304 = vmatpush.msra.mxu0 0.0
      %2305 = vmatpush.msra.mxu0 0.0
      %2306 = vmatpush.msra.mxu0 0.0
      %2307 = vmatpush.msra.mxu0 0.0
      %2308 = vmatpush.msra.mxu0 0.0
      %2309 = vmatpush.msra.mxu0 0.0
      %2310 = vmatpush.msra.mxu0 0.0
      %2311 = vmatpush.msra.mxu0 0.0
      %2312 = vmatpush.msra.mxu0 0.0
      %2313 = vmatpush.msra.mxu0 0.0
      %2314 = vmatpush.msra.mxu0 0.0
      %2315 = vmatpush.msra.mxu0 0.0
      %2316 = vmatpush.msra.mxu0 0.0
      %2317 = vmatpush.msra.mxu0 %v582
      %2318 = vmatpush.msra.mxu0 %v550
      %2319 = vmatmul.f32.gmra.mxu0 %v1746
      %v2320 = vpop.f32.mrf.mxu0
      %v2321 = vadd.f32 %v1738, %v2320
      %2322 = vmatmul.f32.gmra.mxu0 %v1749
      %v2323 = vpop.f32.mrf.mxu0
      %v2324 = vadd.f32 %v1743, %v2323
      %2325 = vdwg.mxu0
      %2326 = vmatpush.msra.mxu0 0.0
      %2327 = vmatpush.msra.mxu0 0.0
      %2328 = vmatpush.msra.mxu0 0.0
      %2329 = vmatpush.msra.mxu0 0.0
      %2330 = vmatpush.msra.mxu0 0.0
      %2331 = vmatpush.msra.mxu0 0.0
      %2332 = vmatpush.msra.mxu0 0.0
      %2333 = vmatpush.msra.mxu0 0.0
      %2334 = vmatpush.msra.mxu0 0.0
      %2335 = vmatpush.msra.mxu0 0.0
      %2336 = vmatpush.msra.mxu0 0.0
      %2337 = vmatpush.msra.mxu0 0.0
      %2338 = vmatpush.msra.mxu0 0.0
      %2339 = vmatpush.msra.mxu0 0.0
      %2340 = vmatpush.msra.mxu0 %v583
      %2341 = vmatpush.msra.mxu0 %v551
      %2342 = vmatmul.f32.gmra.mxu0 %v1746
      %v2343 = vpop.f32.mrf.mxu0
      %v2344 = vadd.f32 %v1738, %v2343
      %2345 = vmatmul.f32.gmra.mxu0 %v1749
      %v2346 = vpop.f32.mrf.mxu0
      %v2347 = vadd.f32 %v1743, %v2346
      %2348 = vdwg.mxu0
      %2349 = vmatpush.msra.mxu0 0.0
      %2350 = vmatpush.msra.mxu0 0.0
      %2351 = vmatpush.msra.mxu0 0.0
      %2352 = vmatpush.msra.mxu0 0.0
      %2353 = vmatpush.msra.mxu0 0.0
      %2354 = vmatpush.msra.mxu0 0.0
      %2355 = vmatpush.msra.mxu0 0.0
      %2356 = vmatpush.msra.mxu0 0.0
      %2357 = vmatpush.msra.mxu0 0.0
      %2358 = vmatpush.msra.mxu0 0.0
      %2359 = vmatpush.msra.mxu0 0.0
      %2360 = vmatpush.msra.mxu0 0.0
      %2361 = vmatpush.msra.mxu0 0.0
      %2362 = vmatpush.msra.mxu0 0.0
      %2363 = vmatpush.msra.mxu0 %v584
      %2364 = vmatpush.msra.mxu0 %v552
      %2365 = vmatmul.f32.gmra.mxu0 %v1746
      %v2366 = vpop.f32.mrf.mxu0
      %v2367 = vadd.f32 %v1738, %v2366
      %2368 = vmatmul.f32.gmra.mxu0 %v1749
      %v2369 = vpop.f32.mrf.mxu0
      %v2370 = vadd.f32 %v1743, %v2369
      %2371 = vdwg.mxu0
      %2372 = vmatpush.msra.mxu0 0.0
      %2373 = vmatpush.msra.mxu0 0.0
      %2374 = vmatpush.msra.mxu0 0.0
      %2375 = vmatpush.msra.mxu0 0.0
      %2376 = vmatpush.msra.mxu0 0.0
      %2377 = vmatpush.msra.mxu0 0.0
      %2378 = vmatpush.msra.mxu0 0.0
      %2379 = vmatpush.msra.mxu0 0.0
      %2380 = vmatpush.msra.mxu0 0.0
      %2381 = vmatpush.msra.mxu0 0.0
      %2382 = vmatpush.msra.mxu0 0.0
      %2383 = vmatpush.msra.mxu0 0.0
      %2384 = vmatpush.msra.mxu0 0.0
      %2385 = vmatpush.msra.mxu0 0.0
      %2386 = vmatpush.msra.mxu0 %v585
      %2387 = vmatpush.msra.mxu0 %v553
      %2388 = vmatmul.f32.gmra.mxu0 %v1746
      %v2389 = vpop.f32.mrf.mxu0
      %v2390 = vadd.f32 %v1738, %v2389
      %2391 = vmatmul.f32.gmra.mxu0 %v1749
      %v2392 = vpop.f32.mrf.mxu0
      %v2393 = vadd.f32 %v1743, %v2392
      %2394 = vdwg.mxu0
      %2395 = vmatpush.msra.mxu0 0.0
      %2396 = vmatpush.msra.mxu0 0.0
      %2397 = vmatpush.msra.mxu0 0.0
      %2398 = vmatpush.msra.mxu0 0.0
      %2399 = vmatpush.msra.mxu0 0.0
      %2400 = vmatpush.msra.mxu0 0.0
      %2401 = vmatpush.msra.mxu0 0.0
      %2402 = vmatpush.msra.mxu0 0.0
      %2403 = vmatpush.msra.mxu0 0.0
      %2404 = vmatpush.msra.mxu0 0.0
      %2405 = vmatpush.msra.mxu0 0.0
      %2406 = vmatpush.msra.mxu0 0.0
      %2407 = vmatpush.msra.mxu0 0.0
      %2408 = vmatpush.msra.mxu0 0.0
      %2409 = vmatpush.msra.mxu0 %v586
      %2410 = vmatpush.msra.mxu0 %v554
      %2411 = vmatmul.f32.gmra.mxu0 %v1746
      %v2412 = vpop.f32.mrf.mxu0
      %v2413 = vadd.f32 %v1738, %v2412
      %2414 = vmatmul.f32.gmra.mxu0 %v1749
      %v2415 = vpop.f32.mrf.mxu0
      %v2416 = vadd.f32 %v1743, %v2415
      %2417 = vdwg.mxu0
      %2418 = vmatpush.msra.mxu0 0.0
      %2419 = vmatpush.msra.mxu0 0.0
      %2420 = vmatpush.msra.mxu0 0.0
      %2421 = vmatpush.msra.mxu0 0.0
      %2422 = vmatpush.msra.mxu0 0.0
      %2423 = vmatpush.msra.mxu0 0.0
      %2424 = vmatpush.msra.mxu0 0.0
      %2425 = vmatpush.msra.mxu0 0.0
      %2426 = vmatpush.msra.mxu0 0.0
      %2427 = vmatpush.msra.mxu0 0.0
      %2428 = vmatpush.msra.mxu0 0.0
      %2429 = vmatpush.msra.mxu0 0.0
      %2430 = vmatpush.msra.mxu0 0.0
      %2431 = vmatpush.msra.mxu0 0.0
      %2432 = vmatpush.msra.mxu0 %v587
      %2433 = vmatpush.msra.mxu0 %v555
      %2434 = vmatmul.f32.gmra.mxu0 %v1746
      %v2435 = vpop.f32.mrf.mxu0
      %v2436 = vadd.f32 %v1738, %v2435
      %2437 = vmatmul.f32.gmra.mxu0 %v1749
      %v2438 = vpop.f32.mrf.mxu0
      %v2439 = vadd.f32 %v1743, %v2438
      %2440 = vdwg.mxu0
      %2441 = vmatpush.msra.mxu0 0.0
      %2442 = vmatpush.msra.mxu0 0.0
      %2443 = vmatpush.msra.mxu0 0.0
      %2444 = vmatpush.msra.mxu0 0.0
      %2445 = vmatpush.msra.mxu0 0.0
      %2446 = vmatpush.msra.mxu0 0.0
      %2447 = vmatpush.msra.mxu0 0.0
      %2448 = vmatpush.msra.mxu0 0.0
      %2449 = vmatpush.msra.mxu0 0.0
      %2450 = vmatpush.msra.mxu0 0.0
      %2451 = vmatpush.msra.mxu0 0.0
      %2452 = vmatpush.msra.mxu0 0.0
      %2453 = vmatpush.msra.mxu0 0.0
      %2454 = vmatpush.msra.mxu0 0.0
      %2455 = vmatpush.msra.mxu0 %v588
      %2456 = vmatpush.msra.mxu0 %v556
      %2457 = vmatmul.f32.gmra.mxu0 %v1746
      %v2458 = vpop.f32.mrf.mxu0
      %v2459 = vadd.f32 %v1738, %v2458
      %2460 = vmatmul.f32.gmra.mxu0 %v1749
      %v2461 = vpop.f32.mrf.mxu0
      %v2462 = vadd.f32 %v1743, %v2461
      %2463 = vdwg.mxu0
      %2464 = vmatpush.msra.mxu0 0.0
      %2465 = vmatpush.msra.mxu0 0.0
      %2466 = vmatpush.msra.mxu0 0.0
      %2467 = vmatpush.msra.mxu0 0.0
      %2468 = vmatpush.msra.mxu0 0.0
      %2469 = vmatpush.msra.mxu0 0.0
      %2470 = vmatpush.msra.mxu0 0.0
      %2471 = vmatpush.msra.mxu0 0.0
      %2472 = vmatpush.msra.mxu0 0.0
      %2473 = vmatpush.msra.mxu0 0.0
      %2474 = vmatpush.msra.mxu0 0.0
      %2475 = vmatpush.msra.mxu0 0.0
      %2476 = vmatpush.msra.mxu0 0.0
      %2477 = vmatpush.msra.mxu0 0.0
      %2478 = vmatpush.msra.mxu0 %v589
      %2479 = vmatpush.msra.mxu0 %v557
      %2480 = vmatmul.f32.gmra.mxu0 %v1746
      %v2481 = vpop.f32.mrf.mxu0
      %v2482 = vadd.f32 %v1738, %v2481
      %2483 = vmatmul.f32.gmra.mxu0 %v1749
      %v2484 = vpop.f32.mrf.mxu0
      %v2485 = vadd.f32 %v1743, %v2484
      %2486 = vdwg.mxu0
      %v2487 = vsub.f32 0.0, %v1769
      %v2488 = vsub.f32 0.0, %v1792
      %v2489 = vsub.f32 0.0, %v1815
      %v2490 = vsub.f32 0.0, %v1838
      %v2491 = vsub.f32 0.0, %v1861
      %v2492 = vsub.f32 0.0, %v1884
      %v2493 = vsub.f32 0.0, %v1907
      %v2494 = vsub.f32 0.0, %v1930
      %v2495 = vsub.f32 0.0, %v1953
      %v2496 = vsub.f32 0.0, %v1976
      %v2497 = vsub.f32 0.0, %v1999
      %v2498 = vsub.f32 0.0, %v2022
      %v2499 = vsub.f32 0.0, %v2045
      %v2500 = vsub.f32 0.0, %v2068
      %v2501 = vsub.f32 0.0, %v2091
      %v2502 = vsub.f32 0.0, %v2114
      %v2503 = vsub.f32 0.0, %v2137
      %v2504 = vsub.f32 0.0, %v2160
      %v2505 = vsub.f32 0.0, %v2183
      %v2506 = vsub.f32 0.0, %v2206
      %v2507 = vsub.f32 0.0, %v2229
      %v2508 = vsub.f32 0.0, %v2252
      %v2509 = vsub.f32 0.0, %v2275
      %v2510 = vsub.f32 0.0, %v2298
      %v2511 = vsub.f32 0.0, %v2321
      %v2512 = vsub.f32 0.0, %v2344
      %v2513 = vsub.f32 0.0, %v2367
      %v2514 = vsub.f32 0.0, %v2390
      %v2515 = vsub.f32 0.0, %v2413
      %v2516 = vsub.f32 0.0, %v2436
      %v2517 = vsub.f32 0.0, %v2459
      %v2518 = vsub.f32 0.0, %v2482
      %v2519 = vsub.f32 0.0, %v1772
      %v2520 = vsub.f32 0.0, %v1795
      %v2521 = vsub.f32 0.0, %v1818
      %v2522 = vsub.f32 0.0, %v1841
      %v2523 = vsub.f32 0.0, %v1864
      %v2524 = vsub.f32 0.0, %v1887
      %v2525 = vsub.f32 0.0, %v1910
      %v2526 = vsub.f32 0.0, %v1933
      %v2527 = vsub.f32 0.0, %v1956
      %v2528 = vsub.f32 0.0, %v1979
      %v2529 = vsub.f32 0.0, %v2002
      %v2530 = vsub.f32 0.0, %v2025
      %v2531 = vsub.f32 0.0, %v2048
      %v2532 = vsub.f32 0.0, %v2071
      %v2533 = vsub.f32 0.0, %v2094
      %v2534 = vsub.f32 0.0, %v2117
      %v2535 = vsub.f32 0.0, %v2140
      %v2536 = vsub.f32 0.0, %v2163
      %v2537 = vsub.f32 0.0, %v2186
      %v2538 = vsub.f32 0.0, %v2209
      %v2539 = vsub.f32 0.0, %v2232
      %v2540 = vsub.f32 0.0, %v2255
      %v2541 = vsub.f32 0.0, %v2278
      %v2542 = vsub.f32 0.0, %v2301
      %v2543 = vsub.f32 0.0, %v2324
      %v2544 = vsub.f32 0.0, %v2347
      %v2545 = vsub.f32 0.0, %v2370
      %v2546 = vsub.f32 0.0, %v2393
      %v2547 = vsub.f32 0.0, %v2416
      %v2548 = vsub.f32 0.0, %v2439
      %v2549 = vsub.f32 0.0, %v2462
      %v2550 = vsub.f32 0.0, %v2485
      %v2551 = vmul.f32 %v2487, 1.442695
      %v2552 = vpow.pop %v2551
      %v2553 = vmul.f32 %v2488, 1.442695
      %v2554 = vpow.pop %v2553
      %v2555 = vmul.f32 %v2489, 1.442695
      %v2556 = vpow.pop %v2555
      %v2557 = vmul.f32 %v2490, 1.442695
      %v2558 = vpow.pop %v2557
      %v2559 = vmul.f32 %v2491, 1.442695
      %v2560 = vpow.pop %v2559
      %v2561 = vmul.f32 %v2492, 1.442695
      %v2562 = vpow.pop %v2561
      %v2563 = vmul.f32 %v2493, 1.442695
      %v2564 = vpow.pop %v2563
      %v2565 = vmul.f32 %v2494, 1.442695
      %v2566 = vpow.pop %v2565
      %v2567 = vmul.f32 %v2495, 1.442695
      %v2568 = vpow.pop %v2567
      %v2569 = vmul.f32 %v2496, 1.442695
      %v2570 = vpow.pop %v2569
      %v2571 = vmul.f32 %v2497, 1.442695
      %v2572 = vpow.pop %v2571
      %v2573 = vmul.f32 %v2498, 1.442695
      %v2574 = vpow.pop %v2573
      %v2575 = vmul.f32 %v2499, 1.442695
      %v2576 = vpow.pop %v2575
      %v2577 = vmul.f32 %v2500, 1.442695
      %v2578 = vpow.pop %v2577
      %v2579 = vmul.f32 %v2501, 1.442695
      %v2580 = vpow.pop %v2579
      %v2581 = vmul.f32 %v2502, 1.442695
      %v2582 = vpow.pop %v2581
      %v2583 = vmul.f32 %v2503, 1.442695
      %v2584 = vpow.pop %v2583
      %v2585 = vmul.f32 %v2504, 1.442695
      %v2586 = vpow.pop %v2585
      %v2587 = vmul.f32 %v2505, 1.442695
      %v2588 = vpow.pop %v2587
      %v2589 = vmul.f32 %v2506, 1.442695
      %v2590 = vpow.pop %v2589
      %v2591 = vmul.f32 %v2507, 1.442695
      %v2592 = vpow.pop %v2591
      %v2593 = vmul.f32 %v2508, 1.442695
      %v2594 = vpow.pop %v2593
      %v2595 = vmul.f32 %v2509, 1.442695
      %v2596 = vpow.pop %v2595
      %v2597 = vmul.f32 %v2510, 1.442695
      %v2598 = vpow.pop %v2597
      %v2599 = vmul.f32 %v2511, 1.442695
      %v2600 = vpow.pop %v2599
      %v2601 = vmul.f32 %v2512, 1.442695
      %v2602 = vpow.pop %v2601
      %v2603 = vmul.f32 %v2513, 1.442695
      %v2604 = vpow.pop %v2603
      %v2605 = vmul.f32 %v2514, 1.442695
      %v2606 = vpow.pop %v2605
      %v2607 = vmul.f32 %v2515, 1.442695
      %v2608 = vpow.pop %v2607
      %v2609 = vmul.f32 %v2516, 1.442695
      %v2610 = vpow.pop %v2609
      %v2611 = vmul.f32 %v2517, 1.442695
      %v2612 = vpow.pop %v2611
      %v2613 = vmul.f32 %v2518, 1.442695
      %v2614 = vpow.pop %v2613
      %v2615 = vmul.f32 %v2519, 1.442695
      %v2616 = vpow.pop %v2615
      %v2617 = vmul.f32 %v2520, 1.442695
      %v2618 = vpow.pop %v2617
      %v2619 = vmul.f32 %v2521, 1.442695
      %v2620 = vpow.pop %v2619
      %v2621 = vmul.f32 %v2522, 1.442695
      %v2622 = vpow.pop %v2621
      %v2623 = vmul.f32 %v2523, 1.442695
      %v2624 = vpow.pop %v2623
      %v2625 = vmul.f32 %v2524, 1.442695
      %v2626 = vpow.pop %v2625
      %v2627 = vmul.f32 %v2525, 1.442695
      %v2628 = vpow.pop %v2627
      %v2629 = vmul.f32 %v2526, 1.442695
      %v2630 = vpow.pop %v2629
      %v2631 = vmul.f32 %v2527, 1.442695
      %v2632 = vpow.pop %v2631
      %v2633 = vmul.f32 %v2528, 1.442695
      %v2634 = vpow.pop %v2633
      %v2635 = vmul.f32 %v2529, 1.442695
      %v2636 = vpow.pop %v2635
      %v2637 = vmul.f32 %v2530, 1.442695
      %v2638 = vpow.pop %v2637
      %v2639 = vmul.f32 %v2531, 1.442695
      %v2640 = vpow.pop %v2639
      %v2641 = vmul.f32 %v2532, 1.442695
      %v2642 = vpow.pop %v2641
      %v2643 = vmul.f32 %v2533, 1.442695
      %v2644 = vpow.pop %v2643
      %v2645 = vmul.f32 %v2534, 1.442695
      %v2646 = vpow.pop %v2645
      %v2647 = vmul.f32 %v2535, 1.442695
      %v2648 = vpow.pop %v2647
      %v2649 = vmul.f32 %v2536, 1.442695
      %v2650 = vpow.pop %v2649
      %v2651 = vmul.f32 %v2537, 1.442695
      %v2652 = vpow.pop %v2651
      %v2653 = vmul.f32 %v2538, 1.442695
      %v2654 = vpow.pop %v2653
      %v2655 = vmul.f32 %v2539, 1.442695
      %v2656 = vpow.pop %v2655
      %v2657 = vmul.f32 %v2540, 1.442695
      %v2658 = vpow.pop %v2657
      %v2659 = vmul.f32 %v2541, 1.442695
      %v2660 = vpow.pop %v2659
      %v2661 = vmul.f32 %v2542, 1.442695
      %v2662 = vpow.pop %v2661
      %v2663 = vmul.f32 %v2543, 1.442695
      %v2664 = vpow.pop %v2663
      %v2665 = vmul.f32 %v2544, 1.442695
      %v2666 = vpow.pop %v2665
      %v2667 = vmul.f32 %v2545, 1.442695
      %v2668 = vpow.pop %v2667
      %v2669 = vmul.f32 %v2546, 1.442695
      %v2670 = vpow.pop %v2669
      %v2671 = vmul.f32 %v2547, 1.442695
      %v2672 = vpow.pop %v2671
      %v2673 = vmul.f32 %v2548, 1.442695
      %v2674 = vpow.pop %v2673
      %v2675 = vmul.f32 %v2549, 1.442695
      %v2676 = vpow.pop %v2675
      %v2677 = vmul.f32 %v2550, 1.442695
      %v2678 = vpow.pop %v2677
      %v2679 = vadd.f32 %v2552, 1.0
      %v2680 = vadd.f32 %v2554, 1.0
      %v2681 = vadd.f32 %v2556, 1.0
      %v2682 = vadd.f32 %v2558, 1.0
      %v2683 = vadd.f32 %v2560, 1.0
      %v2684 = vadd.f32 %v2562, 1.0
      %v2685 = vadd.f32 %v2564, 1.0
      %v2686 = vadd.f32 %v2566, 1.0
      %v2687 = vadd.f32 %v2568, 1.0
      %v2688 = vadd.f32 %v2570, 1.0
      %v2689 = vadd.f32 %v2572, 1.0
      %v2690 = vadd.f32 %v2574, 1.0
      %v2691 = vadd.f32 %v2576, 1.0
      %v2692 = vadd.f32 %v2578, 1.0
      %v2693 = vadd.f32 %v2580, 1.0
      %v2694 = vadd.f32 %v2582, 1.0
      %v2695 = vadd.f32 %v2584, 1.0
      %v2696 = vadd.f32 %v2586, 1.0
      %v2697 = vadd.f32 %v2588, 1.0
      %v2698 = vadd.f32 %v2590, 1.0
      %v2699 = vadd.f32 %v2592, 1.0
      %v2700 = vadd.f32 %v2594, 1.0
      %v2701 = vadd.f32 %v2596, 1.0
      %v2702 = vadd.f32 %v2598, 1.0
      %v2703 = vadd.f32 %v2600, 1.0
      %v2704 = vadd.f32 %v2602, 1.0
      %v2705 = vadd.f32 %v2604, 1.0
      %v2706 = vadd.f32 %v2606, 1.0
      %v2707 = vadd.f32 %v2608, 1.0
      %v2708 = vadd.f32 %v2610, 1.0
      %v2709 = vadd.f32 %v2612, 1.0
      %v2710 = vadd.f32 %v2614, 1.0
      %v2711 = vadd.f32 %v2616, 1.0
      %v2712 = vadd.f32 %v2618, 1.0
      %v2713 = vadd.f32 %v2620, 1.0
      %v2714 = vadd.f32 %v2622, 1.0
      %v2715 = vadd.f32 %v2624, 1.0
      %v2716 = vadd.f32 %v2626, 1.0
      %v2717 = vadd.f32 %v2628, 1.0
      %v2718 = vadd.f32 %v2630, 1.0
      %v2719 = vadd.f32 %v2632, 1.0
      %v2720 = vadd.f32 %v2634, 1.0
      %v2721 = vadd.f32 %v2636, 1.0
      %v2722 = vadd.f32 %v2638, 1.0
      %v2723 = vadd.f32 %v2640, 1.0
      %v2724 = vadd.f32 %v2642, 1.0
      %v2725 = vadd.f32 %v2644, 1.0
      %v2726 = vadd.f32 %v2646, 1.0
      %v2727 = vadd.f32 %v2648, 1.0
      %v2728 = vadd.f32 %v2650, 1.0
      %v2729 = vadd.f32 %v2652, 1.0
      %v2730 = vadd.f32 %v2654, 1.0
      %v2731 = vadd.f32 %v2656, 1.0
      %v2732 = vadd.f32 %v2658, 1.0
      %v2733 = vadd.f32 %v2660, 1.0
      %v2734 = vadd.f32 %v2662, 1.0
      %v2735 = vadd.f32 %v2664, 1.0
      %v2736 = vadd.f32 %v2666, 1.0
      %v2737 = vadd.f32 %v2668, 1.0
      %v2738 = vadd.f32 %v2670, 1.0
      %v2739 = vadd.f32 %v2672, 1.0
      %v2740 = vadd.f32 %v2674, 1.0
      %v2741 = vadd.f32 %v2676, 1.0
      %v2742 = vadd.f32 %v2678, 1.0
      %v2743 = vrcp.pop %v2679
      %v2744 = vrcp.pop %v2680
      %v2745 = vrcp.pop %v2681
      %v2746 = vrcp.pop %v2682
      %v2747 = vrcp.pop %v2683
      %v2748 = vrcp.pop %v2684
      %v2749 = vrcp.pop %v2685
      %v2750 = vrcp.pop %v2686
      %v2751 = vrcp.pop %v2687
      %v2752 = vrcp.pop %v2688
      %v2753 = vrcp.pop %v2689
      %v2754 = vrcp.pop %v2690
      %v2755 = vrcp.pop %v2691
      %v2756 = vrcp.pop %v2692
      %v2757 = vrcp.pop %v2693
      %v2758 = vrcp.pop %v2694
      %v2759 = vrcp.pop %v2695
      %v2760 = vrcp.pop %v2696
      %v2761 = vrcp.pop %v2697
      %v2762 = vrcp.pop %v2698
      %v2763 = vrcp.pop %v2699
      %v2764 = vrcp.pop %v2700
      %v2765 = vrcp.pop %v2701
      %v2766 = vrcp.pop %v2702
      %v2767 = vrcp.pop %v2703
      %v2768 = vrcp.pop %v2704
      %v2769 = vrcp.pop %v2705
      %v2770 = vrcp.pop %v2706
      %v2771 = vrcp.pop %v2707
      %v2772 = vrcp.pop %v2708
      %v2773 = vrcp.pop %v2709
      %v2774 = vrcp.pop %v2710
      %v2775 = vrcp.pop %v2711
      %v2776 = vrcp.pop %v2712
      %v2777 = vrcp.pop %v2713
      %v2778 = vrcp.pop %v2714
      %v2779 = vrcp.pop %v2715
      %v2780 = vrcp.pop %v2716
      %v2781 = vrcp.pop %v2717
      %v2782 = vrcp.pop %v2718
      %v2783 = vrcp.pop %v2719
      %v2784 = vrcp.pop %v2720
      %v2785 = vrcp.pop %v2721
      %v2786 = vrcp.pop %v2722
      %v2787 = vrcp.pop %v2723
      %v2788 = vrcp.pop %v2724
      %v2789 = vrcp.pop %v2725
      %v2790 = vrcp.pop %v2726
      %v2791 = vrcp.pop %v2727
      %v2792 = vrcp.pop %v2728
      %v2793 = vrcp.pop %v2729
      %v2794 = vrcp.pop %v2730
      %v2795 = vrcp.pop %v2731
      %v2796 = vrcp.pop %v2732
      %v2797 = vrcp.pop %v2733
      %v2798 = vrcp.pop %v2734
      %v2799 = vrcp.pop %v2735
      %v2800 = vrcp.pop %v2736
      %v2801 = vrcp.pop %v2737
      %v2802 = vrcp.pop %v2738
      %v2803 = vrcp.pop %v2739
      %v2804 = vrcp.pop %v2740
      %v2805 = vrcp.pop %v2741
      %v2806 = vrcp.pop %v2742
      %v2807 = vmul.f32 %v1769, %v2743
      %v2808 = vmul.f32 %v1792, %v2744
      %v2809 = vmul.f32 %v1815, %v2745
      %v2810 = vmul.f32 %v1838, %v2746
      %v2811 = vmul.f32 %v1861, %v2747
      %v2812 = vmul.f32 %v1884, %v2748
      %v2813 = vmul.f32 %v1907, %v2749
      %v2814 = vmul.f32 %v1930, %v2750
      %v2815 = vmul.f32 %v1953, %v2751
      %v2816 = vmul.f32 %v1976, %v2752
      %v2817 = vmul.f32 %v1999, %v2753
      %v2818 = vmul.f32 %v2022, %v2754
      %v2819 = vmul.f32 %v2045, %v2755
      %v2820 = vmul.f32 %v2068, %v2756
      %v2821 = vmul.f32 %v2091, %v2757
      %v2822 = vmul.f32 %v2114, %v2758
      %v2823 = vmul.f32 %v2137, %v2759
      %v2824 = vmul.f32 %v2160, %v2760
      %v2825 = vmul.f32 %v2183, %v2761
      %v2826 = vmul.f32 %v2206, %v2762
      %v2827 = vmul.f32 %v2229, %v2763
      %v2828 = vmul.f32 %v2252, %v2764
      %v2829 = vmul.f32 %v2275, %v2765
      %v2830 = vmul.f32 %v2298, %v2766
      %v2831 = vmul.f32 %v2321, %v2767
      %v2832 = vmul.f32 %v2344, %v2768
      %v2833 = vmul.f32 %v2367, %v2769
      %v2834 = vmul.f32 %v2390, %v2770
      %v2835 = vmul.f32 %v2413, %v2771
      %v2836 = vmul.f32 %v2436, %v2772
      %v2837 = vmul.f32 %v2459, %v2773
      %v2838 = vmul.f32 %v2482, %v2774
      %v2839 = vmul.f32 %v1772, %v2775
      %v2840 = vmul.f32 %v1795, %v2776
      %v2841 = vmul.f32 %v1818, %v2777
      %v2842 = vmul.f32 %v1841, %v2778
      %v2843 = vmul.f32 %v1864, %v2779
      %v2844 = vmul.f32 %v1887, %v2780
      %v2845 = vmul.f32 %v1910, %v2781
      %v2846 = vmul.f32 %v1933, %v2782
      %v2847 = vmul.f32 %v1956, %v2783
      %v2848 = vmul.f32 %v1979, %v2784
      %v2849 = vmul.f32 %v2002, %v2785
      %v2850 = vmul.f32 %v2025, %v2786
      %v2851 = vmul.f32 %v2048, %v2787
      %v2852 = vmul.f32 %v2071, %v2788
      %v2853 = vmul.f32 %v2094, %v2789
      %v2854 = vmul.f32 %v2117, %v2790
      %v2855 = vmul.f32 %v2140, %v2791
      %v2856 = vmul.f32 %v2163, %v2792
      %v2857 = vmul.f32 %v2186, %v2793
      %v2858 = vmul.f32 %v2209, %v2794
      %v2859 = vmul.f32 %v2232, %v2795
      %v2860 = vmul.f32 %v2255, %v2796
      %v2861 = vmul.f32 %v2278, %v2797
      %v2862 = vmul.f32 %v2301, %v2798
      %v2863 = vmul.f32 %v2324, %v2799
      %v2864 = vmul.f32 %v2347, %v2800
      %v2865 = vmul.f32 %v2370, %v2801
      %v2866 = vmul.f32 %v2393, %v2802
      %v2867 = vmul.f32 %v2416, %v2803
      %v2868 = vmul.f32 %v2439, %v2804
      %v2869 = vmul.f32 %v2462, %v2805
      %v2870 = vmul.f32 %v2485, %v2806
      %v2871 = vld [vmem:[%s6] sm:$0x7]
      %v2872 = vld [vmem:[%s7] sm:$0x7]
      %v2874 = vsel %vm604, %v2872, 0
      %2876 = vmatpush.msra.mxu0 0.0
      %2877 = vmatpush.msra.mxu0 0.0
      %2878 = vmatpush.msra.mxu0 0.0
      %2879 = vmatpush.msra.mxu0 0.0
      %2880 = vmatpush.msra.mxu0 0.0
      %2881 = vmatpush.msra.mxu0 0.0
      %2882 = vmatpush.msra.mxu0 0.0
      %2883 = vmatpush.msra.mxu0 0.0
      %2884 = vmatpush.msra.mxu0 0.0
      %2885 = vmatpush.msra.mxu0 0.0
      %2886 = vmatpush.msra.mxu0 0.0
      %2887 = vmatpush.msra.mxu0 0.0
      %2888 = vmatpush.msra.mxu0 0.0
      %2889 = vmatpush.msra.mxu0 0.0
      %2890 = vmatpush.msra.mxu0 %v2839
      %2891 = vmatpush.msra.mxu0 %v2807
      %2892 = vmatmul.f32.gmra.mxu0 %v2874
      %v2893 = vpop.f32.mrf.mxu0
      %v2894 = vadd.f32 0.0, %v2893
      %2895 = vdwg.mxu0
      %2896 = vmatpush.msra.mxu0 0.0
      %2897 = vmatpush.msra.mxu0 0.0
      %2898 = vmatpush.msra.mxu0 0.0
      %2899 = vmatpush.msra.mxu0 0.0
      %2900 = vmatpush.msra.mxu0 0.0
      %2901 = vmatpush.msra.mxu0 0.0
      %2902 = vmatpush.msra.mxu0 0.0
      %2903 = vmatpush.msra.mxu0 0.0
      %2904 = vmatpush.msra.mxu0 0.0
      %2905 = vmatpush.msra.mxu0 0.0
      %2906 = vmatpush.msra.mxu0 0.0
      %2907 = vmatpush.msra.mxu0 0.0
      %2908 = vmatpush.msra.mxu0 0.0
      %2909 = vmatpush.msra.mxu0 0.0
      %2910 = vmatpush.msra.mxu0 %v2840
      %2911 = vmatpush.msra.mxu0 %v2808
      %2912 = vmatmul.f32.gmra.mxu0 %v2874
      %v2913 = vpop.f32.mrf.mxu0
      %v2914 = vadd.f32 0.0, %v2913
      %2915 = vdwg.mxu0
      %2916 = vmatpush.msra.mxu0 0.0
      %2917 = vmatpush.msra.mxu0 0.0
      %2918 = vmatpush.msra.mxu0 0.0
      %2919 = vmatpush.msra.mxu0 0.0
      %2920 = vmatpush.msra.mxu0 0.0
      %2921 = vmatpush.msra.mxu0 0.0
      %2922 = vmatpush.msra.mxu0 0.0
      %2923 = vmatpush.msra.mxu0 0.0
      %2924 = vmatpush.msra.mxu0 0.0
      %2925 = vmatpush.msra.mxu0 0.0
      %2926 = vmatpush.msra.mxu0 0.0
      %2927 = vmatpush.msra.mxu0 0.0
      %2928 = vmatpush.msra.mxu0 0.0
      %2929 = vmatpush.msra.mxu0 0.0
      %2930 = vmatpush.msra.mxu0 %v2841
      %2931 = vmatpush.msra.mxu0 %v2809
      %2932 = vmatmul.f32.gmra.mxu0 %v2874
      %v2933 = vpop.f32.mrf.mxu0
      %v2934 = vadd.f32 0.0, %v2933
      %2935 = vdwg.mxu0
      %2936 = vmatpush.msra.mxu0 0.0
      %2937 = vmatpush.msra.mxu0 0.0
      %2938 = vmatpush.msra.mxu0 0.0
      %2939 = vmatpush.msra.mxu0 0.0
      %2940 = vmatpush.msra.mxu0 0.0
      %2941 = vmatpush.msra.mxu0 0.0
      %2942 = vmatpush.msra.mxu0 0.0
      %2943 = vmatpush.msra.mxu0 0.0
      %2944 = vmatpush.msra.mxu0 0.0
      %2945 = vmatpush.msra.mxu0 0.0
      %2946 = vmatpush.msra.mxu0 0.0
      %2947 = vmatpush.msra.mxu0 0.0
      %2948 = vmatpush.msra.mxu0 0.0
      %2949 = vmatpush.msra.mxu0 0.0
      %2950 = vmatpush.msra.mxu0 %v2842
      %2951 = vmatpush.msra.mxu0 %v2810
      %2952 = vmatmul.f32.gmra.mxu0 %v2874
      %v2953 = vpop.f32.mrf.mxu0
      %v2954 = vadd.f32 0.0, %v2953
      %2955 = vdwg.mxu0
      %2956 = vmatpush.msra.mxu0 0.0
      %2957 = vmatpush.msra.mxu0 0.0
      %2958 = vmatpush.msra.mxu0 0.0
      %2959 = vmatpush.msra.mxu0 0.0
      %2960 = vmatpush.msra.mxu0 0.0
      %2961 = vmatpush.msra.mxu0 0.0
      %2962 = vmatpush.msra.mxu0 0.0
      %2963 = vmatpush.msra.mxu0 0.0
      %2964 = vmatpush.msra.mxu0 0.0
      %2965 = vmatpush.msra.mxu0 0.0
      %2966 = vmatpush.msra.mxu0 0.0
      %2967 = vmatpush.msra.mxu0 0.0
      %2968 = vmatpush.msra.mxu0 0.0
      %2969 = vmatpush.msra.mxu0 0.0
      %2970 = vmatpush.msra.mxu0 %v2843
      %2971 = vmatpush.msra.mxu0 %v2811
      %2972 = vmatmul.f32.gmra.mxu0 %v2874
      %v2973 = vpop.f32.mrf.mxu0
      %v2974 = vadd.f32 0.0, %v2973
      %2975 = vdwg.mxu0
      %2976 = vmatpush.msra.mxu0 0.0
      %2977 = vmatpush.msra.mxu0 0.0
      %2978 = vmatpush.msra.mxu0 0.0
      %2979 = vmatpush.msra.mxu0 0.0
      %2980 = vmatpush.msra.mxu0 0.0
      %2981 = vmatpush.msra.mxu0 0.0
      %2982 = vmatpush.msra.mxu0 0.0
      %2983 = vmatpush.msra.mxu0 0.0
      %2984 = vmatpush.msra.mxu0 0.0
      %2985 = vmatpush.msra.mxu0 0.0
      %2986 = vmatpush.msra.mxu0 0.0
      %2987 = vmatpush.msra.mxu0 0.0
      %2988 = vmatpush.msra.mxu0 0.0
      %2989 = vmatpush.msra.mxu0 0.0
      %2990 = vmatpush.msra.mxu0 %v2844
      %2991 = vmatpush.msra.mxu0 %v2812
      %2992 = vmatmul.f32.gmra.mxu0 %v2874
      %v2993 = vpop.f32.mrf.mxu0
      %v2994 = vadd.f32 0.0, %v2993
      %2995 = vdwg.mxu0
      %2996 = vmatpush.msra.mxu0 0.0
      %2997 = vmatpush.msra.mxu0 0.0
      %2998 = vmatpush.msra.mxu0 0.0
      %2999 = vmatpush.msra.mxu0 0.0
      %3000 = vmatpush.msra.mxu0 0.0
      %3001 = vmatpush.msra.mxu0 0.0
      %3002 = vmatpush.msra.mxu0 0.0
      %3003 = vmatpush.msra.mxu0 0.0
      %3004 = vmatpush.msra.mxu0 0.0
      %3005 = vmatpush.msra.mxu0 0.0
      %3006 = vmatpush.msra.mxu0 0.0
      %3007 = vmatpush.msra.mxu0 0.0
      %3008 = vmatpush.msra.mxu0 0.0
      %3009 = vmatpush.msra.mxu0 0.0
      %3010 = vmatpush.msra.mxu0 %v2845
      %3011 = vmatpush.msra.mxu0 %v2813
      %3012 = vmatmul.f32.gmra.mxu0 %v2874
      %v3013 = vpop.f32.mrf.mxu0
      %v3014 = vadd.f32 0.0, %v3013
      %3015 = vdwg.mxu0
      %3016 = vmatpush.msra.mxu0 0.0
      %3017 = vmatpush.msra.mxu0 0.0
      %3018 = vmatpush.msra.mxu0 0.0
      %3019 = vmatpush.msra.mxu0 0.0
      %3020 = vmatpush.msra.mxu0 0.0
      %3021 = vmatpush.msra.mxu0 0.0
      %3022 = vmatpush.msra.mxu0 0.0
      %3023 = vmatpush.msra.mxu0 0.0
      %3024 = vmatpush.msra.mxu0 0.0
      %3025 = vmatpush.msra.mxu0 0.0
      %3026 = vmatpush.msra.mxu0 0.0
      %3027 = vmatpush.msra.mxu0 0.0
      %3028 = vmatpush.msra.mxu0 0.0
      %3029 = vmatpush.msra.mxu0 0.0
      %3030 = vmatpush.msra.mxu0 %v2846
      %3031 = vmatpush.msra.mxu0 %v2814
      %3032 = vmatmul.f32.gmra.mxu0 %v2874
      %v3033 = vpop.f32.mrf.mxu0
      %v3034 = vadd.f32 0.0, %v3033
      %3035 = vdwg.mxu0
      %3036 = vmatpush.msra.mxu0 0.0
      %3037 = vmatpush.msra.mxu0 0.0
      %3038 = vmatpush.msra.mxu0 0.0
      %3039 = vmatpush.msra.mxu0 0.0
      %3040 = vmatpush.msra.mxu0 0.0
      %3041 = vmatpush.msra.mxu0 0.0
      %3042 = vmatpush.msra.mxu0 0.0
      %3043 = vmatpush.msra.mxu0 0.0
      %3044 = vmatpush.msra.mxu0 0.0
      %3045 = vmatpush.msra.mxu0 0.0
      %3046 = vmatpush.msra.mxu0 0.0
      %3047 = vmatpush.msra.mxu0 0.0
      %3048 = vmatpush.msra.mxu0 0.0
      %3049 = vmatpush.msra.mxu0 0.0
      %3050 = vmatpush.msra.mxu0 %v2847
      %3051 = vmatpush.msra.mxu0 %v2815
      %3052 = vmatmul.f32.gmra.mxu0 %v2874
      %v3053 = vpop.f32.mrf.mxu0
      %v3054 = vadd.f32 0.0, %v3053
      %3055 = vdwg.mxu0
      %3056 = vmatpush.msra.mxu0 0.0
      %3057 = vmatpush.msra.mxu0 0.0
      %3058 = vmatpush.msra.mxu0 0.0
      %3059 = vmatpush.msra.mxu0 0.0
      %3060 = vmatpush.msra.mxu0 0.0
      %3061 = vmatpush.msra.mxu0 0.0
      %3062 = vmatpush.msra.mxu0 0.0
      %3063 = vmatpush.msra.mxu0 0.0
      %3064 = vmatpush.msra.mxu0 0.0
      %3065 = vmatpush.msra.mxu0 0.0
      %3066 = vmatpush.msra.mxu0 0.0
      %3067 = vmatpush.msra.mxu0 0.0
      %3068 = vmatpush.msra.mxu0 0.0
      %3069 = vmatpush.msra.mxu0 0.0
      %3070 = vmatpush.msra.mxu0 %v2848
      %3071 = vmatpush.msra.mxu0 %v2816
      %3072 = vmatmul.f32.gmra.mxu0 %v2874
      %v3073 = vpop.f32.mrf.mxu0
      %v3074 = vadd.f32 0.0, %v3073
      %3075 = vdwg.mxu0
      %3076 = vmatpush.msra.mxu0 0.0
      %3077 = vmatpush.msra.mxu0 0.0
      %3078 = vmatpush.msra.mxu0 0.0
      %3079 = vmatpush.msra.mxu0 0.0
      %3080 = vmatpush.msra.mxu0 0.0
      %3081 = vmatpush.msra.mxu0 0.0
      %3082 = vmatpush.msra.mxu0 0.0
      %3083 = vmatpush.msra.mxu0 0.0
      %3084 = vmatpush.msra.mxu0 0.0
      %3085 = vmatpush.msra.mxu0 0.0
      %3086 = vmatpush.msra.mxu0 0.0
      %3087 = vmatpush.msra.mxu0 0.0
      %3088 = vmatpush.msra.mxu0 0.0
      %3089 = vmatpush.msra.mxu0 0.0
      %3090 = vmatpush.msra.mxu0 %v2849
      %3091 = vmatpush.msra.mxu0 %v2817
      %3092 = vmatmul.f32.gmra.mxu0 %v2874
      %v3093 = vpop.f32.mrf.mxu0
      %v3094 = vadd.f32 0.0, %v3093
      %3095 = vdwg.mxu0
      %3096 = vmatpush.msra.mxu0 0.0
      %3097 = vmatpush.msra.mxu0 0.0
      %3098 = vmatpush.msra.mxu0 0.0
      %3099 = vmatpush.msra.mxu0 0.0
      %3100 = vmatpush.msra.mxu0 0.0
      %3101 = vmatpush.msra.mxu0 0.0
      %3102 = vmatpush.msra.mxu0 0.0
      %3103 = vmatpush.msra.mxu0 0.0
      %3104 = vmatpush.msra.mxu0 0.0
      %3105 = vmatpush.msra.mxu0 0.0
      %3106 = vmatpush.msra.mxu0 0.0
      %3107 = vmatpush.msra.mxu0 0.0
      %3108 = vmatpush.msra.mxu0 0.0
      %3109 = vmatpush.msra.mxu0 0.0
      %3110 = vmatpush.msra.mxu0 %v2850
      %3111 = vmatpush.msra.mxu0 %v2818
      %3112 = vmatmul.f32.gmra.mxu0 %v2874
      %v3113 = vpop.f32.mrf.mxu0
      %v3114 = vadd.f32 0.0, %v3113
      %3115 = vdwg.mxu0
      %3116 = vmatpush.msra.mxu0 0.0
      %3117 = vmatpush.msra.mxu0 0.0
      %3118 = vmatpush.msra.mxu0 0.0
      %3119 = vmatpush.msra.mxu0 0.0
      %3120 = vmatpush.msra.mxu0 0.0
      %3121 = vmatpush.msra.mxu0 0.0
      %3122 = vmatpush.msra.mxu0 0.0
      %3123 = vmatpush.msra.mxu0 0.0
      %3124 = vmatpush.msra.mxu0 0.0
      %3125 = vmatpush.msra.mxu0 0.0
      %3126 = vmatpush.msra.mxu0 0.0
      %3127 = vmatpush.msra.mxu0 0.0
      %3128 = vmatpush.msra.mxu0 0.0
      %3129 = vmatpush.msra.mxu0 0.0
      %3130 = vmatpush.msra.mxu0 %v2851
      %3131 = vmatpush.msra.mxu0 %v2819
      %3132 = vmatmul.f32.gmra.mxu0 %v2874
      %v3133 = vpop.f32.mrf.mxu0
      %v3134 = vadd.f32 0.0, %v3133
      %3135 = vdwg.mxu0
      %3136 = vmatpush.msra.mxu0 0.0
      %3137 = vmatpush.msra.mxu0 0.0
      %3138 = vmatpush.msra.mxu0 0.0
      %3139 = vmatpush.msra.mxu0 0.0
      %3140 = vmatpush.msra.mxu0 0.0
      %3141 = vmatpush.msra.mxu0 0.0
      %3142 = vmatpush.msra.mxu0 0.0
      %3143 = vmatpush.msra.mxu0 0.0
      %3144 = vmatpush.msra.mxu0 0.0
      %3145 = vmatpush.msra.mxu0 0.0
      %3146 = vmatpush.msra.mxu0 0.0
      %3147 = vmatpush.msra.mxu0 0.0
      %3148 = vmatpush.msra.mxu0 0.0
      %3149 = vmatpush.msra.mxu0 0.0
      %3150 = vmatpush.msra.mxu0 %v2852
      %3151 = vmatpush.msra.mxu0 %v2820
      %3152 = vmatmul.f32.gmra.mxu0 %v2874
      %v3153 = vpop.f32.mrf.mxu0
      %v3154 = vadd.f32 0.0, %v3153
      %3155 = vdwg.mxu0
      %3156 = vmatpush.msra.mxu0 0.0
      %3157 = vmatpush.msra.mxu0 0.0
      %3158 = vmatpush.msra.mxu0 0.0
      %3159 = vmatpush.msra.mxu0 0.0
      %3160 = vmatpush.msra.mxu0 0.0
      %3161 = vmatpush.msra.mxu0 0.0
      %3162 = vmatpush.msra.mxu0 0.0
      %3163 = vmatpush.msra.mxu0 0.0
      %3164 = vmatpush.msra.mxu0 0.0
      %3165 = vmatpush.msra.mxu0 0.0
      %3166 = vmatpush.msra.mxu0 0.0
      %3167 = vmatpush.msra.mxu0 0.0
      %3168 = vmatpush.msra.mxu0 0.0
      %3169 = vmatpush.msra.mxu0 0.0
      %3170 = vmatpush.msra.mxu0 %v2853
      %3171 = vmatpush.msra.mxu0 %v2821
      %3172 = vmatmul.f32.gmra.mxu0 %v2874
      %v3173 = vpop.f32.mrf.mxu0
      %v3174 = vadd.f32 0.0, %v3173
      %3175 = vdwg.mxu0
      %3176 = vmatpush.msra.mxu0 0.0
      %3177 = vmatpush.msra.mxu0 0.0
      %3178 = vmatpush.msra.mxu0 0.0
      %3179 = vmatpush.msra.mxu0 0.0
      %3180 = vmatpush.msra.mxu0 0.0
      %3181 = vmatpush.msra.mxu0 0.0
      %3182 = vmatpush.msra.mxu0 0.0
      %3183 = vmatpush.msra.mxu0 0.0
      %3184 = vmatpush.msra.mxu0 0.0
      %3185 = vmatpush.msra.mxu0 0.0
      %3186 = vmatpush.msra.mxu0 0.0
      %3187 = vmatpush.msra.mxu0 0.0
      %3188 = vmatpush.msra.mxu0 0.0
      %3189 = vmatpush.msra.mxu0 0.0
      %3190 = vmatpush.msra.mxu0 %v2854
      %3191 = vmatpush.msra.mxu0 %v2822
      %3192 = vmatmul.f32.gmra.mxu0 %v2874
      %v3193 = vpop.f32.mrf.mxu0
      %v3194 = vadd.f32 0.0, %v3193
      %3195 = vdwg.mxu0
      %3196 = vmatpush.msra.mxu0 0.0
      %3197 = vmatpush.msra.mxu0 0.0
      %3198 = vmatpush.msra.mxu0 0.0
      %3199 = vmatpush.msra.mxu0 0.0
      %3200 = vmatpush.msra.mxu0 0.0
      %3201 = vmatpush.msra.mxu0 0.0
      %3202 = vmatpush.msra.mxu0 0.0
      %3203 = vmatpush.msra.mxu0 0.0
      %3204 = vmatpush.msra.mxu0 0.0
      %3205 = vmatpush.msra.mxu0 0.0
      %3206 = vmatpush.msra.mxu0 0.0
      %3207 = vmatpush.msra.mxu0 0.0
      %3208 = vmatpush.msra.mxu0 0.0
      %3209 = vmatpush.msra.mxu0 0.0
      %3210 = vmatpush.msra.mxu0 %v2855
      %3211 = vmatpush.msra.mxu0 %v2823
      %3212 = vmatmul.f32.gmra.mxu0 %v2874
      %v3213 = vpop.f32.mrf.mxu0
      %v3214 = vadd.f32 0.0, %v3213
      %3215 = vdwg.mxu0
      %3216 = vmatpush.msra.mxu0 0.0
      %3217 = vmatpush.msra.mxu0 0.0
      %3218 = vmatpush.msra.mxu0 0.0
      %3219 = vmatpush.msra.mxu0 0.0
      %3220 = vmatpush.msra.mxu0 0.0
      %3221 = vmatpush.msra.mxu0 0.0
      %3222 = vmatpush.msra.mxu0 0.0
      %3223 = vmatpush.msra.mxu0 0.0
      %3224 = vmatpush.msra.mxu0 0.0
      %3225 = vmatpush.msra.mxu0 0.0
      %3226 = vmatpush.msra.mxu0 0.0
      %3227 = vmatpush.msra.mxu0 0.0
      %3228 = vmatpush.msra.mxu0 0.0
      %3229 = vmatpush.msra.mxu0 0.0
      %3230 = vmatpush.msra.mxu0 %v2856
      %3231 = vmatpush.msra.mxu0 %v2824
      %3232 = vmatmul.f32.gmra.mxu0 %v2874
      %v3233 = vpop.f32.mrf.mxu0
      %v3234 = vadd.f32 0.0, %v3233
      %3235 = vdwg.mxu0
      %3236 = vmatpush.msra.mxu0 0.0
      %3237 = vmatpush.msra.mxu0 0.0
      %3238 = vmatpush.msra.mxu0 0.0
      %3239 = vmatpush.msra.mxu0 0.0
      %3240 = vmatpush.msra.mxu0 0.0
      %3241 = vmatpush.msra.mxu0 0.0
      %3242 = vmatpush.msra.mxu0 0.0
      %3243 = vmatpush.msra.mxu0 0.0
      %3244 = vmatpush.msra.mxu0 0.0
      %3245 = vmatpush.msra.mxu0 0.0
      %3246 = vmatpush.msra.mxu0 0.0
      %3247 = vmatpush.msra.mxu0 0.0
      %3248 = vmatpush.msra.mxu0 0.0
      %3249 = vmatpush.msra.mxu0 0.0
      %3250 = vmatpush.msra.mxu0 %v2857
      %3251 = vmatpush.msra.mxu0 %v2825
      %3252 = vmatmul.f32.gmra.mxu0 %v2874
      %v3253 = vpop.f32.mrf.mxu0
      %v3254 = vadd.f32 0.0, %v3253
      %3255 = vdwg.mxu0
      %3256 = vmatpush.msra.mxu0 0.0
      %3257 = vmatpush.msra.mxu0 0.0
      %3258 = vmatpush.msra.mxu0 0.0
      %3259 = vmatpush.msra.mxu0 0.0
      %3260 = vmatpush.msra.mxu0 0.0
      %3261 = vmatpush.msra.mxu0 0.0
      %3262 = vmatpush.msra.mxu0 0.0
      %3263 = vmatpush.msra.mxu0 0.0
      %3264 = vmatpush.msra.mxu0 0.0
      %3265 = vmatpush.msra.mxu0 0.0
      %3266 = vmatpush.msra.mxu0 0.0
      %3267 = vmatpush.msra.mxu0 0.0
      %3268 = vmatpush.msra.mxu0 0.0
      %3269 = vmatpush.msra.mxu0 0.0
      %3270 = vmatpush.msra.mxu0 %v2858
      %3271 = vmatpush.msra.mxu0 %v2826
      %3272 = vmatmul.f32.gmra.mxu0 %v2874
      %v3273 = vpop.f32.mrf.mxu0
      %v3274 = vadd.f32 0.0, %v3273
      %3275 = vdwg.mxu0
      %3276 = vmatpush.msra.mxu0 0.0
      %3277 = vmatpush.msra.mxu0 0.0
      %3278 = vmatpush.msra.mxu0 0.0
      %3279 = vmatpush.msra.mxu0 0.0
      %3280 = vmatpush.msra.mxu0 0.0
      %3281 = vmatpush.msra.mxu0 0.0
      %3282 = vmatpush.msra.mxu0 0.0
      %3283 = vmatpush.msra.mxu0 0.0
      %3284 = vmatpush.msra.mxu0 0.0
      %3285 = vmatpush.msra.mxu0 0.0
      %3286 = vmatpush.msra.mxu0 0.0
      %3287 = vmatpush.msra.mxu0 0.0
      %3288 = vmatpush.msra.mxu0 0.0
      %3289 = vmatpush.msra.mxu0 0.0
      %3290 = vmatpush.msra.mxu0 %v2859
      %3291 = vmatpush.msra.mxu0 %v2827
      %3292 = vmatmul.f32.gmra.mxu0 %v2874
      %v3293 = vpop.f32.mrf.mxu0
      %v3294 = vadd.f32 0.0, %v3293
      %3295 = vdwg.mxu0
      %3296 = vmatpush.msra.mxu0 0.0
      %3297 = vmatpush.msra.mxu0 0.0
      %3298 = vmatpush.msra.mxu0 0.0
      %3299 = vmatpush.msra.mxu0 0.0
      %3300 = vmatpush.msra.mxu0 0.0
      %3301 = vmatpush.msra.mxu0 0.0
      %3302 = vmatpush.msra.mxu0 0.0
      %3303 = vmatpush.msra.mxu0 0.0
      %3304 = vmatpush.msra.mxu0 0.0
      %3305 = vmatpush.msra.mxu0 0.0
      %3306 = vmatpush.msra.mxu0 0.0
      %3307 = vmatpush.msra.mxu0 0.0
      %3308 = vmatpush.msra.mxu0 0.0
      %3309 = vmatpush.msra.mxu0 0.0
      %3310 = vmatpush.msra.mxu0 %v2860
      %3311 = vmatpush.msra.mxu0 %v2828
      %3312 = vmatmul.f32.gmra.mxu0 %v2874
      %v3313 = vpop.f32.mrf.mxu0
      %v3314 = vadd.f32 0.0, %v3313
      %3315 = vdwg.mxu0
      %3316 = vmatpush.msra.mxu0 0.0
      %3317 = vmatpush.msra.mxu0 0.0
      %3318 = vmatpush.msra.mxu0 0.0
      %3319 = vmatpush.msra.mxu0 0.0
      %3320 = vmatpush.msra.mxu0 0.0
      %3321 = vmatpush.msra.mxu0 0.0
      %3322 = vmatpush.msra.mxu0 0.0
      %3323 = vmatpush.msra.mxu0 0.0
      %3324 = vmatpush.msra.mxu0 0.0
      %3325 = vmatpush.msra.mxu0 0.0
      %3326 = vmatpush.msra.mxu0 0.0
      %3327 = vmatpush.msra.mxu0 0.0
      %3328 = vmatpush.msra.mxu0 0.0
      %3329 = vmatpush.msra.mxu0 0.0
      %3330 = vmatpush.msra.mxu0 %v2861
      %3331 = vmatpush.msra.mxu0 %v2829
      %3332 = vmatmul.f32.gmra.mxu0 %v2874
      %v3333 = vpop.f32.mrf.mxu0
      %v3334 = vadd.f32 0.0, %v3333
      %3335 = vdwg.mxu0
      %3336 = vmatpush.msra.mxu0 0.0
      %3337 = vmatpush.msra.mxu0 0.0
      %3338 = vmatpush.msra.mxu0 0.0
      %3339 = vmatpush.msra.mxu0 0.0
      %3340 = vmatpush.msra.mxu0 0.0
      %3341 = vmatpush.msra.mxu0 0.0
      %3342 = vmatpush.msra.mxu0 0.0
      %3343 = vmatpush.msra.mxu0 0.0
      %3344 = vmatpush.msra.mxu0 0.0
      %3345 = vmatpush.msra.mxu0 0.0
      %3346 = vmatpush.msra.mxu0 0.0
      %3347 = vmatpush.msra.mxu0 0.0
      %3348 = vmatpush.msra.mxu0 0.0
      %3349 = vmatpush.msra.mxu0 0.0
      %3350 = vmatpush.msra.mxu0 %v2862
      %3351 = vmatpush.msra.mxu0 %v2830
      %3352 = vmatmul.f32.gmra.mxu0 %v2874
      %v3353 = vpop.f32.mrf.mxu0
      %v3354 = vadd.f32 0.0, %v3353
      %3355 = vdwg.mxu0
      %3356 = vmatpush.msra.mxu0 0.0
      %3357 = vmatpush.msra.mxu0 0.0
      %3358 = vmatpush.msra.mxu0 0.0
      %3359 = vmatpush.msra.mxu0 0.0
      %3360 = vmatpush.msra.mxu0 0.0
      %3361 = vmatpush.msra.mxu0 0.0
      %3362 = vmatpush.msra.mxu0 0.0
      %3363 = vmatpush.msra.mxu0 0.0
      %3364 = vmatpush.msra.mxu0 0.0
      %3365 = vmatpush.msra.mxu0 0.0
      %3366 = vmatpush.msra.mxu0 0.0
      %3367 = vmatpush.msra.mxu0 0.0
      %3368 = vmatpush.msra.mxu0 0.0
      %3369 = vmatpush.msra.mxu0 0.0
      %3370 = vmatpush.msra.mxu0 %v2863
      %3371 = vmatpush.msra.mxu0 %v2831
      %3372 = vmatmul.f32.gmra.mxu0 %v2874
      %v3373 = vpop.f32.mrf.mxu0
      %v3374 = vadd.f32 0.0, %v3373
      %3375 = vdwg.mxu0
      %3376 = vmatpush.msra.mxu0 0.0
      %3377 = vmatpush.msra.mxu0 0.0
      %3378 = vmatpush.msra.mxu0 0.0
      %3379 = vmatpush.msra.mxu0 0.0
      %3380 = vmatpush.msra.mxu0 0.0
      %3381 = vmatpush.msra.mxu0 0.0
      %3382 = vmatpush.msra.mxu0 0.0
      %3383 = vmatpush.msra.mxu0 0.0
      %3384 = vmatpush.msra.mxu0 0.0
      %3385 = vmatpush.msra.mxu0 0.0
      %3386 = vmatpush.msra.mxu0 0.0
      %3387 = vmatpush.msra.mxu0 0.0
      %3388 = vmatpush.msra.mxu0 0.0
      %3389 = vmatpush.msra.mxu0 0.0
      %3390 = vmatpush.msra.mxu0 %v2864
      %3391 = vmatpush.msra.mxu0 %v2832
      %3392 = vmatmul.f32.gmra.mxu0 %v2874
      %v3393 = vpop.f32.mrf.mxu0
      %v3394 = vadd.f32 0.0, %v3393
      %3395 = vdwg.mxu0
      %3396 = vmatpush.msra.mxu0 0.0
      %3397 = vmatpush.msra.mxu0 0.0
      %3398 = vmatpush.msra.mxu0 0.0
      %3399 = vmatpush.msra.mxu0 0.0
      %3400 = vmatpush.msra.mxu0 0.0
      %3401 = vmatpush.msra.mxu0 0.0
      %3402 = vmatpush.msra.mxu0 0.0
      %3403 = vmatpush.msra.mxu0 0.0
      %3404 = vmatpush.msra.mxu0 0.0
      %3405 = vmatpush.msra.mxu0 0.0
      %3406 = vmatpush.msra.mxu0 0.0
      %3407 = vmatpush.msra.mxu0 0.0
      %3408 = vmatpush.msra.mxu0 0.0
      %3409 = vmatpush.msra.mxu0 0.0
      %3410 = vmatpush.msra.mxu0 %v2865
      %3411 = vmatpush.msra.mxu0 %v2833
      %3412 = vmatmul.f32.gmra.mxu0 %v2874
      %v3413 = vpop.f32.mrf.mxu0
      %v3414 = vadd.f32 0.0, %v3413
      %3415 = vdwg.mxu0
      %3416 = vmatpush.msra.mxu0 0.0
      %3417 = vmatpush.msra.mxu0 0.0
      %3418 = vmatpush.msra.mxu0 0.0
      %3419 = vmatpush.msra.mxu0 0.0
      %3420 = vmatpush.msra.mxu0 0.0
      %3421 = vmatpush.msra.mxu0 0.0
      %3422 = vmatpush.msra.mxu0 0.0
      %3423 = vmatpush.msra.mxu0 0.0
      %3424 = vmatpush.msra.mxu0 0.0
      %3425 = vmatpush.msra.mxu0 0.0
      %3426 = vmatpush.msra.mxu0 0.0
      %3427 = vmatpush.msra.mxu0 0.0
      %3428 = vmatpush.msra.mxu0 0.0
      %3429 = vmatpush.msra.mxu0 0.0
      %3430 = vmatpush.msra.mxu0 %v2866
      %3431 = vmatpush.msra.mxu0 %v2834
      %3432 = vmatmul.f32.gmra.mxu0 %v2874
      %v3433 = vpop.f32.mrf.mxu0
      %v3434 = vadd.f32 0.0, %v3433
      %3435 = vdwg.mxu0
      %3436 = vmatpush.msra.mxu0 0.0
      %3437 = vmatpush.msra.mxu0 0.0
      %3438 = vmatpush.msra.mxu0 0.0
      %3439 = vmatpush.msra.mxu0 0.0
      %3440 = vmatpush.msra.mxu0 0.0
      %3441 = vmatpush.msra.mxu0 0.0
      %3442 = vmatpush.msra.mxu0 0.0
      %3443 = vmatpush.msra.mxu0 0.0
      %3444 = vmatpush.msra.mxu0 0.0
      %3445 = vmatpush.msra.mxu0 0.0
      %3446 = vmatpush.msra.mxu0 0.0
      %3447 = vmatpush.msra.mxu0 0.0
      %3448 = vmatpush.msra.mxu0 0.0
      %3449 = vmatpush.msra.mxu0 0.0
      %3450 = vmatpush.msra.mxu0 %v2867
      %3451 = vmatpush.msra.mxu0 %v2835
      %3452 = vmatmul.f32.gmra.mxu0 %v2874
      %v3453 = vpop.f32.mrf.mxu0
      %v3454 = vadd.f32 0.0, %v3453
      %3455 = vdwg.mxu0
      %3456 = vmatpush.msra.mxu0 0.0
      %3457 = vmatpush.msra.mxu0 0.0
      %3458 = vmatpush.msra.mxu0 0.0
      %3459 = vmatpush.msra.mxu0 0.0
      %3460 = vmatpush.msra.mxu0 0.0
      %3461 = vmatpush.msra.mxu0 0.0
      %3462 = vmatpush.msra.mxu0 0.0
      %3463 = vmatpush.msra.mxu0 0.0
      %3464 = vmatpush.msra.mxu0 0.0
      %3465 = vmatpush.msra.mxu0 0.0
      %3466 = vmatpush.msra.mxu0 0.0
      %3467 = vmatpush.msra.mxu0 0.0
      %3468 = vmatpush.msra.mxu0 0.0
      %3469 = vmatpush.msra.mxu0 0.0
      %3470 = vmatpush.msra.mxu0 %v2868
      %3471 = vmatpush.msra.mxu0 %v2836
      %3472 = vmatmul.f32.gmra.mxu0 %v2874
      %v3473 = vpop.f32.mrf.mxu0
      %v3474 = vadd.f32 0.0, %v3473
      %3475 = vdwg.mxu0
      %3476 = vmatpush.msra.mxu0 0.0
      %3477 = vmatpush.msra.mxu0 0.0
      %3478 = vmatpush.msra.mxu0 0.0
      %3479 = vmatpush.msra.mxu0 0.0
      %3480 = vmatpush.msra.mxu0 0.0
      %3481 = vmatpush.msra.mxu0 0.0
      %3482 = vmatpush.msra.mxu0 0.0
      %3483 = vmatpush.msra.mxu0 0.0
      %3484 = vmatpush.msra.mxu0 0.0
      %3485 = vmatpush.msra.mxu0 0.0
      %3486 = vmatpush.msra.mxu0 0.0
      %3487 = vmatpush.msra.mxu0 0.0
      %3488 = vmatpush.msra.mxu0 0.0
      %3489 = vmatpush.msra.mxu0 0.0
      %3490 = vmatpush.msra.mxu0 %v2869
      %3491 = vmatpush.msra.mxu0 %v2837
      %3492 = vmatmul.f32.gmra.mxu0 %v2874
      %v3493 = vpop.f32.mrf.mxu0
      %v3494 = vadd.f32 0.0, %v3493
      %3495 = vdwg.mxu0
      %3496 = vmatpush.msra.mxu0 0.0
      %3497 = vmatpush.msra.mxu0 0.0
      %3498 = vmatpush.msra.mxu0 0.0
      %3499 = vmatpush.msra.mxu0 0.0
      %3500 = vmatpush.msra.mxu0 0.0
      %3501 = vmatpush.msra.mxu0 0.0
      %3502 = vmatpush.msra.mxu0 0.0
      %3503 = vmatpush.msra.mxu0 0.0
      %3504 = vmatpush.msra.mxu0 0.0
      %3505 = vmatpush.msra.mxu0 0.0
      %3506 = vmatpush.msra.mxu0 0.0
      %3507 = vmatpush.msra.mxu0 0.0
      %3508 = vmatpush.msra.mxu0 0.0
      %3509 = vmatpush.msra.mxu0 0.0
      %3510 = vmatpush.msra.mxu0 %v2870
      %3511 = vmatpush.msra.mxu0 %v2838
      %3512 = vmatmul.f32.gmra.mxu0 %v2874
      %v3513 = vpop.f32.mrf.mxu0
      %v3514 = vadd.f32 0.0, %v3513
      %3515 = vdwg.mxu0
      %v3517 = vsel %vm604, %v2871, 0
      %3519 = vmatpush.msra.mxu0 0.0
      %3520 = vmatpush.msra.mxu0 0.0
      %3521 = vmatpush.msra.mxu0 0.0
      %3522 = vmatpush.msra.mxu0 0.0
      %3523 = vmatpush.msra.mxu0 0.0
      %3524 = vmatpush.msra.mxu0 0.0
      %3525 = vmatpush.msra.mxu0 0.0
      %3526 = vmatpush.msra.mxu0 0.0
      %3527 = vmatpush.msra.mxu0 0.0
      %3528 = vmatpush.msra.mxu0 0.0
      %3529 = vmatpush.msra.mxu0 0.0
      %3530 = vmatpush.msra.mxu0 0.0
      %3531 = vmatpush.msra.mxu0 0.0
      %3532 = vmatpush.msra.mxu0 0.0
      %3533 = vmatpush.msra.mxu0 %v1699
      %3534 = vmatpush.msra.mxu0 %v1667
      %3535 = vmatmul.f32.gmra.mxu0 %v3517
      %v3536 = vpop.f32.mrf.mxu0
      %v3537 = vadd.f32 %v2894, %v3536
      %3538 = vdwg.mxu0
      %3539 = vmatpush.msra.mxu0 0.0
      %3540 = vmatpush.msra.mxu0 0.0
      %3541 = vmatpush.msra.mxu0 0.0
      %3542 = vmatpush.msra.mxu0 0.0
      %3543 = vmatpush.msra.mxu0 0.0
      %3544 = vmatpush.msra.mxu0 0.0
      %3545 = vmatpush.msra.mxu0 0.0
      %3546 = vmatpush.msra.mxu0 0.0
      %3547 = vmatpush.msra.mxu0 0.0
      %3548 = vmatpush.msra.mxu0 0.0
      %3549 = vmatpush.msra.mxu0 0.0
      %3550 = vmatpush.msra.mxu0 0.0
      %3551 = vmatpush.msra.mxu0 0.0
      %3552 = vmatpush.msra.mxu0 0.0
      %3553 = vmatpush.msra.mxu0 %v1700
      %3554 = vmatpush.msra.mxu0 %v1668
      %3555 = vmatmul.f32.gmra.mxu0 %v3517
      %v3556 = vpop.f32.mrf.mxu0
      %v3557 = vadd.f32 %v2914, %v3556
      %3558 = vdwg.mxu0
      %3559 = vmatpush.msra.mxu0 0.0
      %3560 = vmatpush.msra.mxu0 0.0
      %3561 = vmatpush.msra.mxu0 0.0
      %3562 = vmatpush.msra.mxu0 0.0
      %3563 = vmatpush.msra.mxu0 0.0
      %3564 = vmatpush.msra.mxu0 0.0
      %3565 = vmatpush.msra.mxu0 0.0
      %3566 = vmatpush.msra.mxu0 0.0
      %3567 = vmatpush.msra.mxu0 0.0
      %3568 = vmatpush.msra.mxu0 0.0
      %3569 = vmatpush.msra.mxu0 0.0
      %3570 = vmatpush.msra.mxu0 0.0
      %3571 = vmatpush.msra.mxu0 0.0
      %3572 = vmatpush.msra.mxu0 0.0
      %3573 = vmatpush.msra.mxu0 %v1701
      %3574 = vmatpush.msra.mxu0 %v1669
      %3575 = vmatmul.f32.gmra.mxu0 %v3517
      %v3576 = vpop.f32.mrf.mxu0
      %v3577 = vadd.f32 %v2934, %v3576
      %3578 = vdwg.mxu0
      %3579 = vmatpush.msra.mxu0 0.0
      %3580 = vmatpush.msra.mxu0 0.0
      %3581 = vmatpush.msra.mxu0 0.0
      %3582 = vmatpush.msra.mxu0 0.0
      %3583 = vmatpush.msra.mxu0 0.0
      %3584 = vmatpush.msra.mxu0 0.0
      %3585 = vmatpush.msra.mxu0 0.0
      %3586 = vmatpush.msra.mxu0 0.0
      %3587 = vmatpush.msra.mxu0 0.0
      %3588 = vmatpush.msra.mxu0 0.0
      %3589 = vmatpush.msra.mxu0 0.0
      %3590 = vmatpush.msra.mxu0 0.0
      %3591 = vmatpush.msra.mxu0 0.0
      %3592 = vmatpush.msra.mxu0 0.0
      %3593 = vmatpush.msra.mxu0 %v1702
      %3594 = vmatpush.msra.mxu0 %v1670
      %3595 = vmatmul.f32.gmra.mxu0 %v3517
      %v3596 = vpop.f32.mrf.mxu0
      %v3597 = vadd.f32 %v2954, %v3596
      %3598 = vdwg.mxu0
      %3599 = vmatpush.msra.mxu0 0.0
      %3600 = vmatpush.msra.mxu0 0.0
      %3601 = vmatpush.msra.mxu0 0.0
      %3602 = vmatpush.msra.mxu0 0.0
      %3603 = vmatpush.msra.mxu0 0.0
      %3604 = vmatpush.msra.mxu0 0.0
      %3605 = vmatpush.msra.mxu0 0.0
      %3606 = vmatpush.msra.mxu0 0.0
      %3607 = vmatpush.msra.mxu0 0.0
      %3608 = vmatpush.msra.mxu0 0.0
      %3609 = vmatpush.msra.mxu0 0.0
      %3610 = vmatpush.msra.mxu0 0.0
      %3611 = vmatpush.msra.mxu0 0.0
      %3612 = vmatpush.msra.mxu0 0.0
      %3613 = vmatpush.msra.mxu0 %v1703
      %3614 = vmatpush.msra.mxu0 %v1671
      %3615 = vmatmul.f32.gmra.mxu0 %v3517
      %v3616 = vpop.f32.mrf.mxu0
      %v3617 = vadd.f32 %v2974, %v3616
      %3618 = vdwg.mxu0
      %3619 = vmatpush.msra.mxu0 0.0
      %3620 = vmatpush.msra.mxu0 0.0
      %3621 = vmatpush.msra.mxu0 0.0
      %3622 = vmatpush.msra.mxu0 0.0
      %3623 = vmatpush.msra.mxu0 0.0
      %3624 = vmatpush.msra.mxu0 0.0
      %3625 = vmatpush.msra.mxu0 0.0
      %3626 = vmatpush.msra.mxu0 0.0
      %3627 = vmatpush.msra.mxu0 0.0
      %3628 = vmatpush.msra.mxu0 0.0
      %3629 = vmatpush.msra.mxu0 0.0
      %3630 = vmatpush.msra.mxu0 0.0
      %3631 = vmatpush.msra.mxu0 0.0
      %3632 = vmatpush.msra.mxu0 0.0
      %3633 = vmatpush.msra.mxu0 %v1704
      %3634 = vmatpush.msra.mxu0 %v1672
      %3635 = vmatmul.f32.gmra.mxu0 %v3517
      %v3636 = vpop.f32.mrf.mxu0
      %v3637 = vadd.f32 %v2994, %v3636
      %3638 = vdwg.mxu0
      %3639 = vmatpush.msra.mxu0 0.0
      %3640 = vmatpush.msra.mxu0 0.0
      %3641 = vmatpush.msra.mxu0 0.0
      %3642 = vmatpush.msra.mxu0 0.0
      %3643 = vmatpush.msra.mxu0 0.0
      %3644 = vmatpush.msra.mxu0 0.0
      %3645 = vmatpush.msra.mxu0 0.0
      %3646 = vmatpush.msra.mxu0 0.0
      %3647 = vmatpush.msra.mxu0 0.0
      %3648 = vmatpush.msra.mxu0 0.0
      %3649 = vmatpush.msra.mxu0 0.0
      %3650 = vmatpush.msra.mxu0 0.0
      %3651 = vmatpush.msra.mxu0 0.0
      %3652 = vmatpush.msra.mxu0 0.0
      %3653 = vmatpush.msra.mxu0 %v1705
      %3654 = vmatpush.msra.mxu0 %v1673
      %3655 = vmatmul.f32.gmra.mxu0 %v3517
      %v3656 = vpop.f32.mrf.mxu0
      %v3657 = vadd.f32 %v3014, %v3656
      %3658 = vdwg.mxu0
      %3659 = vmatpush.msra.mxu0 0.0
      %3660 = vmatpush.msra.mxu0 0.0
      %3661 = vmatpush.msra.mxu0 0.0
      %3662 = vmatpush.msra.mxu0 0.0
      %3663 = vmatpush.msra.mxu0 0.0
      %3664 = vmatpush.msra.mxu0 0.0
      %3665 = vmatpush.msra.mxu0 0.0
      %3666 = vmatpush.msra.mxu0 0.0
      %3667 = vmatpush.msra.mxu0 0.0
      %3668 = vmatpush.msra.mxu0 0.0
      %3669 = vmatpush.msra.mxu0 0.0
      %3670 = vmatpush.msra.mxu0 0.0
      %3671 = vmatpush.msra.mxu0 0.0
      %3672 = vmatpush.msra.mxu0 0.0
      %3673 = vmatpush.msra.mxu0 %v1706
      %3674 = vmatpush.msra.mxu0 %v1674
      %3675 = vmatmul.f32.gmra.mxu0 %v3517
      %v3676 = vpop.f32.mrf.mxu0
      %v3677 = vadd.f32 %v3034, %v3676
      %3678 = vdwg.mxu0
      %3679 = vmatpush.msra.mxu0 0.0
      %3680 = vmatpush.msra.mxu0 0.0
      %3681 = vmatpush.msra.mxu0 0.0
      %3682 = vmatpush.msra.mxu0 0.0
      %3683 = vmatpush.msra.mxu0 0.0
      %3684 = vmatpush.msra.mxu0 0.0
      %3685 = vmatpush.msra.mxu0 0.0
      %3686 = vmatpush.msra.mxu0 0.0
      %3687 = vmatpush.msra.mxu0 0.0
      %3688 = vmatpush.msra.mxu0 0.0
      %3689 = vmatpush.msra.mxu0 0.0
      %3690 = vmatpush.msra.mxu0 0.0
      %3691 = vmatpush.msra.mxu0 0.0
      %3692 = vmatpush.msra.mxu0 0.0
      %3693 = vmatpush.msra.mxu0 %v1707
      %3694 = vmatpush.msra.mxu0 %v1675
      %3695 = vmatmul.f32.gmra.mxu0 %v3517
      %v3696 = vpop.f32.mrf.mxu0
      %v3697 = vadd.f32 %v3054, %v3696
      %3698 = vdwg.mxu0
      %3699 = vmatpush.msra.mxu0 0.0
      %3700 = vmatpush.msra.mxu0 0.0
      %3701 = vmatpush.msra.mxu0 0.0
      %3702 = vmatpush.msra.mxu0 0.0
      %3703 = vmatpush.msra.mxu0 0.0
      %3704 = vmatpush.msra.mxu0 0.0
      %3705 = vmatpush.msra.mxu0 0.0
      %3706 = vmatpush.msra.mxu0 0.0
      %3707 = vmatpush.msra.mxu0 0.0
      %3708 = vmatpush.msra.mxu0 0.0
      %3709 = vmatpush.msra.mxu0 0.0
      %3710 = vmatpush.msra.mxu0 0.0
      %3711 = vmatpush.msra.mxu0 0.0
      %3712 = vmatpush.msra.mxu0 0.0
      %3713 = vmatpush.msra.mxu0 %v1708
      %3714 = vmatpush.msra.mxu0 %v1676
      %3715 = vmatmul.f32.gmra.mxu0 %v3517
      %v3716 = vpop.f32.mrf.mxu0
      %v3717 = vadd.f32 %v3074, %v3716
      %3718 = vdwg.mxu0
      %3719 = vmatpush.msra.mxu0 0.0
      %3720 = vmatpush.msra.mxu0 0.0
      %3721 = vmatpush.msra.mxu0 0.0
      %3722 = vmatpush.msra.mxu0 0.0
      %3723 = vmatpush.msra.mxu0 0.0
      %3724 = vmatpush.msra.mxu0 0.0
      %3725 = vmatpush.msra.mxu0 0.0
      %3726 = vmatpush.msra.mxu0 0.0
      %3727 = vmatpush.msra.mxu0 0.0
      %3728 = vmatpush.msra.mxu0 0.0
      %3729 = vmatpush.msra.mxu0 0.0
      %3730 = vmatpush.msra.mxu0 0.0
      %3731 = vmatpush.msra.mxu0 0.0
      %3732 = vmatpush.msra.mxu0 0.0
      %3733 = vmatpush.msra.mxu0 %v1709
      %3734 = vmatpush.msra.mxu0 %v1677
      %3735 = vmatmul.f32.gmra.mxu0 %v3517
      %v3736 = vpop.f32.mrf.mxu0
      %v3737 = vadd.f32 %v3094, %v3736
      %3738 = vdwg.mxu0
      %3739 = vmatpush.msra.mxu0 0.0
      %3740 = vmatpush.msra.mxu0 0.0
      %3741 = vmatpush.msra.mxu0 0.0
      %3742 = vmatpush.msra.mxu0 0.0
      %3743 = vmatpush.msra.mxu0 0.0
      %3744 = vmatpush.msra.mxu0 0.0
      %3745 = vmatpush.msra.mxu0 0.0
      %3746 = vmatpush.msra.mxu0 0.0
      %3747 = vmatpush.msra.mxu0 0.0
      %3748 = vmatpush.msra.mxu0 0.0
      %3749 = vmatpush.msra.mxu0 0.0
      %3750 = vmatpush.msra.mxu0 0.0
      %3751 = vmatpush.msra.mxu0 0.0
      %3752 = vmatpush.msra.mxu0 0.0
      %3753 = vmatpush.msra.mxu0 %v1710
      %3754 = vmatpush.msra.mxu0 %v1678
      %3755 = vmatmul.f32.gmra.mxu0 %v3517
      %v3756 = vpop.f32.mrf.mxu0
      %v3757 = vadd.f32 %v3114, %v3756
      %3758 = vdwg.mxu0
      %3759 = vmatpush.msra.mxu0 0.0
      %3760 = vmatpush.msra.mxu0 0.0
      %3761 = vmatpush.msra.mxu0 0.0
      %3762 = vmatpush.msra.mxu0 0.0
      %3763 = vmatpush.msra.mxu0 0.0
      %3764 = vmatpush.msra.mxu0 0.0
      %3765 = vmatpush.msra.mxu0 0.0
      %3766 = vmatpush.msra.mxu0 0.0
      %3767 = vmatpush.msra.mxu0 0.0
      %3768 = vmatpush.msra.mxu0 0.0
      %3769 = vmatpush.msra.mxu0 0.0
      %3770 = vmatpush.msra.mxu0 0.0
      %3771 = vmatpush.msra.mxu0 0.0
      %3772 = vmatpush.msra.mxu0 0.0
      %3773 = vmatpush.msra.mxu0 %v1711
      %3774 = vmatpush.msra.mxu0 %v1679
      %3775 = vmatmul.f32.gmra.mxu0 %v3517
      %v3776 = vpop.f32.mrf.mxu0
      %v3777 = vadd.f32 %v3134, %v3776
      %3778 = vdwg.mxu0
      %3779 = vmatpush.msra.mxu0 0.0
      %3780 = vmatpush.msra.mxu0 0.0
      %3781 = vmatpush.msra.mxu0 0.0
      %3782 = vmatpush.msra.mxu0 0.0
      %3783 = vmatpush.msra.mxu0 0.0
      %3784 = vmatpush.msra.mxu0 0.0
      %3785 = vmatpush.msra.mxu0 0.0
      %3786 = vmatpush.msra.mxu0 0.0
      %3787 = vmatpush.msra.mxu0 0.0
      %3788 = vmatpush.msra.mxu0 0.0
      %3789 = vmatpush.msra.mxu0 0.0
      %3790 = vmatpush.msra.mxu0 0.0
      %3791 = vmatpush.msra.mxu0 0.0
      %3792 = vmatpush.msra.mxu0 0.0
      %3793 = vmatpush.msra.mxu0 %v1712
      %3794 = vmatpush.msra.mxu0 %v1680
      %3795 = vmatmul.f32.gmra.mxu0 %v3517
      %v3796 = vpop.f32.mrf.mxu0
      %v3797 = vadd.f32 %v3154, %v3796
      %3798 = vdwg.mxu0
      %3799 = vmatpush.msra.mxu0 0.0
      %3800 = vmatpush.msra.mxu0 0.0
      %3801 = vmatpush.msra.mxu0 0.0
      %3802 = vmatpush.msra.mxu0 0.0
      %3803 = vmatpush.msra.mxu0 0.0
      %3804 = vmatpush.msra.mxu0 0.0
      %3805 = vmatpush.msra.mxu0 0.0
      %3806 = vmatpush.msra.mxu0 0.0
      %3807 = vmatpush.msra.mxu0 0.0
      %3808 = vmatpush.msra.mxu0 0.0
      %3809 = vmatpush.msra.mxu0 0.0
      %3810 = vmatpush.msra.mxu0 0.0
      %3811 = vmatpush.msra.mxu0 0.0
      %3812 = vmatpush.msra.mxu0 0.0
      %3813 = vmatpush.msra.mxu0 %v1713
      %3814 = vmatpush.msra.mxu0 %v1681
      %3815 = vmatmul.f32.gmra.mxu0 %v3517
      %v3816 = vpop.f32.mrf.mxu0
      %v3817 = vadd.f32 %v3174, %v3816
      %3818 = vdwg.mxu0
      %3819 = vmatpush.msra.mxu0 0.0
      %3820 = vmatpush.msra.mxu0 0.0
      %3821 = vmatpush.msra.mxu0 0.0
      %3822 = vmatpush.msra.mxu0 0.0
      %3823 = vmatpush.msra.mxu0 0.0
      %3824 = vmatpush.msra.mxu0 0.0
      %3825 = vmatpush.msra.mxu0 0.0
      %3826 = vmatpush.msra.mxu0 0.0
      %3827 = vmatpush.msra.mxu0 0.0
      %3828 = vmatpush.msra.mxu0 0.0
      %3829 = vmatpush.msra.mxu0 0.0
      %3830 = vmatpush.msra.mxu0 0.0
      %3831 = vmatpush.msra.mxu0 0.0
      %3832 = vmatpush.msra.mxu0 0.0
      %3833 = vmatpush.msra.mxu0 %v1714
      %3834 = vmatpush.msra.mxu0 %v1682
      %3835 = vmatmul.f32.gmra.mxu0 %v3517
      %v3836 = vpop.f32.mrf.mxu0
      %v3837 = vadd.f32 %v3194, %v3836
      %3838 = vdwg.mxu0
      %3839 = vmatpush.msra.mxu0 0.0
      %3840 = vmatpush.msra.mxu0 0.0
      %3841 = vmatpush.msra.mxu0 0.0
      %3842 = vmatpush.msra.mxu0 0.0
      %3843 = vmatpush.msra.mxu0 0.0
      %3844 = vmatpush.msra.mxu0 0.0
      %3845 = vmatpush.msra.mxu0 0.0
      %3846 = vmatpush.msra.mxu0 0.0
      %3847 = vmatpush.msra.mxu0 0.0
      %3848 = vmatpush.msra.mxu0 0.0
      %3849 = vmatpush.msra.mxu0 0.0
      %3850 = vmatpush.msra.mxu0 0.0
      %3851 = vmatpush.msra.mxu0 0.0
      %3852 = vmatpush.msra.mxu0 0.0
      %3853 = vmatpush.msra.mxu0 %v1715
      %3854 = vmatpush.msra.mxu0 %v1683
      %3855 = vmatmul.f32.gmra.mxu0 %v3517
      %v3856 = vpop.f32.mrf.mxu0
      %v3857 = vadd.f32 %v3214, %v3856
      %3858 = vdwg.mxu0
      %3859 = vmatpush.msra.mxu0 0.0
      %3860 = vmatpush.msra.mxu0 0.0
      %3861 = vmatpush.msra.mxu0 0.0
      %3862 = vmatpush.msra.mxu0 0.0
      %3863 = vmatpush.msra.mxu0 0.0
      %3864 = vmatpush.msra.mxu0 0.0
      %3865 = vmatpush.msra.mxu0 0.0
      %3866 = vmatpush.msra.mxu0 0.0
      %3867 = vmatpush.msra.mxu0 0.0
      %3868 = vmatpush.msra.mxu0 0.0
      %3869 = vmatpush.msra.mxu0 0.0
      %3870 = vmatpush.msra.mxu0 0.0
      %3871 = vmatpush.msra.mxu0 0.0
      %3872 = vmatpush.msra.mxu0 0.0
      %3873 = vmatpush.msra.mxu0 %v1716
      %3874 = vmatpush.msra.mxu0 %v1684
      %3875 = vmatmul.f32.gmra.mxu0 %v3517
      %v3876 = vpop.f32.mrf.mxu0
      %v3877 = vadd.f32 %v3234, %v3876
      %3878 = vdwg.mxu0
      %3879 = vmatpush.msra.mxu0 0.0
      %3880 = vmatpush.msra.mxu0 0.0
      %3881 = vmatpush.msra.mxu0 0.0
      %3882 = vmatpush.msra.mxu0 0.0
      %3883 = vmatpush.msra.mxu0 0.0
      %3884 = vmatpush.msra.mxu0 0.0
      %3885 = vmatpush.msra.mxu0 0.0
      %3886 = vmatpush.msra.mxu0 0.0
      %3887 = vmatpush.msra.mxu0 0.0
      %3888 = vmatpush.msra.mxu0 0.0
      %3889 = vmatpush.msra.mxu0 0.0
      %3890 = vmatpush.msra.mxu0 0.0
      %3891 = vmatpush.msra.mxu0 0.0
      %3892 = vmatpush.msra.mxu0 0.0
      %3893 = vmatpush.msra.mxu0 %v1717
      %3894 = vmatpush.msra.mxu0 %v1685
      %3895 = vmatmul.f32.gmra.mxu0 %v3517
      %v3896 = vpop.f32.mrf.mxu0
      %v3897 = vadd.f32 %v3254, %v3896
      %3898 = vdwg.mxu0
      %3899 = vmatpush.msra.mxu0 0.0
      %3900 = vmatpush.msra.mxu0 0.0
      %3901 = vmatpush.msra.mxu0 0.0
      %3902 = vmatpush.msra.mxu0 0.0
      %3903 = vmatpush.msra.mxu0 0.0
      %3904 = vmatpush.msra.mxu0 0.0
      %3905 = vmatpush.msra.mxu0 0.0
      %3906 = vmatpush.msra.mxu0 0.0
      %3907 = vmatpush.msra.mxu0 0.0
      %3908 = vmatpush.msra.mxu0 0.0
      %3909 = vmatpush.msra.mxu0 0.0
      %3910 = vmatpush.msra.mxu0 0.0
      %3911 = vmatpush.msra.mxu0 0.0
      %3912 = vmatpush.msra.mxu0 0.0
      %3913 = vmatpush.msra.mxu0 %v1718
      %3914 = vmatpush.msra.mxu0 %v1686
      %3915 = vmatmul.f32.gmra.mxu0 %v3517
      %v3916 = vpop.f32.mrf.mxu0
      %v3917 = vadd.f32 %v3274, %v3916
      %3918 = vdwg.mxu0
      %3919 = vmatpush.msra.mxu0 0.0
      %3920 = vmatpush.msra.mxu0 0.0
      %3921 = vmatpush.msra.mxu0 0.0
      %3922 = vmatpush.msra.mxu0 0.0
      %3923 = vmatpush.msra.mxu0 0.0
      %3924 = vmatpush.msra.mxu0 0.0
      %3925 = vmatpush.msra.mxu0 0.0
      %3926 = vmatpush.msra.mxu0 0.0
      %3927 = vmatpush.msra.mxu0 0.0
      %3928 = vmatpush.msra.mxu0 0.0
      %3929 = vmatpush.msra.mxu0 0.0
      %3930 = vmatpush.msra.mxu0 0.0
      %3931 = vmatpush.msra.mxu0 0.0
      %3932 = vmatpush.msra.mxu0 0.0
      %3933 = vmatpush.msra.mxu0 %v1719
      %3934 = vmatpush.msra.mxu0 %v1687
      %3935 = vmatmul.f32.gmra.mxu0 %v3517
      %v3936 = vpop.f32.mrf.mxu0
      %v3937 = vadd.f32 %v3294, %v3936
      %3938 = vdwg.mxu0
      %3939 = vmatpush.msra.mxu0 0.0
      %3940 = vmatpush.msra.mxu0 0.0
      %3941 = vmatpush.msra.mxu0 0.0
      %3942 = vmatpush.msra.mxu0 0.0
      %3943 = vmatpush.msra.mxu0 0.0
      %3944 = vmatpush.msra.mxu0 0.0
      %3945 = vmatpush.msra.mxu0 0.0
      %3946 = vmatpush.msra.mxu0 0.0
      %3947 = vmatpush.msra.mxu0 0.0
      %3948 = vmatpush.msra.mxu0 0.0
      %3949 = vmatpush.msra.mxu0 0.0
      %3950 = vmatpush.msra.mxu0 0.0
      %3951 = vmatpush.msra.mxu0 0.0
      %3952 = vmatpush.msra.mxu0 0.0
      %3953 = vmatpush.msra.mxu0 %v1720
      %3954 = vmatpush.msra.mxu0 %v1688
      %3955 = vmatmul.f32.gmra.mxu0 %v3517
      %v3956 = vpop.f32.mrf.mxu0
      %v3957 = vadd.f32 %v3314, %v3956
      %3958 = vdwg.mxu0
      %3959 = vmatpush.msra.mxu0 0.0
      %3960 = vmatpush.msra.mxu0 0.0
      %3961 = vmatpush.msra.mxu0 0.0
      %3962 = vmatpush.msra.mxu0 0.0
      %3963 = vmatpush.msra.mxu0 0.0
      %3964 = vmatpush.msra.mxu0 0.0
      %3965 = vmatpush.msra.mxu0 0.0
      %3966 = vmatpush.msra.mxu0 0.0
      %3967 = vmatpush.msra.mxu0 0.0
      %3968 = vmatpush.msra.mxu0 0.0
      %3969 = vmatpush.msra.mxu0 0.0
      %3970 = vmatpush.msra.mxu0 0.0
      %3971 = vmatpush.msra.mxu0 0.0
      %3972 = vmatpush.msra.mxu0 0.0
      %3973 = vmatpush.msra.mxu0 %v1721
      %3974 = vmatpush.msra.mxu0 %v1689
      %3975 = vmatmul.f32.gmra.mxu0 %v3517
      %v3976 = vpop.f32.mrf.mxu0
      %v3977 = vadd.f32 %v3334, %v3976
      %3978 = vdwg.mxu0
      %3979 = vmatpush.msra.mxu0 0.0
      %3980 = vmatpush.msra.mxu0 0.0
      %3981 = vmatpush.msra.mxu0 0.0
      %3982 = vmatpush.msra.mxu0 0.0
      %3983 = vmatpush.msra.mxu0 0.0
      %3984 = vmatpush.msra.mxu0 0.0
      %3985 = vmatpush.msra.mxu0 0.0
      %3986 = vmatpush.msra.mxu0 0.0
      %3987 = vmatpush.msra.mxu0 0.0
      %3988 = vmatpush.msra.mxu0 0.0
      %3989 = vmatpush.msra.mxu0 0.0
      %3990 = vmatpush.msra.mxu0 0.0
      %3991 = vmatpush.msra.mxu0 0.0
      %3992 = vmatpush.msra.mxu0 0.0
      %3993 = vmatpush.msra.mxu0 %v1722
      %3994 = vmatpush.msra.mxu0 %v1690
      %3995 = vmatmul.f32.gmra.mxu0 %v3517
      %v3996 = vpop.f32.mrf.mxu0
      %v3997 = vadd.f32 %v3354, %v3996
      %3998 = vdwg.mxu0
      %3999 = vmatpush.msra.mxu0 0.0
      %4000 = vmatpush.msra.mxu0 0.0
      %4001 = vmatpush.msra.mxu0 0.0
      %4002 = vmatpush.msra.mxu0 0.0
      %4003 = vmatpush.msra.mxu0 0.0
      %4004 = vmatpush.msra.mxu0 0.0
      %4005 = vmatpush.msra.mxu0 0.0
      %4006 = vmatpush.msra.mxu0 0.0
      %4007 = vmatpush.msra.mxu0 0.0
      %4008 = vmatpush.msra.mxu0 0.0
      %4009 = vmatpush.msra.mxu0 0.0
      %4010 = vmatpush.msra.mxu0 0.0
      %4011 = vmatpush.msra.mxu0 0.0
      %4012 = vmatpush.msra.mxu0 0.0
      %4013 = vmatpush.msra.mxu0 %v1723
      %4014 = vmatpush.msra.mxu0 %v1691
      %4015 = vmatmul.f32.gmra.mxu0 %v3517
      %v4016 = vpop.f32.mrf.mxu0
      %v4017 = vadd.f32 %v3374, %v4016
      %4018 = vdwg.mxu0
      %4019 = vmatpush.msra.mxu0 0.0
      %4020 = vmatpush.msra.mxu0 0.0
      %4021 = vmatpush.msra.mxu0 0.0
      %4022 = vmatpush.msra.mxu0 0.0
      %4023 = vmatpush.msra.mxu0 0.0
      %4024 = vmatpush.msra.mxu0 0.0
      %4025 = vmatpush.msra.mxu0 0.0
      %4026 = vmatpush.msra.mxu0 0.0
      %4027 = vmatpush.msra.mxu0 0.0
      %4028 = vmatpush.msra.mxu0 0.0
      %4029 = vmatpush.msra.mxu0 0.0
      %4030 = vmatpush.msra.mxu0 0.0
      %4031 = vmatpush.msra.mxu0 0.0
      %4032 = vmatpush.msra.mxu0 0.0
      %4033 = vmatpush.msra.mxu0 %v1724
      %4034 = vmatpush.msra.mxu0 %v1692
      %4035 = vmatmul.f32.gmra.mxu0 %v3517
      %v4036 = vpop.f32.mrf.mxu0
      %v4037 = vadd.f32 %v3394, %v4036
      %4038 = vdwg.mxu0
      %4039 = vmatpush.msra.mxu0 0.0
      %4040 = vmatpush.msra.mxu0 0.0
      %4041 = vmatpush.msra.mxu0 0.0
      %4042 = vmatpush.msra.mxu0 0.0
      %4043 = vmatpush.msra.mxu0 0.0
      %4044 = vmatpush.msra.mxu0 0.0
      %4045 = vmatpush.msra.mxu0 0.0
      %4046 = vmatpush.msra.mxu0 0.0
      %4047 = vmatpush.msra.mxu0 0.0
      %4048 = vmatpush.msra.mxu0 0.0
      %4049 = vmatpush.msra.mxu0 0.0
      %4050 = vmatpush.msra.mxu0 0.0
      %4051 = vmatpush.msra.mxu0 0.0
      %4052 = vmatpush.msra.mxu0 0.0
      %4053 = vmatpush.msra.mxu0 %v1725
      %4054 = vmatpush.msra.mxu0 %v1693
      %4055 = vmatmul.f32.gmra.mxu0 %v3517
      %v4056 = vpop.f32.mrf.mxu0
      %v4057 = vadd.f32 %v3414, %v4056
      %4058 = vdwg.mxu0
      %4059 = vmatpush.msra.mxu0 0.0
      %4060 = vmatpush.msra.mxu0 0.0
      %4061 = vmatpush.msra.mxu0 0.0
      %4062 = vmatpush.msra.mxu0 0.0
      %4063 = vmatpush.msra.mxu0 0.0
      %4064 = vmatpush.msra.mxu0 0.0
      %4065 = vmatpush.msra.mxu0 0.0
      %4066 = vmatpush.msra.mxu0 0.0
      %4067 = vmatpush.msra.mxu0 0.0
      %4068 = vmatpush.msra.mxu0 0.0
      %4069 = vmatpush.msra.mxu0 0.0
      %4070 = vmatpush.msra.mxu0 0.0
      %4071 = vmatpush.msra.mxu0 0.0
      %4072 = vmatpush.msra.mxu0 0.0
      %4073 = vmatpush.msra.mxu0 %v1726
      %4074 = vmatpush.msra.mxu0 %v1694
      %4075 = vmatmul.f32.gmra.mxu0 %v3517
      %v4076 = vpop.f32.mrf.mxu0
      %v4077 = vadd.f32 %v3434, %v4076
      %4078 = vdwg.mxu0
      %4079 = vmatpush.msra.mxu0 0.0
      %4080 = vmatpush.msra.mxu0 0.0
      %4081 = vmatpush.msra.mxu0 0.0
      %4082 = vmatpush.msra.mxu0 0.0
      %4083 = vmatpush.msra.mxu0 0.0
      %4084 = vmatpush.msra.mxu0 0.0
      %4085 = vmatpush.msra.mxu0 0.0
      %4086 = vmatpush.msra.mxu0 0.0
      %4087 = vmatpush.msra.mxu0 0.0
      %4088 = vmatpush.msra.mxu0 0.0
      %4089 = vmatpush.msra.mxu0 0.0
      %4090 = vmatpush.msra.mxu0 0.0
      %4091 = vmatpush.msra.mxu0 0.0
      %4092 = vmatpush.msra.mxu0 0.0
      %4093 = vmatpush.msra.mxu0 %v1727
      %4094 = vmatpush.msra.mxu0 %v1695
      %4095 = vmatmul.f32.gmra.mxu0 %v3517
      %v4096 = vpop.f32.mrf.mxu0
      %v4097 = vadd.f32 %v3454, %v4096
      %4098 = vdwg.mxu0
      %4099 = vmatpush.msra.mxu0 0.0
      %4100 = vmatpush.msra.mxu0 0.0
      %4101 = vmatpush.msra.mxu0 0.0
      %4102 = vmatpush.msra.mxu0 0.0
      %4103 = vmatpush.msra.mxu0 0.0
      %4104 = vmatpush.msra.mxu0 0.0
      %4105 = vmatpush.msra.mxu0 0.0
      %4106 = vmatpush.msra.mxu0 0.0
      %4107 = vmatpush.msra.mxu0 0.0
      %4108 = vmatpush.msra.mxu0 0.0
      %4109 = vmatpush.msra.mxu0 0.0
      %4110 = vmatpush.msra.mxu0 0.0
      %4111 = vmatpush.msra.mxu0 0.0
      %4112 = vmatpush.msra.mxu0 0.0
      %4113 = vmatpush.msra.mxu0 %v1728
      %4114 = vmatpush.msra.mxu0 %v1696
      %4115 = vmatmul.f32.gmra.mxu0 %v3517
      %v4116 = vpop.f32.mrf.mxu0
      %v4117 = vadd.f32 %v3474, %v4116
      %4118 = vdwg.mxu0
      %4119 = vmatpush.msra.mxu0 0.0
      %4120 = vmatpush.msra.mxu0 0.0
      %4121 = vmatpush.msra.mxu0 0.0
      %4122 = vmatpush.msra.mxu0 0.0
      %4123 = vmatpush.msra.mxu0 0.0
      %4124 = vmatpush.msra.mxu0 0.0
      %4125 = vmatpush.msra.mxu0 0.0
      %4126 = vmatpush.msra.mxu0 0.0
      %4127 = vmatpush.msra.mxu0 0.0
      %4128 = vmatpush.msra.mxu0 0.0
      %4129 = vmatpush.msra.mxu0 0.0
      %4130 = vmatpush.msra.mxu0 0.0
      %4131 = vmatpush.msra.mxu0 0.0
      %4132 = vmatpush.msra.mxu0 0.0
      %4133 = vmatpush.msra.mxu0 %v1729
      %4134 = vmatpush.msra.mxu0 %v1697
      %4135 = vmatmul.f32.gmra.mxu0 %v3517
      %v4136 = vpop.f32.mrf.mxu0
      %v4137 = vadd.f32 %v3494, %v4136
      %4138 = vdwg.mxu0
      %4139 = vmatpush.msra.mxu0 0.0
      %4140 = vmatpush.msra.mxu0 0.0
      %4141 = vmatpush.msra.mxu0 0.0
      %4142 = vmatpush.msra.mxu0 0.0
      %4143 = vmatpush.msra.mxu0 0.0
      %4144 = vmatpush.msra.mxu0 0.0
      %4145 = vmatpush.msra.mxu0 0.0
      %4146 = vmatpush.msra.mxu0 0.0
      %4147 = vmatpush.msra.mxu0 0.0
      %4148 = vmatpush.msra.mxu0 0.0
      %4149 = vmatpush.msra.mxu0 0.0
      %4150 = vmatpush.msra.mxu0 0.0
      %4151 = vmatpush.msra.mxu0 0.0
      %4152 = vmatpush.msra.mxu0 0.0
      %4153 = vmatpush.msra.mxu0 %v1730
      %4154 = vmatpush.msra.mxu0 %v1698
      %4155 = vmatmul.f32.gmra.mxu0 %v3517
      %v4156 = vpop.f32.mrf.mxu0
      %v4157 = vadd.f32 %v3514, %v4156
      %4158 = vdwg.mxu0
      %v4159 = vld [vmem:[%s8] sm:$0x7]
      %4161 = vset.pattern.permute.xlu0 0
      %4162 = vperm.xlu0 %4161, %v4159
      %v4163 = vpop.permute.xlu0 %4162
      %v4165 = vadd.f32 %v3537, %v4163
      %v4166 = vadd.f32 %v3557, %v4163
      %v4167 = vadd.f32 %v3577, %v4163
      %v4168 = vadd.f32 %v3597, %v4163
      %v4169 = vadd.f32 %v3617, %v4163
      %v4170 = vadd.f32 %v3637, %v4163
      %v4171 = vadd.f32 %v3657, %v4163
      %v4172 = vadd.f32 %v3677, %v4163
      %v4173 = vadd.f32 %v3697, %v4163
      %v4174 = vadd.f32 %v3717, %v4163
      %v4175 = vadd.f32 %v3737, %v4163
      %v4176 = vadd.f32 %v3757, %v4163
      %v4177 = vadd.f32 %v3777, %v4163
      %v4178 = vadd.f32 %v3797, %v4163
      %v4179 = vadd.f32 %v3817, %v4163
      %v4180 = vadd.f32 %v3837, %v4163
      %v4181 = vadd.f32 %v3857, %v4163
      %v4182 = vadd.f32 %v3877, %v4163
      %v4183 = vadd.f32 %v3897, %v4163
      %v4184 = vadd.f32 %v3917, %v4163
      %v4185 = vadd.f32 %v3937, %v4163
      %v4186 = vadd.f32 %v3957, %v4163
      %v4187 = vadd.f32 %v3977, %v4163
      %v4188 = vadd.f32 %v3997, %v4163
      %v4189 = vadd.f32 %v4017, %v4163
      %v4190 = vadd.f32 %v4037, %v4163
      %v4191 = vadd.f32 %v4057, %v4163
      %v4192 = vadd.f32 %v4077, %v4163
      %v4193 = vadd.f32 %v4097, %v4163
      %v4194 = vadd.f32 %v4117, %v4163
      %v4195 = vadd.f32 %v4137, %v4163
      %v4196 = vadd.f32 %v4157, %v4163
      %v4197 = vsub.f32 0.0, %v4165
      %v4198 = vsub.f32 0.0, %v4166
      %v4199 = vsub.f32 0.0, %v4167
      %v4200 = vsub.f32 0.0, %v4168
      %v4201 = vsub.f32 0.0, %v4169
      %v4202 = vsub.f32 0.0, %v4170
      %v4203 = vsub.f32 0.0, %v4171
      %v4204 = vsub.f32 0.0, %v4172
      %v4205 = vsub.f32 0.0, %v4173
      %v4206 = vsub.f32 0.0, %v4174
      %v4207 = vsub.f32 0.0, %v4175
      %v4208 = vsub.f32 0.0, %v4176
      %v4209 = vsub.f32 0.0, %v4177
      %v4210 = vsub.f32 0.0, %v4178
      %v4211 = vsub.f32 0.0, %v4179
      %v4212 = vsub.f32 0.0, %v4180
      %v4213 = vsub.f32 0.0, %v4181
      %v4214 = vsub.f32 0.0, %v4182
      %v4215 = vsub.f32 0.0, %v4183
      %v4216 = vsub.f32 0.0, %v4184
      %v4217 = vsub.f32 0.0, %v4185
      %v4218 = vsub.f32 0.0, %v4186
      %v4219 = vsub.f32 0.0, %v4187
      %v4220 = vsub.f32 0.0, %v4188
      %v4221 = vsub.f32 0.0, %v4189
      %v4222 = vsub.f32 0.0, %v4190
      %v4223 = vsub.f32 0.0, %v4191
      %v4224 = vsub.f32 0.0, %v4192
      %v4225 = vsub.f32 0.0, %v4193
      %v4226 = vsub.f32 0.0, %v4194
      %v4227 = vsub.f32 0.0, %v4195
      %v4228 = vsub.f32 0.0, %v4196
      %v4229 = vmul.f32 %v4197, 1.442695
      %v4230 = vpow.pop %v4229
      %v4231 = vmul.f32 %v4198, 1.442695
      %v4232 = vpow.pop %v4231
      %v4233 = vmul.f32 %v4199, 1.442695
      %v4234 = vpow.pop %v4233
      %v4235 = vmul.f32 %v4200, 1.442695
      %v4236 = vpow.pop %v4235
      %v4237 = vmul.f32 %v4201, 1.442695
      %v4238 = vpow.pop %v4237
      %v4239 = vmul.f32 %v4202, 1.442695
      %v4240 = vpow.pop %v4239
      %v4241 = vmul.f32 %v4203, 1.442695
      %v4242 = vpow.pop %v4241
      %v4243 = vmul.f32 %v4204, 1.442695
      %v4244 = vpow.pop %v4243
      %v4245 = vmul.f32 %v4205, 1.442695
      %v4246 = vpow.pop %v4245
      %v4247 = vmul.f32 %v4206, 1.442695
      %v4248 = vpow.pop %v4247
      %v4249 = vmul.f32 %v4207, 1.442695
      %v4250 = vpow.pop %v4249
      %v4251 = vmul.f32 %v4208, 1.442695
      %v4252 = vpow.pop %v4251
      %v4253 = vmul.f32 %v4209, 1.442695
      %v4254 = vpow.pop %v4253
      %v4255 = vmul.f32 %v4210, 1.442695
      %v4256 = vpow.pop %v4255
      %v4257 = vmul.f32 %v4211, 1.442695
      %v4258 = vpow.pop %v4257
      %v4259 = vmul.f32 %v4212, 1.442695
      %v4260 = vpow.pop %v4259
      %v4261 = vmul.f32 %v4213, 1.442695
      %v4262 = vpow.pop %v4261
      %v4263 = vmul.f32 %v4214, 1.442695
      %v4264 = vpow.pop %v4263
      %v4265 = vmul.f32 %v4215, 1.442695
      %v4266 = vpow.pop %v4265
      %v4267 = vmul.f32 %v4216, 1.442695
      %v4268 = vpow.pop %v4267
      %v4269 = vmul.f32 %v4217, 1.442695
      %v4270 = vpow.pop %v4269
      %v4271 = vmul.f32 %v4218, 1.442695
      %v4272 = vpow.pop %v4271
      %v4273 = vmul.f32 %v4219, 1.442695
      %v4274 = vpow.pop %v4273
      %v4275 = vmul.f32 %v4220, 1.442695
      %v4276 = vpow.pop %v4275
      %v4277 = vmul.f32 %v4221, 1.442695
      %v4278 = vpow.pop %v4277
      %v4279 = vmul.f32 %v4222, 1.442695
      %v4280 = vpow.pop %v4279
      %v4281 = vmul.f32 %v4223, 1.442695
      %v4282 = vpow.pop %v4281
      %v4283 = vmul.f32 %v4224, 1.442695
      %v4284 = vpow.pop %v4283
      %v4285 = vmul.f32 %v4225, 1.442695
      %v4286 = vpow.pop %v4285
      %v4287 = vmul.f32 %v4226, 1.442695
      %v4288 = vpow.pop %v4287
      %v4289 = vmul.f32 %v4227, 1.442695
      %v4290 = vpow.pop %v4289
      %v4291 = vmul.f32 %v4228, 1.442695
      %v4292 = vpow.pop %v4291
      %v4293 = vadd.f32 %v4230, 1.0
      %v4294 = vadd.f32 %v4232, 1.0
      %v4295 = vadd.f32 %v4234, 1.0
      %v4296 = vadd.f32 %v4236, 1.0
      %v4297 = vadd.f32 %v4238, 1.0
      %v4298 = vadd.f32 %v4240, 1.0
      %v4299 = vadd.f32 %v4242, 1.0
      %v4300 = vadd.f32 %v4244, 1.0
      %v4301 = vadd.f32 %v4246, 1.0
      %v4302 = vadd.f32 %v4248, 1.0
      %v4303 = vadd.f32 %v4250, 1.0
      %v4304 = vadd.f32 %v4252, 1.0
      %v4305 = vadd.f32 %v4254, 1.0
      %v4306 = vadd.f32 %v4256, 1.0
      %v4307 = vadd.f32 %v4258, 1.0
      %v4308 = vadd.f32 %v4260, 1.0
      %v4309 = vadd.f32 %v4262, 1.0
      %v4310 = vadd.f32 %v4264, 1.0
      %v4311 = vadd.f32 %v4266, 1.0
      %v4312 = vadd.f32 %v4268, 1.0
      %v4313 = vadd.f32 %v4270, 1.0
      %v4314 = vadd.f32 %v4272, 1.0
      %v4315 = vadd.f32 %v4274, 1.0
      %v4316 = vadd.f32 %v4276, 1.0
      %v4317 = vadd.f32 %v4278, 1.0
      %v4318 = vadd.f32 %v4280, 1.0
      %v4319 = vadd.f32 %v4282, 1.0
      %v4320 = vadd.f32 %v4284, 1.0
      %v4321 = vadd.f32 %v4286, 1.0
      %v4322 = vadd.f32 %v4288, 1.0
      %v4323 = vadd.f32 %v4290, 1.0
      %v4324 = vadd.f32 %v4292, 1.0
      %v4325 = vrcp.pop %v4293
      %v4326 = vrcp.pop %v4294
      %v4327 = vrcp.pop %v4295
      %v4328 = vrcp.pop %v4296
      %v4329 = vrcp.pop %v4297
      %v4330 = vrcp.pop %v4298
      %v4331 = vrcp.pop %v4299
      %v4332 = vrcp.pop %v4300
      %v4333 = vrcp.pop %v4301
      %v4334 = vrcp.pop %v4302
      %v4335 = vrcp.pop %v4303
      %v4336 = vrcp.pop %v4304
      %v4337 = vrcp.pop %v4305
      %v4338 = vrcp.pop %v4306
      %v4339 = vrcp.pop %v4307
      %v4340 = vrcp.pop %v4308
      %v4341 = vrcp.pop %v4309
      %v4342 = vrcp.pop %v4310
      %v4343 = vrcp.pop %v4311
      %v4344 = vrcp.pop %v4312
      %v4345 = vrcp.pop %v4313
      %v4346 = vrcp.pop %v4314
      %v4347 = vrcp.pop %v4315
      %v4348 = vrcp.pop %v4316
      %v4349 = vrcp.pop %v4317
      %v4350 = vrcp.pop %v4318
      %v4351 = vrcp.pop %v4319
      %v4352 = vrcp.pop %v4320
      %v4353 = vrcp.pop %v4321
      %v4354 = vrcp.pop %v4322
      %v4355 = vrcp.pop %v4323
      %v4356 = vrcp.pop %v4324
      %v4357 = vmul.f32 %v4165, %v4325
      %v4358 = vmul.f32 %v4166, %v4326
      %v4359 = vmul.f32 %v4167, %v4327
      %v4360 = vmul.f32 %v4168, %v4328
      %v4361 = vmul.f32 %v4169, %v4329
      %v4362 = vmul.f32 %v4170, %v4330
      %v4363 = vmul.f32 %v4171, %v4331
      %v4364 = vmul.f32 %v4172, %v4332
      %v4365 = vmul.f32 %v4173, %v4333
      %v4366 = vmul.f32 %v4174, %v4334
      %v4367 = vmul.f32 %v4175, %v4335
      %v4368 = vmul.f32 %v4176, %v4336
      %v4369 = vmul.f32 %v4177, %v4337
      %v4370 = vmul.f32 %v4178, %v4338
      %v4371 = vmul.f32 %v4179, %v4339
      %v4372 = vmul.f32 %v4180, %v4340
      %v4373 = vmul.f32 %v4181, %v4341
      %v4374 = vmul.f32 %v4182, %v4342
      %v4375 = vmul.f32 %v4183, %v4343
      %v4376 = vmul.f32 %v4184, %v4344
      %v4377 = vmul.f32 %v4185, %v4345
      %v4378 = vmul.f32 %v4186, %v4346
      %v4379 = vmul.f32 %v4187, %v4347
      %v4380 = vmul.f32 %v4188, %v4348
      %v4381 = vmul.f32 %v4189, %v4349
      %v4382 = vmul.f32 %v4190, %v4350
      %v4383 = vmul.f32 %v4191, %v4351
      %v4384 = vmul.f32 %v4192, %v4352
      %v4385 = vmul.f32 %v4193, %v4353
      %v4386 = vmul.f32 %v4194, %v4354
      %v4387 = vmul.f32 %v4195, %v4355
      %v4388 = vmul.f32 %v4196, %v4356
      %v4389 = vld [vmem:[%s9] sm:$0x7]
      %v4390 = vld [vmem:[%s10] sm:$0x7]
      %4392 = vset.pattern.permute.xlu0 0
      %4393 = vperm.xlu0 %4392, %v4390
      %v4394 = vpop.permute.xlu0 %4393
      %vm4396 = vcmask 23552
      %v4398 = vsel %vm4396, %v4389, 0
      %vm4400 = vcmask 1042432
      %v4402 = vsel %vm4400, %v4357, 0
      %v4405 = vsel %vm4400, %v4358, 0
      %v4408 = vsel %vm4400, %v4359, 0
      %v4411 = vsel %vm4400, %v4360, 0
      %v4414 = vsel %vm4400, %v4361, 0
      %v4417 = vsel %vm4400, %v4362, 0
      %v4420 = vsel %vm4400, %v4363, 0
      %v4423 = vsel %vm4400, %v4364, 0
      %v4426 = vsel %vm4400, %v4365, 0
      %v4429 = vsel %vm4400, %v4366, 0
      %v4432 = vsel %vm4400, %v4367, 0
      %v4435 = vsel %vm4400, %v4368, 0
      %v4438 = vsel %vm4400, %v4369, 0
      %v4441 = vsel %vm4400, %v4370, 0
      %v4444 = vsel %vm4400, %v4371, 0
      %v4447 = vsel %vm4400, %v4372, 0
      %v4450 = vsel %vm4400, %v4373, 0
      %v4453 = vsel %vm4400, %v4374, 0
      %v4456 = vsel %vm4400, %v4375, 0
      %v4459 = vsel %vm4400, %v4376, 0
      %v4462 = vsel %vm4400, %v4377, 0
      %v4465 = vsel %vm4400, %v4378, 0
      %v4468 = vsel %vm4400, %v4379, 0
      %v4471 = vsel %vm4400, %v4380, 0
      %v4474 = vsel %vm4400, %v4381, 0
      %v4477 = vsel %vm4400, %v4382, 0
      %v4480 = vsel %vm4400, %v4383, 0
      %v4483 = vsel %vm4400, %v4384, 0
      %v4486 = vsel %vm4400, %v4385, 0
      %v4489 = vsel %vm4400, %v4386, 0
      %v4492 = vsel %vm4400, %v4387, 0
      %v4495 = vsel %vm4400, %v4388, 0
      %4497 = vmatpush.msra.mxu0 0.0
      %4498 = vmatpush.msra.mxu0 0.0
      %4499 = vmatpush.msra.mxu0 0.0
      %4500 = vmatpush.msra.mxu0 0.0
      %4501 = vmatpush.msra.mxu0 0.0
      %4502 = vmatpush.msra.mxu0 0.0
      %4503 = vmatpush.msra.mxu0 0.0
      %4504 = vmatpush.msra.mxu0 0.0
      %4505 = vmatpush.msra.mxu0 0.0
      %4506 = vmatpush.msra.mxu0 0.0
      %4507 = vmatpush.msra.mxu0 0.0
      %4508 = vmatpush.msra.mxu0 0.0
      %4509 = vmatpush.msra.mxu0 0.0
      %4510 = vmatpush.msra.mxu0 0.0
      %4511 = vmatpush.msra.mxu0 0.0
      %4512 = vmatpush.msra.mxu0 %v4402
      %4513 = vmatmul.f32.gmra.mxu0 %v4398
      %v4514 = vpop.f32.mrf.mxu0
      %v4515 = vadd.f32 %v4394, %v4514
      %4516 = vdwg.mxu0
      %4517 = vmatpush.msra.mxu0 0.0
      %4518 = vmatpush.msra.mxu0 0.0
      %4519 = vmatpush.msra.mxu0 0.0
      %4520 = vmatpush.msra.mxu0 0.0
      %4521 = vmatpush.msra.mxu0 0.0
      %4522 = vmatpush.msra.mxu0 0.0
      %4523 = vmatpush.msra.mxu0 0.0
      %4524 = vmatpush.msra.mxu0 0.0
      %4525 = vmatpush.msra.mxu0 0.0
      %4526 = vmatpush.msra.mxu0 0.0
      %4527 = vmatpush.msra.mxu0 0.0
      %4528 = vmatpush.msra.mxu0 0.0
      %4529 = vmatpush.msra.mxu0 0.0
      %4530 = vmatpush.msra.mxu0 0.0
      %4531 = vmatpush.msra.mxu0 0.0
      %4532 = vmatpush.msra.mxu0 %v4405
      %4533 = vmatmul.f32.gmra.mxu0 %v4398
      %v4534 = vpop.f32.mrf.mxu0
      %v4535 = vadd.f32 %v4394, %v4534
      %4536 = vdwg.mxu0
      %4537 = vmatpush.msra.mxu0 0.0
      %4538 = vmatpush.msra.mxu0 0.0
      %4539 = vmatpush.msra.mxu0 0.0
      %4540 = vmatpush.msra.mxu0 0.0
      %4541 = vmatpush.msra.mxu0 0.0
      %4542 = vmatpush.msra.mxu0 0.0
      %4543 = vmatpush.msra.mxu0 0.0
      %4544 = vmatpush.msra.mxu0 0.0
      %4545 = vmatpush.msra.mxu0 0.0
      %4546 = vmatpush.msra.mxu0 0.0
      %4547 = vmatpush.msra.mxu0 0.0
      %4548 = vmatpush.msra.mxu0 0.0
      %4549 = vmatpush.msra.mxu0 0.0
      %4550 = vmatpush.msra.mxu0 0.0
      %4551 = vmatpush.msra.mxu0 0.0
      %4552 = vmatpush.msra.mxu0 %v4408
      %4553 = vmatmul.f32.gmra.mxu0 %v4398
      %v4554 = vpop.f32.mrf.mxu0
      %v4555 = vadd.f32 %v4394, %v4554
      %4556 = vdwg.mxu0
      %4557 = vmatpush.msra.mxu0 0.0
      %4558 = vmatpush.msra.mxu0 0.0
      %4559 = vmatpush.msra.mxu0 0.0
      %4560 = vmatpush.msra.mxu0 0.0
      %4561 = vmatpush.msra.mxu0 0.0
      %4562 = vmatpush.msra.mxu0 0.0
      %4563 = vmatpush.msra.mxu0 0.0
      %4564 = vmatpush.msra.mxu0 0.0
      %4565 = vmatpush.msra.mxu0 0.0
      %4566 = vmatpush.msra.mxu0 0.0
      %4567 = vmatpush.msra.mxu0 0.0
      %4568 = vmatpush.msra.mxu0 0.0
      %4569 = vmatpush.msra.mxu0 0.0
      %4570 = vmatpush.msra.mxu0 0.0
      %4571 = vmatpush.msra.mxu0 0.0
      %4572 = vmatpush.msra.mxu0 %v4411
      %4573 = vmatmul.f32.gmra.mxu0 %v4398
      %v4574 = vpop.f32.mrf.mxu0
      %v4575 = vadd.f32 %v4394, %v4574
      %4576 = vdwg.mxu0
      %4577 = vmatpush.msra.mxu0 0.0
      %4578 = vmatpush.msra.mxu0 0.0
      %4579 = vmatpush.msra.mxu0 0.0
      %4580 = vmatpush.msra.mxu0 0.0
      %4581 = vmatpush.msra.mxu0 0.0
      %4582 = vmatpush.msra.mxu0 0.0
      %4583 = vmatpush.msra.mxu0 0.0
      %4584 = vmatpush.msra.mxu0 0.0
      %4585 = vmatpush.msra.mxu0 0.0
      %4586 = vmatpush.msra.mxu0 0.0
      %4587 = vmatpush.msra.mxu0 0.0
      %4588 = vmatpush.msra.mxu0 0.0
      %4589 = vmatpush.msra.mxu0 0.0
      %4590 = vmatpush.msra.mxu0 0.0
      %4591 = vmatpush.msra.mxu0 0.0
      %4592 = vmatpush.msra.mxu0 %v4414
      %4593 = vmatmul.f32.gmra.mxu0 %v4398
      %v4594 = vpop.f32.mrf.mxu0
      %v4595 = vadd.f32 %v4394, %v4594
      %4596 = vdwg.mxu0
      %4597 = vmatpush.msra.mxu0 0.0
      %4598 = vmatpush.msra.mxu0 0.0
      %4599 = vmatpush.msra.mxu0 0.0
      %4600 = vmatpush.msra.mxu0 0.0
      %4601 = vmatpush.msra.mxu0 0.0
      %4602 = vmatpush.msra.mxu0 0.0
      %4603 = vmatpush.msra.mxu0 0.0
      %4604 = vmatpush.msra.mxu0 0.0
      %4605 = vmatpush.msra.mxu0 0.0
      %4606 = vmatpush.msra.mxu0 0.0
      %4607 = vmatpush.msra.mxu0 0.0
      %4608 = vmatpush.msra.mxu0 0.0
      %4609 = vmatpush.msra.mxu0 0.0
      %4610 = vmatpush.msra.mxu0 0.0
      %4611 = vmatpush.msra.mxu0 0.0
      %4612 = vmatpush.msra.mxu0 %v4417
      %4613 = vmatmul.f32.gmra.mxu0 %v4398
      %v4614 = vpop.f32.mrf.mxu0
      %v4615 = vadd.f32 %v4394, %v4614
      %4616 = vdwg.mxu0
      %4617 = vmatpush.msra.mxu0 0.0
      %4618 = vmatpush.msra.mxu0 0.0
      %4619 = vmatpush.msra.mxu0 0.0
      %4620 = vmatpush.msra.mxu0 0.0
      %4621 = vmatpush.msra.mxu0 0.0
      %4622 = vmatpush.msra.mxu0 0.0
      %4623 = vmatpush.msra.mxu0 0.0
      %4624 = vmatpush.msra.mxu0 0.0
      %4625 = vmatpush.msra.mxu0 0.0
      %4626 = vmatpush.msra.mxu0 0.0
      %4627 = vmatpush.msra.mxu0 0.0
      %4628 = vmatpush.msra.mxu0 0.0
      %4629 = vmatpush.msra.mxu0 0.0
      %4630 = vmatpush.msra.mxu0 0.0
      %4631 = vmatpush.msra.mxu0 0.0
      %4632 = vmatpush.msra.mxu0 %v4420
      %4633 = vmatmul.f32.gmra.mxu0 %v4398
      %v4634 = vpop.f32.mrf.mxu0
      %v4635 = vadd.f32 %v4394, %v4634
      %4636 = vdwg.mxu0
      %4637 = vmatpush.msra.mxu0 0.0
      %4638 = vmatpush.msra.mxu0 0.0
      %4639 = vmatpush.msra.mxu0 0.0
      %4640 = vmatpush.msra.mxu0 0.0
      %4641 = vmatpush.msra.mxu0 0.0
      %4642 = vmatpush.msra.mxu0 0.0
      %4643 = vmatpush.msra.mxu0 0.0
      %4644 = vmatpush.msra.mxu0 0.0
      %4645 = vmatpush.msra.mxu0 0.0
      %4646 = vmatpush.msra.mxu0 0.0
      %4647 = vmatpush.msra.mxu0 0.0
      %4648 = vmatpush.msra.mxu0 0.0
      %4649 = vmatpush.msra.mxu0 0.0
      %4650 = vmatpush.msra.mxu0 0.0
      %4651 = vmatpush.msra.mxu0 0.0
      %4652 = vmatpush.msra.mxu0 %v4423
      %4653 = vmatmul.f32.gmra.mxu0 %v4398
      %v4654 = vpop.f32.mrf.mxu0
      %v4655 = vadd.f32 %v4394, %v4654
      %4656 = vdwg.mxu0
      %4657 = vmatpush.msra.mxu0 0.0
      %4658 = vmatpush.msra.mxu0 0.0
      %4659 = vmatpush.msra.mxu0 0.0
      %4660 = vmatpush.msra.mxu0 0.0
      %4661 = vmatpush.msra.mxu0 0.0
      %4662 = vmatpush.msra.mxu0 0.0
      %4663 = vmatpush.msra.mxu0 0.0
      %4664 = vmatpush.msra.mxu0 0.0
      %4665 = vmatpush.msra.mxu0 0.0
      %4666 = vmatpush.msra.mxu0 0.0
      %4667 = vmatpush.msra.mxu0 0.0
      %4668 = vmatpush.msra.mxu0 0.0
      %4669 = vmatpush.msra.mxu0 0.0
      %4670 = vmatpush.msra.mxu0 0.0
      %4671 = vmatpush.msra.mxu0 0.0
      %4672 = vmatpush.msra.mxu0 %v4426
      %4673 = vmatmul.f32.gmra.mxu0 %v4398
      %v4674 = vpop.f32.mrf.mxu0
      %v4675 = vadd.f32 %v4394, %v4674
      %4676 = vdwg.mxu0
      %4677 = vmatpush.msra.mxu0 0.0
      %4678 = vmatpush.msra.mxu0 0.0
      %4679 = vmatpush.msra.mxu0 0.0
      %4680 = vmatpush.msra.mxu0 0.0
      %4681 = vmatpush.msra.mxu0 0.0
      %4682 = vmatpush.msra.mxu0 0.0
      %4683 = vmatpush.msra.mxu0 0.0
      %4684 = vmatpush.msra.mxu0 0.0
      %4685 = vmatpush.msra.mxu0 0.0
      %4686 = vmatpush.msra.mxu0 0.0
      %4687 = vmatpush.msra.mxu0 0.0
      %4688 = vmatpush.msra.mxu0 0.0
      %4689 = vmatpush.msra.mxu0 0.0
      %4690 = vmatpush.msra.mxu0 0.0
      %4691 = vmatpush.msra.mxu0 0.0
      %4692 = vmatpush.msra.mxu0 %v4429
      %4693 = vmatmul.f32.gmra.mxu0 %v4398
      %v4694 = vpop.f32.mrf.mxu0
      %v4695 = vadd.f32 %v4394, %v4694
      %4696 = vdwg.mxu0
      %4697 = vmatpush.msra.mxu0 0.0
      %4698 = vmatpush.msra.mxu0 0.0
      %4699 = vmatpush.msra.mxu0 0.0
      %4700 = vmatpush.msra.mxu0 0.0
      %4701 = vmatpush.msra.mxu0 0.0
      %4702 = vmatpush.msra.mxu0 0.0
      %4703 = vmatpush.msra.mxu0 0.0
      %4704 = vmatpush.msra.mxu0 0.0
      %4705 = vmatpush.msra.mxu0 0.0
      %4706 = vmatpush.msra.mxu0 0.0
      %4707 = vmatpush.msra.mxu0 0.0
      %4708 = vmatpush.msra.mxu0 0.0
      %4709 = vmatpush.msra.mxu0 0.0
      %4710 = vmatpush.msra.mxu0 0.0
      %4711 = vmatpush.msra.mxu0 0.0
      %4712 = vmatpush.msra.mxu0 %v4432
      %4713 = vmatmul.f32.gmra.mxu0 %v4398
      %v4714 = vpop.f32.mrf.mxu0
      %v4715 = vadd.f32 %v4394, %v4714
      %4716 = vdwg.mxu0
      %4717 = vmatpush.msra.mxu0 0.0
      %4718 = vmatpush.msra.mxu0 0.0
      %4719 = vmatpush.msra.mxu0 0.0
      %4720 = vmatpush.msra.mxu0 0.0
      %4721 = vmatpush.msra.mxu0 0.0
      %4722 = vmatpush.msra.mxu0 0.0
      %4723 = vmatpush.msra.mxu0 0.0
      %4724 = vmatpush.msra.mxu0 0.0
      %4725 = vmatpush.msra.mxu0 0.0
      %4726 = vmatpush.msra.mxu0 0.0
      %4727 = vmatpush.msra.mxu0 0.0
      %4728 = vmatpush.msra.mxu0 0.0
      %4729 = vmatpush.msra.mxu0 0.0
      %4730 = vmatpush.msra.mxu0 0.0
      %4731 = vmatpush.msra.mxu0 0.0
      %4732 = vmatpush.msra.mxu0 %v4435
      %4733 = vmatmul.f32.gmra.mxu0 %v4398
      %v4734 = vpop.f32.mrf.mxu0
      %v4735 = vadd.f32 %v4394, %v4734
      %4736 = vdwg.mxu0
      %4737 = vmatpush.msra.mxu0 0.0
      %4738 = vmatpush.msra.mxu0 0.0
      %4739 = vmatpush.msra.mxu0 0.0
      %4740 = vmatpush.msra.mxu0 0.0
      %4741 = vmatpush.msra.mxu0 0.0
      %4742 = vmatpush.msra.mxu0 0.0
      %4743 = vmatpush.msra.mxu0 0.0
      %4744 = vmatpush.msra.mxu0 0.0
      %4745 = vmatpush.msra.mxu0 0.0
      %4746 = vmatpush.msra.mxu0 0.0
      %4747 = vmatpush.msra.mxu0 0.0
      %4748 = vmatpush.msra.mxu0 0.0
      %4749 = vmatpush.msra.mxu0 0.0
      %4750 = vmatpush.msra.mxu0 0.0
      %4751 = vmatpush.msra.mxu0 0.0
      %4752 = vmatpush.msra.mxu0 %v4438
      %4753 = vmatmul.f32.gmra.mxu0 %v4398
      %v4754 = vpop.f32.mrf.mxu0
      %v4755 = vadd.f32 %v4394, %v4754
      %4756 = vdwg.mxu0
      %4757 = vmatpush.msra.mxu0 0.0
      %4758 = vmatpush.msra.mxu0 0.0
      %4759 = vmatpush.msra.mxu0 0.0
      %4760 = vmatpush.msra.mxu0 0.0
      %4761 = vmatpush.msra.mxu0 0.0
      %4762 = vmatpush.msra.mxu0 0.0
      %4763 = vmatpush.msra.mxu0 0.0
      %4764 = vmatpush.msra.mxu0 0.0
      %4765 = vmatpush.msra.mxu0 0.0
      %4766 = vmatpush.msra.mxu0 0.0
      %4767 = vmatpush.msra.mxu0 0.0
      %4768 = vmatpush.msra.mxu0 0.0
      %4769 = vmatpush.msra.mxu0 0.0
      %4770 = vmatpush.msra.mxu0 0.0
      %4771 = vmatpush.msra.mxu0 0.0
      %4772 = vmatpush.msra.mxu0 %v4441
      %4773 = vmatmul.f32.gmra.mxu0 %v4398
      %v4774 = vpop.f32.mrf.mxu0
      %v4775 = vadd.f32 %v4394, %v4774
      %4776 = vdwg.mxu0
      %4777 = vmatpush.msra.mxu0 0.0
      %4778 = vmatpush.msra.mxu0 0.0
      %4779 = vmatpush.msra.mxu0 0.0
      %4780 = vmatpush.msra.mxu0 0.0
      %4781 = vmatpush.msra.mxu0 0.0
      %4782 = vmatpush.msra.mxu0 0.0
      %4783 = vmatpush.msra.mxu0 0.0
      %4784 = vmatpush.msra.mxu0 0.0
      %4785 = vmatpush.msra.mxu0 0.0
      %4786 = vmatpush.msra.mxu0 0.0
      %4787 = vmatpush.msra.mxu0 0.0
      %4788 = vmatpush.msra.mxu0 0.0
      %4789 = vmatpush.msra.mxu0 0.0
      %4790 = vmatpush.msra.mxu0 0.0
      %4791 = vmatpush.msra.mxu0 0.0
      %4792 = vmatpush.msra.mxu0 %v4444
      %4793 = vmatmul.f32.gmra.mxu0 %v4398
      %v4794 = vpop.f32.mrf.mxu0
      %v4795 = vadd.f32 %v4394, %v4794
      %4796 = vdwg.mxu0
      %4797 = vmatpush.msra.mxu0 0.0
      %4798 = vmatpush.msra.mxu0 0.0
      %4799 = vmatpush.msra.mxu0 0.0
      %4800 = vmatpush.msra.mxu0 0.0
      %4801 = vmatpush.msra.mxu0 0.0
      %4802 = vmatpush.msra.mxu0 0.0
      %4803 = vmatpush.msra.mxu0 0.0
      %4804 = vmatpush.msra.mxu0 0.0
      %4805 = vmatpush.msra.mxu0 0.0
      %4806 = vmatpush.msra.mxu0 0.0
      %4807 = vmatpush.msra.mxu0 0.0
      %4808 = vmatpush.msra.mxu0 0.0
      %4809 = vmatpush.msra.mxu0 0.0
      %4810 = vmatpush.msra.mxu0 0.0
      %4811 = vmatpush.msra.mxu0 0.0
      %4812 = vmatpush.msra.mxu0 %v4447
      %4813 = vmatmul.f32.gmra.mxu0 %v4398
      %v4814 = vpop.f32.mrf.mxu0
      %v4815 = vadd.f32 %v4394, %v4814
      %4816 = vdwg.mxu0
      %4817 = vmatpush.msra.mxu0 0.0
      %4818 = vmatpush.msra.mxu0 0.0
      %4819 = vmatpush.msra.mxu0 0.0
      %4820 = vmatpush.msra.mxu0 0.0
      %4821 = vmatpush.msra.mxu0 0.0
      %4822 = vmatpush.msra.mxu0 0.0
      %4823 = vmatpush.msra.mxu0 0.0
      %4824 = vmatpush.msra.mxu0 0.0
      %4825 = vmatpush.msra.mxu0 0.0
      %4826 = vmatpush.msra.mxu0 0.0
      %4827 = vmatpush.msra.mxu0 0.0
      %4828 = vmatpush.msra.mxu0 0.0
      %4829 = vmatpush.msra.mxu0 0.0
      %4830 = vmatpush.msra.mxu0 0.0
      %4831 = vmatpush.msra.mxu0 0.0
      %4832 = vmatpush.msra.mxu0 %v4450
      %4833 = vmatmul.f32.gmra.mxu0 %v4398
      %v4834 = vpop.f32.mrf.mxu0
      %v4835 = vadd.f32 %v4394, %v4834
      %4836 = vdwg.mxu0
      %4837 = vmatpush.msra.mxu0 0.0
      %4838 = vmatpush.msra.mxu0 0.0
      %4839 = vmatpush.msra.mxu0 0.0
      %4840 = vmatpush.msra.mxu0 0.0
      %4841 = vmatpush.msra.mxu0 0.0
      %4842 = vmatpush.msra.mxu0 0.0
      %4843 = vmatpush.msra.mxu0 0.0
      %4844 = vmatpush.msra.mxu0 0.0
      %4845 = vmatpush.msra.mxu0 0.0
      %4846 = vmatpush.msra.mxu0 0.0
      %4847 = vmatpush.msra.mxu0 0.0
      %4848 = vmatpush.msra.mxu0 0.0
      %4849 = vmatpush.msra.mxu0 0.0
      %4850 = vmatpush.msra.mxu0 0.0
      %4851 = vmatpush.msra.mxu0 0.0
      %4852 = vmatpush.msra.mxu0 %v4453
      %4853 = vmatmul.f32.gmra.mxu0 %v4398
      %v4854 = vpop.f32.mrf.mxu0
      %v4855 = vadd.f32 %v4394, %v4854
      %4856 = vdwg.mxu0
      %4857 = vmatpush.msra.mxu0 0.0
      %4858 = vmatpush.msra.mxu0 0.0
      %4859 = vmatpush.msra.mxu0 0.0
      %4860 = vmatpush.msra.mxu0 0.0
      %4861 = vmatpush.msra.mxu0 0.0
      %4862 = vmatpush.msra.mxu0 0.0
      %4863 = vmatpush.msra.mxu0 0.0
      %4864 = vmatpush.msra.mxu0 0.0
      %4865 = vmatpush.msra.mxu0 0.0
      %4866 = vmatpush.msra.mxu0 0.0
      %4867 = vmatpush.msra.mxu0 0.0
      %4868 = vmatpush.msra.mxu0 0.0
      %4869 = vmatpush.msra.mxu0 0.0
      %4870 = vmatpush.msra.mxu0 0.0
      %4871 = vmatpush.msra.mxu0 0.0
      %4872 = vmatpush.msra.mxu0 %v4456
      %4873 = vmatmul.f32.gmra.mxu0 %v4398
      %v4874 = vpop.f32.mrf.mxu0
      %v4875 = vadd.f32 %v4394, %v4874
      %4876 = vdwg.mxu0
      %4877 = vmatpush.msra.mxu0 0.0
      %4878 = vmatpush.msra.mxu0 0.0
      %4879 = vmatpush.msra.mxu0 0.0
      %4880 = vmatpush.msra.mxu0 0.0
      %4881 = vmatpush.msra.mxu0 0.0
      %4882 = vmatpush.msra.mxu0 0.0
      %4883 = vmatpush.msra.mxu0 0.0
      %4884 = vmatpush.msra.mxu0 0.0
      %4885 = vmatpush.msra.mxu0 0.0
      %4886 = vmatpush.msra.mxu0 0.0
      %4887 = vmatpush.msra.mxu0 0.0
      %4888 = vmatpush.msra.mxu0 0.0
      %4889 = vmatpush.msra.mxu0 0.0
      %4890 = vmatpush.msra.mxu0 0.0
      %4891 = vmatpush.msra.mxu0 0.0
      %4892 = vmatpush.msra.mxu0 %v4459
      %4893 = vmatmul.f32.gmra.mxu0 %v4398
      %v4894 = vpop.f32.mrf.mxu0
      %v4895 = vadd.f32 %v4394, %v4894
      %4896 = vdwg.mxu0
      %4897 = vmatpush.msra.mxu0 0.0
      %4898 = vmatpush.msra.mxu0 0.0
      %4899 = vmatpush.msra.mxu0 0.0
      %4900 = vmatpush.msra.mxu0 0.0
      %4901 = vmatpush.msra.mxu0 0.0
      %4902 = vmatpush.msra.mxu0 0.0
      %4903 = vmatpush.msra.mxu0 0.0
      %4904 = vmatpush.msra.mxu0 0.0
      %4905 = vmatpush.msra.mxu0 0.0
      %4906 = vmatpush.msra.mxu0 0.0
      %4907 = vmatpush.msra.mxu0 0.0
      %4908 = vmatpush.msra.mxu0 0.0
      %4909 = vmatpush.msra.mxu0 0.0
      %4910 = vmatpush.msra.mxu0 0.0
      %4911 = vmatpush.msra.mxu0 0.0
      %4912 = vmatpush.msra.mxu0 %v4462
      %4913 = vmatmul.f32.gmra.mxu0 %v4398
      %v4914 = vpop.f32.mrf.mxu0
      %v4915 = vadd.f32 %v4394, %v4914
      %4916 = vdwg.mxu0
      %4917 = vmatpush.msra.mxu0 0.0
      %4918 = vmatpush.msra.mxu0 0.0
      %4919 = vmatpush.msra.mxu0 0.0
      %4920 = vmatpush.msra.mxu0 0.0
      %4921 = vmatpush.msra.mxu0 0.0
      %4922 = vmatpush.msra.mxu0 0.0
      %4923 = vmatpush.msra.mxu0 0.0
      %4924 = vmatpush.msra.mxu0 0.0
      %4925 = vmatpush.msra.mxu0 0.0
      %4926 = vmatpush.msra.mxu0 0.0
      %4927 = vmatpush.msra.mxu0 0.0
      %4928 = vmatpush.msra.mxu0 0.0
      %4929 = vmatpush.msra.mxu0 0.0
      %4930 = vmatpush.msra.mxu0 0.0
      %4931 = vmatpush.msra.mxu0 0.0
      %4932 = vmatpush.msra.mxu0 %v4465
      %4933 = vmatmul.f32.gmra.mxu0 %v4398
      %v4934 = vpop.f32.mrf.mxu0
      %v4935 = vadd.f32 %v4394, %v4934
      %4936 = vdwg.mxu0
      %4937 = vmatpush.msra.mxu0 0.0
      %4938 = vmatpush.msra.mxu0 0.0
      %4939 = vmatpush.msra.mxu0 0.0
      %4940 = vmatpush.msra.mxu0 0.0
      %4941 = vmatpush.msra.mxu0 0.0
      %4942 = vmatpush.msra.mxu0 0.0
      %4943 = vmatpush.msra.mxu0 0.0
      %4944 = vmatpush.msra.mxu0 0.0
      %4945 = vmatpush.msra.mxu0 0.0
      %4946 = vmatpush.msra.mxu0 0.0
      %4947 = vmatpush.msra.mxu0 0.0
      %4948 = vmatpush.msra.mxu0 0.0
      %4949 = vmatpush.msra.mxu0 0.0
      %4950 = vmatpush.msra.mxu0 0.0
      %4951 = vmatpush.msra.mxu0 0.0
      %4952 = vmatpush.msra.mxu0 %v4468
      %4953 = vmatmul.f32.gmra.mxu0 %v4398
      %v4954 = vpop.f32.mrf.mxu0
      %v4955 = vadd.f32 %v4394, %v4954
      %4956 = vdwg.mxu0
      %4957 = vmatpush.msra.mxu0 0.0
      %4958 = vmatpush.msra.mxu0 0.0
      %4959 = vmatpush.msra.mxu0 0.0
      %4960 = vmatpush.msra.mxu0 0.0
      %4961 = vmatpush.msra.mxu0 0.0
      %4962 = vmatpush.msra.mxu0 0.0
      %4963 = vmatpush.msra.mxu0 0.0
      %4964 = vmatpush.msra.mxu0 0.0
      %4965 = vmatpush.msra.mxu0 0.0
      %4966 = vmatpush.msra.mxu0 0.0
      %4967 = vmatpush.msra.mxu0 0.0
      %4968 = vmatpush.msra.mxu0 0.0
      %4969 = vmatpush.msra.mxu0 0.0
      %4970 = vmatpush.msra.mxu0 0.0
      %4971 = vmatpush.msra.mxu0 0.0
      %4972 = vmatpush.msra.mxu0 %v4471
      %4973 = vmatmul.f32.gmra.mxu0 %v4398
      %v4974 = vpop.f32.mrf.mxu0
      %v4975 = vadd.f32 %v4394, %v4974
      %4976 = vdwg.mxu0
      %4977 = vmatpush.msra.mxu0 0.0
      %4978 = vmatpush.msra.mxu0 0.0
      %4979 = vmatpush.msra.mxu0 0.0
      %4980 = vmatpush.msra.mxu0 0.0
      %4981 = vmatpush.msra.mxu0 0.0
      %4982 = vmatpush.msra.mxu0 0.0
      %4983 = vmatpush.msra.mxu0 0.0
      %4984 = vmatpush.msra.mxu0 0.0
      %4985 = vmatpush.msra.mxu0 0.0
      %4986 = vmatpush.msra.mxu0 0.0
      %4987 = vmatpush.msra.mxu0 0.0
      %4988 = vmatpush.msra.mxu0 0.0
      %4989 = vmatpush.msra.mxu0 0.0
      %4990 = vmatpush.msra.mxu0 0.0
      %4991 = vmatpush.msra.mxu0 0.0
      %4992 = vmatpush.msra.mxu0 %v4474
      %4993 = vmatmul.f32.gmra.mxu0 %v4398
      %v4994 = vpop.f32.mrf.mxu0
      %v4995 = vadd.f32 %v4394, %v4994
      %4996 = vdwg.mxu0
      %4997 = vmatpush.msra.mxu0 0.0
      %4998 = vmatpush.msra.mxu0 0.0
      %4999 = vmatpush.msra.mxu0 0.0
      %5000 = vmatpush.msra.mxu0 0.0
      %5001 = vmatpush.msra.mxu0 0.0
      %5002 = vmatpush.msra.mxu0 0.0
      %5003 = vmatpush.msra.mxu0 0.0
      %5004 = vmatpush.msra.mxu0 0.0
      %5005 = vmatpush.msra.mxu0 0.0
      %5006 = vmatpush.msra.mxu0 0.0
      %5007 = vmatpush.msra.mxu0 0.0
      %5008 = vmatpush.msra.mxu0 0.0
      %5009 = vmatpush.msra.mxu0 0.0
      %5010 = vmatpush.msra.mxu0 0.0
      %5011 = vmatpush.msra.mxu0 0.0
      %5012 = vmatpush.msra.mxu0 %v4477
      %5013 = vmatmul.f32.gmra.mxu0 %v4398
      %v5014 = vpop.f32.mrf.mxu0
      %v5015 = vadd.f32 %v4394, %v5014
      %5016 = vdwg.mxu0
      %5017 = vmatpush.msra.mxu0 0.0
      %5018 = vmatpush.msra.mxu0 0.0
      %5019 = vmatpush.msra.mxu0 0.0
      %5020 = vmatpush.msra.mxu0 0.0
      %5021 = vmatpush.msra.mxu0 0.0
      %5022 = vmatpush.msra.mxu0 0.0
      %5023 = vmatpush.msra.mxu0 0.0
      %5024 = vmatpush.msra.mxu0 0.0
      %5025 = vmatpush.msra.mxu0 0.0
      %5026 = vmatpush.msra.mxu0 0.0
      %5027 = vmatpush.msra.mxu0 0.0
      %5028 = vmatpush.msra.mxu0 0.0
      %5029 = vmatpush.msra.mxu0 0.0
      %5030 = vmatpush.msra.mxu0 0.0
      %5031 = vmatpush.msra.mxu0 0.0
      %5032 = vmatpush.msra.mxu0 %v4480
      %5033 = vmatmul.f32.gmra.mxu0 %v4398
      %v5034 = vpop.f32.mrf.mxu0
      %v5035 = vadd.f32 %v4394, %v5034
      %5036 = vdwg.mxu0
      %5037 = vmatpush.msra.mxu0 0.0
      %5038 = vmatpush.msra.mxu0 0.0
      %5039 = vmatpush.msra.mxu0 0.0
      %5040 = vmatpush.msra.mxu0 0.0
      %5041 = vmatpush.msra.mxu0 0.0
      %5042 = vmatpush.msra.mxu0 0.0
      %5043 = vmatpush.msra.mxu0 0.0
      %5044 = vmatpush.msra.mxu0 0.0
      %5045 = vmatpush.msra.mxu0 0.0
      %5046 = vmatpush.msra.mxu0 0.0
      %5047 = vmatpush.msra.mxu0 0.0
      %5048 = vmatpush.msra.mxu0 0.0
      %5049 = vmatpush.msra.mxu0 0.0
      %5050 = vmatpush.msra.mxu0 0.0
      %5051 = vmatpush.msra.mxu0 0.0
      %5052 = vmatpush.msra.mxu0 %v4483
      %5053 = vmatmul.f32.gmra.mxu0 %v4398
      %v5054 = vpop.f32.mrf.mxu0
      %v5055 = vadd.f32 %v4394, %v5054
      %5056 = vdwg.mxu0
      %5057 = vmatpush.msra.mxu0 0.0
      %5058 = vmatpush.msra.mxu0 0.0
      %5059 = vmatpush.msra.mxu0 0.0
      %5060 = vmatpush.msra.mxu0 0.0
      %5061 = vmatpush.msra.mxu0 0.0
      %5062 = vmatpush.msra.mxu0 0.0
      %5063 = vmatpush.msra.mxu0 0.0
      %5064 = vmatpush.msra.mxu0 0.0
      %5065 = vmatpush.msra.mxu0 0.0
      %5066 = vmatpush.msra.mxu0 0.0
      %5067 = vmatpush.msra.mxu0 0.0
      %5068 = vmatpush.msra.mxu0 0.0
      %5069 = vmatpush.msra.mxu0 0.0
      %5070 = vmatpush.msra.mxu0 0.0
      %5071 = vmatpush.msra.mxu0 0.0
      %5072 = vmatpush.msra.mxu0 %v4486
      %5073 = vmatmul.f32.gmra.mxu0 %v4398
      %v5074 = vpop.f32.mrf.mxu0
      %v5075 = vadd.f32 %v4394, %v5074
      %5076 = vdwg.mxu0
      %5077 = vmatpush.msra.mxu0 0.0
      %5078 = vmatpush.msra.mxu0 0.0
      %5079 = vmatpush.msra.mxu0 0.0
      %5080 = vmatpush.msra.mxu0 0.0
      %5081 = vmatpush.msra.mxu0 0.0
      %5082 = vmatpush.msra.mxu0 0.0
      %5083 = vmatpush.msra.mxu0 0.0
      %5084 = vmatpush.msra.mxu0 0.0
      %5085 = vmatpush.msra.mxu0 0.0
      %5086 = vmatpush.msra.mxu0 0.0
      %5087 = vmatpush.msra.mxu0 0.0
      %5088 = vmatpush.msra.mxu0 0.0
      %5089 = vmatpush.msra.mxu0 0.0
      %5090 = vmatpush.msra.mxu0 0.0
      %5091 = vmatpush.msra.mxu0 0.0
      %5092 = vmatpush.msra.mxu0 %v4489
      %5093 = vmatmul.f32.gmra.mxu0 %v4398
      %v5094 = vpop.f32.mrf.mxu0
      %v5095 = vadd.f32 %v4394, %v5094
      %5096 = vdwg.mxu0
      %5097 = vmatpush.msra.mxu0 0.0
      %5098 = vmatpush.msra.mxu0 0.0
      %5099 = vmatpush.msra.mxu0 0.0
      %5100 = vmatpush.msra.mxu0 0.0
      %5101 = vmatpush.msra.mxu0 0.0
      %5102 = vmatpush.msra.mxu0 0.0
      %5103 = vmatpush.msra.mxu0 0.0
      %5104 = vmatpush.msra.mxu0 0.0
      %5105 = vmatpush.msra.mxu0 0.0
      %5106 = vmatpush.msra.mxu0 0.0
      %5107 = vmatpush.msra.mxu0 0.0
      %5108 = vmatpush.msra.mxu0 0.0
      %5109 = vmatpush.msra.mxu0 0.0
      %5110 = vmatpush.msra.mxu0 0.0
      %5111 = vmatpush.msra.mxu0 0.0
      %5112 = vmatpush.msra.mxu0 %v4492
      %5113 = vmatmul.f32.gmra.mxu0 %v4398
      %v5114 = vpop.f32.mrf.mxu0
      %v5115 = vadd.f32 %v4394, %v5114
      %5116 = vdwg.mxu0
      %5117 = vmatpush.msra.mxu0 0.0
      %5118 = vmatpush.msra.mxu0 0.0
      %5119 = vmatpush.msra.mxu0 0.0
      %5120 = vmatpush.msra.mxu0 0.0
      %5121 = vmatpush.msra.mxu0 0.0
      %5122 = vmatpush.msra.mxu0 0.0
      %5123 = vmatpush.msra.mxu0 0.0
      %5124 = vmatpush.msra.mxu0 0.0
      %5125 = vmatpush.msra.mxu0 0.0
      %5126 = vmatpush.msra.mxu0 0.0
      %5127 = vmatpush.msra.mxu0 0.0
      %5128 = vmatpush.msra.mxu0 0.0
      %5129 = vmatpush.msra.mxu0 0.0
      %5130 = vmatpush.msra.mxu0 0.0
      %5131 = vmatpush.msra.mxu0 0.0
      %5132 = vmatpush.msra.mxu0 %v4495
      %5133 = vmatmul.f32.gmra.mxu0 %v4398
      %v5134 = vpop.f32.mrf.mxu0
      %v5135 = vadd.f32 %v4394, %v5134
      %5136 = vdwg.mxu0
      %v5169 = vrot.slane %v4535, 4
      %v5170 = vrot.slane %v4575, 4
      %v5171 = vrot.slane %v4615, 4
      %v5172 = vrot.slane %v4655, 4
      %v5173 = vrot.slane %v4695, 4
      %v5174 = vrot.slane %v4735, 4
      %v5175 = vrot.slane %v4775, 4
      %v5176 = vrot.slane %v4815, 4
      %v5177 = vrot.slane %v4855, 4
      %v5178 = vrot.slane %v4895, 4
      %v5179 = vrot.slane %v4935, 4
      %v5180 = vrot.slane %v4975, 4
      %v5181 = vrot.slane %v5015, 4
      %v5182 = vrot.slane %v5055, 4
      %v5183 = vrot.slane %v5095, 4
      %v5184 = vrot.slane %v5135, 4
      %vm5185 = vcmask 1043456
      %v5186 = vsel %vm5185, %v4515, %v5169
      %v5187 = vsel %vm5185, %v4555, %v5170
      %v5188 = vsel %vm5185, %v4595, %v5171
      %v5189 = vsel %vm5185, %v4635, %v5172
      %v5190 = vsel %vm5185, %v4675, %v5173
      %v5191 = vsel %vm5185, %v4715, %v5174
      %v5192 = vsel %vm5185, %v4755, %v5175
      %v5193 = vsel %vm5185, %v4795, %v5176
      %v5194 = vsel %vm5185, %v4835, %v5177
      %v5195 = vsel %vm5185, %v4875, %v5178
      %v5196 = vsel %vm5185, %v4915, %v5179
      %v5197 = vsel %vm5185, %v4955, %v5180
      %v5198 = vsel %vm5185, %v4995, %v5181
      %v5199 = vsel %vm5185, %v5035, %v5182
      %v5200 = vsel %vm5185, %v5075, %v5183
      %v5201 = vsel %vm5185, %v5115, %v5184
      %5218 = vst [vmem:[%s460] sm:$0x77] %v5186
      %5219 = vst [vmem:[%s460 + $0x8] sm:$0x77] %v5187
      %5220 = vst [vmem:[%s460 + $0x10] sm:$0x77] %v5188
      %5221 = vst [vmem:[%s460 + $0x18] sm:$0x77] %v5189
      %5222 = vst [vmem:[%s460 + $0x20] sm:$0x77] %v5190
      %5223 = vst [vmem:[%s460 + $0x28] sm:$0x77] %v5191
      %5224 = vst [vmem:[%s460 + $0x30] sm:$0x77] %v5192
      %5225 = vst [vmem:[%s460 + $0x38] sm:$0x77] %v5193
      %5226 = vst [vmem:[%s460 + $0x40] sm:$0x77] %v5194
      %5227 = vst [vmem:[%s460 + $0x48] sm:$0x77] %v5195
      %5228 = vst [vmem:[%s460 + $0x50] sm:$0x77] %v5196
      %5229 = vst [vmem:[%s460 + $0x58] sm:$0x77] %v5197
      %5230 = vst [vmem:[%s460 + $0x60] sm:$0x77] %v5198
      %5231 = vst [vmem:[%s460 + $0x68] sm:$0x77] %v5199
      %5232 = vst [vmem:[%s460 + $0x70] sm:$0x77] %v5200
      %5233 = vst [vmem:[%s460 + $0x78] sm:$0x77] %v5201
      %s5234 = smul.u32 32, %s27
      %p5235 = scmp.lt.s32.totalorder %s26, 1
      %s5236 = scalar_select %p5235, %s26, 1
      %p5237 = scmp.lt.s32.totalorder %s5234, 31
      %s5238 = scalar_select %p5237, %s5234, 31
      %s5239 = smul.addr %s5236, 32
      %s5240 = sadd.s32 %s5238, %s5239
      %s5241 = smul.addr %s5240, 4
      %s5242 = scalar_lea.vmem %s11, %s5241
      // Predicated region
      $region65: #{zmerge_forward.1} parent=63 // pred_check
        %p5243 = pneg %p299
      $region66: #{zmerge_forward.1} parent=63 // pred_check_branch
        %5245 = sbr.rel (%p5243) target = $region68
      $region67: #{zmerge_forward.1} parent=63 // pred_region
        %s5246 = smul.u32 32, %s27
      $region68: #{zmerge_forward.1} parent=63 // pred_fallthru
        _
    $region64: #{zmerge_forward.1} parent=5 // pred_fallthru
      _
    %p5247 = scmp.le.s32.totalorder 2, %s17
    // Predicated region
    $region69: #{zmerge_forward.1} parent=5 // pred_check
      %p5248 = pneg %p5247
    $region70: #{zmerge_forward.1} parent=5 // pred_check_branch
      %5250 = sbr.rel (%p5248) target = $region72
    $region71: #{zmerge_forward.1} parent=5 // pred_region
      %s5251 = ssub.s32 %s17, 2
      // Predicated region
      $region73: #{zmerge_forward.1} parent=71 // pred_check
        %p5252 = pneg %p305
      $region74: #{zmerge_forward.1} parent=71 // pred_check_branch
        %5254 = sbr.rel (%p5252) target = $region76
      $region75: #{zmerge_forward.1} parent=71 // pred_region
        %s5255 = smul.u32 32, %s29
        %p5256 = scmp.lt.s32.totalorder %s28, 1
        %s5257 = scalar_select %p5256, %s28, 1
        %p5258 = scmp.lt.s32.totalorder %s5255, 31
        %s5259 = scalar_select %p5258, %s5255, 31
        %s5260 = smul.addr %s5257, 32
        %s5261 = sadd.s32 %s5259, %s5260
        %s5262 = smul.addr %s5261, 4
        %s5263 = scalar_lea.vmem %s11, %s5262
      $region76: #{zmerge_forward.1} parent=71 // pred_fallthru
        _
    $region72: #{zmerge_forward.1} parent=5 // pred_fallthru
      _
  $region6: #{zmerge_forward.1} parent=0 // loop_footer
    %s21 = sadd.s32 1, %s17
  $region7: #{zmerge_forward.1} parent=0 // loop_footer_branch
    %16 = sbr.rel target = $region3
  $region8: #{zmerge_forward.1} parent=0 // loop_exit
    _

</llo_original>
